<compile_context>
chip_gen: v7x
topology: tpu7x:2x2x1
jax: 0.10.0
libtpu: 0.0.40
codegen_flags: <defaults>
</compile_context>

<pallas_src>
import functools

import jax
import jax.numpy as jnp
from jax.experimental import pallas as pl
from jax.experimental.pallas import tpu as pltpu


def _round_up(x, m):
    return ((x + m - 1) // m) * m


def _cdiv(a, b):
    return (a + b - 1) // b


# ---------------------------------------------------------------------------
# Kernel body
# ---------------------------------------------------------------------------
def _ffn_kernel(x_ref, w1_ref, b1_ref, w2_ref, b2_ref, o_ref, acc_ref):
    """One (tm, C) row tile x one hidden chunk of size hk.

    Grid = (num_row_tiles, num_hidden_chunks); the hidden axis is a reduction
    accumulated into an f32 VMEM scratch, finalized (+b2, store) on the last
    chunk.  x is cast to bf16 in-register (no extra HBM conversion pass).
    """
    k = pl.program_id(1)

    @pl.when(k == 0)
    def _init():
        acc_ref[...] = jnp.zeros_like(acc_ref)

    # First matmul (bf16 operands, f32 accumulation) + bias + ReLU for this chunk.
    x = x_ref[...].astype(jnp.bfloat16)
    h = jnp.dot(x, w1_ref[...], preferred_element_type=jnp.float32)
    h = jnp.maximum(h + b1_ref[...], 0.0)

    # Partial contribution of this hidden chunk to the (tm, C) output.
    acc_ref[...] += jnp.dot(h.astype(w2_ref.dtype), w2_ref[...],
                            preferred_element_type=jnp.float32)

    @pl.when(k == pl.num_programs(1) - 1)
    def _finalize():
        # b2 added once at finalize (keeps VALU work out of the reduction loop).
        # TODO(synk): nn.Dropout(0.2) training mode (inverted dropout via
        # pltpu.prng_seed / pltpu.prng_random_bits) not applied; eval => identity.
        o_ref[...] = (acc_ref[...] + b2_ref[...]).astype(o_ref.dtype)


# ---------------------------------------------------------------------------
# Generation-aware tile / VMEM sizing
# ---------------------------------------------------------------------------
def _vmem_budget_bytes():
    """Physical VMEM per TensorCore minus headroom (v5e/v6e: 128 MiB, v7x: 64 MiB)."""
    try:
        cap = getattr(pltpu.get_tpu_info(), "vmem_capacity_bytes", None)
        if cap:
            return max(32 * 1024 * 1024, int(cap) - 16 * 1024 * 1024)
    except Exception:
        pass
    return 48 * 1024 * 1024  # conservative fallback = smallest (v7x) capacity


def _footprint_bytes(tm, hk, C, out_bytes, x_bytes):
    """Rough VMEM need: double-buffered blocks + scratch + h intermediate."""
    return (2 * 2 * (C * hk * 2)                    # W1 + W2 bf16 blocks, x2 buffers
            + 2 * 4 * (hk + C)                      # biases (f32), x2 buffers
            + 2 * tm * C * (x_bytes + out_bytes)    # x + out tiles, x2 buffers
            + tm * C * 4                            # f32 accumulator scratch
            + tm * hk * 4)                          # live h intermediate


def _pick_hk(C, H, budget):
    """Largest hidden chunk whose double-buffered weight blocks fit comfortably."""
    cands = [H] + [c for c in (2048, 1024, 512, 256, 128) if c < H and H % c == 0]
    for hk in cands:
        if 8 * C * hk <= (2 * budget) // 3:         # leave >=1/3 for activation tiles
            return hk
    return cands[-1]


def _pick_tm(M, C, hk, n_k, out_bytes, x_bytes, budget):
    if M <= 256:
        # One tile: avoids per-step overhead and keeps the MXU M-fill whole on
        # 1-TC chips; never below the 16-row bf16 sublane tile.
        return _round_up(M, 16)
    # Weight-streaming path wants high arithmetic intensity per streamed weight
    # byte (v6e ridge ~650 flops/byte -> tm ~1024); resident path is fine at 512.
    tm = 1024 if n_k > 1 else 512
    while tm > 256 and _footprint_bytes(tm, hk, C, out_bytes, x_bytes) > budget:
        tm -= 256
    # Prefer an even number of row tiles so v7x's 2 TensorCores split the
    # "parallel" axis evenly (no effect on 1-TC v5e/v6e).
    n_i = _cdiv(M, tm)
    if n_i > 1 and n_i % 2 == 1:
        tm_even = _round_up(_cdiv(M, n_i + 1), 16)
        if tm_even >= 128:
            tm = tm_even
    return tm


# ---------------------------------------------------------------------------
# Wrapper
# ---------------------------------------------------------------------------
def feed_forward(x, w1, b1, w2, b2, *, tm=None, hk=None, out_dtype=None):
    """x: (B, T, C); w1: (C, 4C); b1: (4C,); w2: (4C, C); b2: (C,).

    For best performance pass w1/w2 already in bfloat16 (see prepare_params)
    so no per-call HBM conversion pass is paid; x is cast inside the kernel.
    """
    B, T, C = x.shape
    H = w1.shape[1]
    M = B * T
    if out_dtype is None:
        out_dtype = x.dtype

    # Convert once here only if the caller didn't (prefer prepare_params outside jit).
    w1b = w1 if w1.dtype == jnp.bfloat16 else w1.astype(jnp.bfloat16)
    w2b = w2 if w2.dtype == jnp.bfloat16 else w2.astype(jnp.bfloat16)
    b1_2d = jnp.asarray(b1, jnp.float32).reshape(1, H)
    b2_2d = jnp.asarray(b2, jnp.float32).reshape(1, C)

    budget = _vmem_budget_bytes()
    if hk is None:
        hk = _pick_hk(C, H, budget)
    assert H % hk == 0, "hidden dim must be divisible by the hidden chunk size"
    n_k = H // hk

    x_bytes = x.dtype.itemsize
    out_bytes = jnp.dtype(out_dtype).itemsize
    if tm is None:
        tm = _pick_tm(M, C, hk, n_k, out_bytes, x_bytes, budget)
    n_i = _cdiv(M, tm)  # ragged last row tile; no jnp.pad HBM pass

    x2d = x.reshape(M, C)

    footprint = _footprint_bytes(tm, hk, C, out_bytes, x_bytes)
    vmem_limit = int(min(budget, max(32 * 1024 * 1024, 2 * footprint)))

    # Advisory roofline for XLA's scheduling of surrounding ops.
    w_stream = n_i if n_k > 1 else 1   # weights re-fetched per row tile when chunked
    cost = pl.CostEstimate(
        flops=4 * M * H * C,
        bytes_accessed=(M * C * (x_bytes + out_bytes)
                        + w_stream * 2 * (C * H + H * C)
                        + 4 * (H + C)),
        transcendentals=0)

    out2d = pl.pallas_call(
        _ffn_kernel,
        out_shape=jax.ShapeDtypeStruct((M, C), out_dtype),
        grid_spec=pltpu.PrefetchScalarGridSpec(
            num_scalar_prefetch=0,
            grid=(n_i, n_k),
            in_specs=[
                pl.BlockSpec((tm, C), lambda i, k: (i, 0)),   # x row tile
                pl.BlockSpec((C, hk), lambda i, k: (0, k)),   # W1 hidden chunk
                pl.BlockSpec((1, hk), lambda i, k: (0, k)),   # b1 hidden chunk
                pl.BlockSpec((hk, C), lambda i, k: (k, 0)),   # W2 hidden chunk
                pl.BlockSpec((1, C), lambda i, k: (0, 0)),    # b2 (resident)
            ],
            out_specs=pl.BlockSpec((tm, C), lambda i, k: (i, 0)),
            scratch_shapes=[pltpu.VMEM((tm, C), jnp.float32)],
        ),
        compiler_params=pltpu.CompilerParams(
            dimension_semantics=("parallel", "arbitrary"),
            vmem_limit_bytes=vmem_limit),
        cost_estimate=cost,
    )(x2d, w1b, b1_2d, w2b, b2_2d)

    return out2d.reshape(B, T, C)


def init_params(key, n_embd):
    """Deterministic init matching nn.Linear's U(-1/sqrt(fan_in), 1/sqrt(fan_in))."""
    hidden = 4 * n_embd
    k1, k2, k3, k4 = jax.random.split(key, 4)
    bound1 = 1.0 / jnp.sqrt(n_embd)
    bound2 = 1.0 / jnp.sqrt(hidden)
    # stored as (in, out) so the kernel does x @ W (PyTorch stores (out, in))
    w1 = jax.random.uniform(k1, (n_embd, hidden), jnp.float32, -bound1, bound1)
    b1 = jax.random.uniform(k2, (hidden,), jnp.float32, -bound1, bound1)
    w2 = jax.random.uniform(k3, (hidden, n_embd), jnp.float32, -bound2, bound2)
    b2 = jax.random.uniform(k4, (n_embd,), jnp.float32, -bound2, bound2)
    return w1, b1, w2, b2


def prepare_params(w1, b1, w2, b2):
    """One-time conversion OUTSIDE the jitted forward: bf16 weights, f32 biases."""
    return (w1.astype(jnp.bfloat16), jnp.asarray(b1, jnp.float32),
            w2.astype(jnp.bfloat16), jnp.asarray(b2, jnp.float32))


if __name__ == "__main__":
    # Small shapes consistent with the module: batch=2, seq=8, n_embd=384.
    B, T, C = 2, 8, 384
    key = jax.random.PRNGKey(0)
    kx, kp = jax.random.split(key)
    x = jax.random.normal(kx, (B, T, C), jnp.float32)
    w1, b1, w2, b2 = init_params(kp, C)

    # f32 reference (eval-mode dropout == identity); bf16 matmuls => loose tol.
    ref = (jnp.maximum(x.reshape(-1, C) @ w1 + b1, 0.0) @ w2 + b2).reshape(B, T, C)

    # Weights converted to bf16 ONCE, outside the jitted forward.
    w1b, b1p, w2b, b2p = prepare_params(w1, b1, w2, b2)

    # Default path: weights resident (single hidden chunk), single row tile.
    out = jax.block_until_ready(jax.jit(feed_forward)(x, w1b, b1p, w2b, b2p))
    assert out.shape == (B, T, C) and out.dtype == x.dtype
    assert jnp.allclose(out, ref, atol=3e-2, rtol=3e-2)

    # Chunked-hidden path (exercises the reduction axis + f32 accumulator).
    ff_chunked = jax.jit(functools.partial(feed_forward, tm=16, hk=512))
    out2 = jax.block_until_ready(ff_chunked(x, w1b, b1p, w2b, b2p))
    assert jnp.allclose(out2, ref, atol=3e-2, rtol=3e-2)

    # Ragged last row tile (M=24, tm=16): no pad pass, masked tail store.
    x_r = jax.random.normal(kx, (2, 12, C), jnp.float32)
    ref_r = (jnp.maximum(x_r.reshape(-1, C) @ w1 + b1, 0.0) @ w2 + b2).reshape(2, 12, C)
    ff_ragged = jax.jit(functools.partial(feed_forward, tm=16))
    out3 = jax.block_until_ready(ff_ragged(x_r, w1b, b1p, w2b, b2p))
    assert jnp.allclose(out3, ref_r, atol=3e-2, rtol=3e-2)

    print("KERNEL_OK")
</pallas_src>

<mosaic_0001>
module attributes {stable_mosaic.version = 11 : i64} {
  func.func @_ffn_kernel(%arg0: i32, %arg1: i32, %arg2: memref<16x384xf32, #tpu.memory_space<vmem>>, %arg3: memref<384x1536xbf16, #tpu.memory_space<vmem>>, %arg4: memref<1x1536xf32, #tpu.memory_space<vmem>>, %arg5: memref<1536x384xbf16, #tpu.memory_space<vmem>>, %arg6: memref<1x384xf32, #tpu.memory_space<vmem>>, %arg7: memref<16x384xf32, #tpu.memory_space<vmem>>, %arg8: memref<16x384xf32, #tpu.memory_space<vmem>>) attributes {dimension_semantics = [#tpu.dimension_semantics<parallel>, #tpu.dimension_semantics<arbitrary>], iteration_bounds = array<i64: 1, 1>, scalar_prefetch = 0 : i64, scratch_operands = 1 : i64, tpu.core_type = #tpu.core_type<tc>, window_params = [{transform_indices = @transform_0, window_bounds = array<i64: 16, 384>}, {transform_indices = @transform_1, window_bounds = array<i64: 384, 1536>}, {transform_indices = @transform_2, window_bounds = array<i64: 1, 1536>}, {transform_indices = @transform_3, window_bounds = array<i64: 1536, 384>}, {pipeline_mode = #tpu.pipeline_mode<synchronous>, transform_indices = @transform_4, window_bounds = array<i64: 1, 384>}, {transform_indices = @transform_5, window_bounds = array<i64: 16, 384>}]} {
    %c0_i32 = arith.constant 0 : i32
    %0 = arith.cmpi eq, %arg1, %c0_i32 : i32
    %1 = arith.extui %0 : i1 to i32
    %c0_i32_0 = arith.constant 0 : i32
    %2 = arith.cmpi ne, %1, %c0_i32_0 : i32
    scf.if %2 {
      %cst_16 = arith.constant 0.000000e+00 : f32
      %21 = vector.broadcast %cst_16 : f32 to vector<16x384xf32>
      %c0_17 = arith.constant 0 : index
      %c0_18 = arith.constant 0 : index
      %22 = vector.load %arg8[%c0_17, %c0_18] : memref<16x384xf32, #tpu.memory_space<vmem>>, vector<16x384xf32>
      tpu.vector_store %arg8[%c0_17, %c0_18], %21 {strides = array<i32>} : memref<16x384xf32, #tpu.memory_space<vmem>>, vector<16x384xf32>,
    } else {
    }
    %c0 = arith.constant 0 : index
    %c0_1 = arith.constant 0 : index
    %3 = vector.load %arg2[%c0, %c0_1] : memref<16x384xf32, #tpu.memory_space<vmem>>, vector<16x384xf32>
    %4 = arith.truncf %3 : vector<16x384xf32> to vector<16x384xbf16>
    %c0_2 = arith.constant 0 : index
    %c0_3 = arith.constant 0 : index
    %5 = vector.load %arg3[%c0_2, %c0_3] : memref<384x1536xbf16, #tpu.memory_space<vmem>>, vector<384x1536xbf16>
    %cst = arith.constant dense<0.000000e+00> : vector<16x1536xf32>
    %6 = tpu.matmul %4, %5, %cst {dimension_numbers = #tpu.dot_dimension_numbers<[1], [0], [0], [1], [0, 0, 1, 1], [], []>} : vector<16x384xbf16>, vector<384x1536xbf16>, vector<16x1536xf32> -> vector<16x1536xf32>
    %c0_4 = arith.constant 0 : index
    %c0_5 = arith.constant 0 : index
    %7 = vector.load %arg4[%c0_4, %c0_5] : memref<1x1536xf32, #tpu.memory_space<vmem>>, vector<1x1536xf32>
    %8 = vector.broadcast %7 : vector<1x1536xf32> to vector<16x1536xf32>
    %9 = arith.addf %6, %8 : vector<16x1536xf32>
    %cst_6 = arith.constant 0.000000e+00 : f32
    %10 = vector.broadcast %cst_6 : f32 to vector<16x1536xf32>
    %11 = arith.maximumf %9, %10 : vector<16x1536xf32>
    %c0_7 = arith.constant 0 : index
    %c0_8 = arith.constant 0 : index
    %12 = vector.load %arg8[%c0_7, %c0_8] : memref<16x384xf32, #tpu.memory_space<vmem>>, vector<16x384xf32>
    %13 = arith.truncf %11 : vector<16x1536xf32> to vector<16x1536xbf16>
    %c0_9 = arith.constant 0 : index
    %c0_10 = arith.constant 0 : index
    %14 = vector.load %arg5[%c0_9, %c0_10] : memref<1536x384xbf16, #tpu.memory_space<vmem>>, vector<1536x384xbf16>
    %cst_11 = arith.constant dense<0.000000e+00> : vector<16x384xf32>
    %15 = tpu.matmul %13, %14, %cst_11 {dimension_numbers = #tpu.dot_dimension_numbers<[1], [0], [0], [1], [0, 0, 1, 1], [], []>} : vector<16x1536xbf16>, vector<1536x384xbf16>, vector<16x384xf32> -> vector<16x384xf32>
    %16 = arith.addf %12, %15 : vector<16x384xf32>
    %c0_12 = arith.constant 0 : index
    %c0_13 = arith.constant 0 : index
    %17 = vector.load %arg8[%c0_12, %c0_13] : memref<16x384xf32, #tpu.memory_space<vmem>>, vector<16x384xf32>
    tpu.vector_store %arg8[%c0_12, %c0_13], %16 {strides = array<i32>} : memref<16x384xf32, #tpu.memory_space<vmem>>, vector<16x384xf32>,
    %c0_i32_14 = arith.constant 0 : i32
    %18 = arith.cmpi eq, %arg1, %c0_i32_14 : i32
    %19 = arith.extui %18 : i1 to i32
    %c0_i32_15 = arith.constant 0 : i32
    %20 = arith.cmpi ne, %19, %c0_i32_15 : i32
    scf.if %20 {
      %c0_16 = arith.constant 0 : index
      %c0_17 = arith.constant 0 : index
      %21 = vector.load %arg8[%c0_16, %c0_17] : memref<16x384xf32, #tpu.memory_space<vmem>>, vector<16x384xf32>
      %c0_18 = arith.constant 0 : index
      %c0_19 = arith.constant 0 : index
      %22 = vector.load %arg6[%c0_18, %c0_19] : memref<1x384xf32, #tpu.memory_space<vmem>>, vector<1x384xf32>
      %23 = vector.broadcast %22 : vector<1x384xf32> to vector<16x384xf32>
      %24 = arith.addf %21, %23 : vector<16x384xf32>
      %c0_20 = arith.constant 0 : index
      %c0_21 = arith.constant 0 : index
      %25 = vector.load %arg7[%c0_20, %c0_21] : memref<16x384xf32, #tpu.memory_space<vmem>>, vector<16x384xf32>
      tpu.vector_store %arg7[%c0_20, %c0_21], %24 {strides = array<i32>} : memref<16x384xf32, #tpu.memory_space<vmem>>, vector<16x384xf32>,
    } else {
    }
    return
  }
  func.func @transform_0(%arg0: i32, %arg1: i32) -> (i32, i32) {
    %c0_i32 = arith.constant 0 : i32
    %c0_i32_0 = arith.constant 0 : i32
    return %arg0, %c0_i32 : i32, i32
  }
  func.func @transform_1(%arg0: i32, %arg1: i32) -> (i32, i32) {
    %c0_i32 = arith.constant 0 : i32
    %c0_i32_0 = arith.constant 0 : i32
    return %c0_i32, %arg1 : i32, i32
  }
  func.func @transform_2(%arg0: i32, %arg1: i32) -> (i32, i32) {
    %c0_i32 = arith.constant 0 : i32
    %c0_i32_0 = arith.constant 0 : i32
    return %c0_i32, %arg1 : i32, i32
  }
  func.func @transform_3(%arg0: i32, %arg1: i32) -> (i32, i32) {
    %c0_i32 = arith.constant 0 : i32
    %c0_i32_0 = arith.constant 0 : i32
    return %arg1, %c0_i32 : i32, i32
  }
  func.func @transform_4(%arg0: i32, %arg1: i32) -> (i32, i32) {
    %c0_i32 = arith.constant 0 : i32
    %c0_i32_0 = arith.constant 0 : i32
    %c0_i32_1 = arith.constant 0 : i32
    return %c0_i32, %c0_i32_0 : i32, i32
  }
  func.func @transform_5(%arg0: i32, %arg1: i32) -> (i32, i32) {
    %c0_i32 = arith.constant 0 : i32
    %c0_i32_0 = arith.constant 0 : i32
    return %arg0, %c0_i32 : i32, i32
  }
}

</mosaic_0001>

<llo_original>
// kernel: feed_forward.1
$region0: #{feed_forward.1}
  #allocation0 [shape = 'u32[]', space=smem, size = 0x4, offset = 0x4, fixed_abs, tag = 'smem constant byte address 0x4 - core index']
  #allocation1 [shape = 'u32[144,128]{1,0:T(1,128)}', space=vmem, size = 0x12000, scoped, tag = 'internal scratch']
  #allocation2 [shape = 'f32[16,384]{1,0:T(8,128)}', space=vmem, size = 0x6000, scoped, tag = 'scratch operand']
  %s0 = inlined_call_operand.hbm [shape: f32[16,384], index: 0, kind: input, shape index: {}]
  %s1 = inlined_call_operand.hbm [shape: bf16[384,1536], index: 1, kind: input, shape index: {}]
  %s2 = inlined_call_operand.vmem [shape: f32[1,1536], index: 2, kind: input, shape index: {}]
  %s3 = inlined_call_operand.hbm [shape: bf16[1536,384], index: 3, kind: input, shape index: {}]
  %s4 = inlined_call_operand.vmem [shape: f32[1,384], index: 4, kind: input, shape index: {}]
  %s5 = inlined_call_operand.hbm [shape: f32[16,384], index: 5, kind: output, shape index: {}]
  %s6 = sld [smem:[#allocation0]]
  $region50: #{feed_forward.1} parent=0
    _
  %s8 = ssub.s32 1, %s6
  %s9 = scalar_select 0, %s8, %s6
  $region1: #{feed_forward.1} parent=0
    #allocation3 [shape = 'u8[24576]{0}', space=vmem, size = 0x6000, scoped, tag = 'input window, operand 0, single buffered']
    #allocation4 [shape = 's32[1]{0}', space=sflag, size = 0x4, scoped, tag = 'scoped memory for feed_forward.1']
    #allocation5 [shape = 's32[1]{0}', space=sflag, size = 0x4, scoped, tag = 'scoped memory for feed_forward.1']
    #allocation6 [shape = 'u8[1179648]{0}', space=vmem, size = 0x120000, scoped, tag = 'input window, operand 1, single buffered']
    #allocation7 [shape = 's32[1]{0}', space=sflag, size = 0x4, scoped, tag = 'scoped memory for feed_forward.1']
    #allocation8 [shape = 'u8[1179648]{0}', space=vmem, size = 0x120000, scoped, tag = 'input window, operand 3, single buffered']
    #allocation9 [shape = 'u8[24576]{0}', space=vmem, size = 0x6000, scoped, tag = 'output window, operand 0, single buffered']
    %10 = vsyncpa [#allocation4], 0
    %11 = vsyncpa [#allocation7], 0
    %12 = vsyncpa [#allocation5], 0
    // Predicated region
    $region2: #{feed_forward.1} parent=1 // pred_check
      _
    $region3: #{feed_forward.1} parent=1 // pred_check_branch
      %14 = sbr.rel (0) target = $region5
    $region4: #{feed_forward.1} parent=1 // pred_region
      %s16 = ssub.s32 768, 768
      %17 = vsyncadd [#allocation4], %s16
      %s18 = sshll.u32 [#allocation3], 4
      %s19 = int_to_ptr.vmem [resolvable:$true] %s18
      %24 = dma.hbm_to_vmem [thread:$0]  %s0, 768, %s19, [#allocation4], 384, 384, 24
    $region5: #{feed_forward.1} parent=1 // pred_fallthru
      _
    // Predicated region
    $region6: #{feed_forward.1} parent=1 // pred_check
      _
    $region7: #{feed_forward.1} parent=1 // pred_check_branch
      %26 = sbr.rel (0) target = $region9
    $region8: #{feed_forward.1} parent=1 // pred_region
      %s28 = ssub.s32 36864, 36864
      %29 = vsyncadd [#allocation7], %s28
      %s30 = sshll.u32 [#allocation6], 4
      %s31 = int_to_ptr.vmem [resolvable:$true] %s30
      %36 = dma.hbm_to_vmem [thread:$0]  %s1, 36864, %s31, [#allocation7], 768, 768, 48
    $region9: #{feed_forward.1} parent=1 // pred_fallthru
      _
    // Predicated region
    $region10: #{feed_forward.1} parent=1 // pred_check
      _
    $region11: #{feed_forward.1} parent=1 // pred_check_branch
      %38 = sbr.rel (0) target = $region13
    $region12: #{feed_forward.1} parent=1 // pred_region
      _
    $region13: #{feed_forward.1} parent=1 // pred_fallthru
      _
    // Predicated region
    $region14: #{feed_forward.1} parent=1 // pred_check
      _
    $region15: #{feed_forward.1} parent=1 // pred_check_branch
      %40 = sbr.rel (0) target = $region17
    $region16: #{feed_forward.1} parent=1 // pred_region
      %s42 = ssub.s32 36864, 36864
      %43 = vsyncadd [#allocation7], %s42
      %s44 = sshll.u32 [#allocation8], 4
      %s45 = int_to_ptr.vmem [resolvable:$true] %s44
      %50 = dma.hbm_to_vmem [thread:$0]  %s3, 36864, %s45, [#allocation7], 192, 192, 12
    $region17: #{feed_forward.1} parent=1 // pred_fallthru
      _
    // Predicated region
    $region18: #{feed_forward.1} parent=1 // pred_check
      _
    $region19: #{feed_forward.1} parent=1 // pred_check_branch
      %52 = sbr.rel (0) target = $region21
    $region20: #{feed_forward.1} parent=1 // pred_region
      _
    $region21: #{feed_forward.1} parent=1 // pred_fallthru
      _
    // Predicated region
    $region22: #{feed_forward.1} parent=1 // pred_check
      _
    $region23: #{feed_forward.1} parent=1 // pred_check_branch
      %54 = sbr.rel (0) target = $region25
    $region24: #{feed_forward.1} parent=1 // pred_region
      %55 = dma.done [#allocation4], 768
    $region25: #{feed_forward.1} parent=1 // pred_fallthru
      _
    // Predicated region
    $region26: #{feed_forward.1} parent=1 // pred_check
      _
    $region27: #{feed_forward.1} parent=1 // pred_check_branch
      %57 = sbr.rel (0) target = $region29
    $region28: #{feed_forward.1} parent=1 // pred_region
      %58 = dma.done [#allocation7], 36864
    $region29: #{feed_forward.1} parent=1 // pred_fallthru
      _
    // Predicated region
    $region30: #{feed_forward.1} parent=1 // pred_check
      _
    $region31: #{feed_forward.1} parent=1 // pred_check_branch
      %60 = sbr.rel (0) target = $region33
    $region32: #{feed_forward.1} parent=1 // pred_region
      %61 = dma.done [#allocation7], 36864
    $region33: #{feed_forward.1} parent=1 // pred_fallthru
      _
    %p63 = scmp.eq.s32.totalorder 0, 0
    // Predicated region
    $region34: #{feed_forward.1} parent=1 // pred_check
      %p64 = pneg %p63
    $region35: #{feed_forward.1} parent=1 // pred_check_branch
      %66 = sbr.rel (%p64) target = $region37
    $region36: #{feed_forward.1} parent=1 // pred_region
      %67 = vst [vmem:[#allocation2] sm:$0xff] 0.0
      %68 = vst [vmem:[#allocation2 + $0x8] sm:$0xff] 0.0
      %69 = vst [vmem:[#allocation2 + $0x10] sm:$0xff] 0.0
      %70 = vst [vmem:[#allocation2 + $0x18] sm:$0xff] 0.0
      %71 = vst [vmem:[#allocation2 + $0x20] sm:$0xff] 0.0
      %72 = vst [vmem:[#allocation2 + $0x28] sm:$0xff] 0.0
    $region37: #{feed_forward.1} parent=1 // pred_fallthru
      _
    %v73 = vld [vmem:[#allocation3] sm:$0xff]
    %v74 = vld [vmem:[#allocation3 + $0x8] sm:$0xff]
    %v75 = vld [vmem:[#allocation3 + $0x10] sm:$0xff]
    %v76 = vld [vmem:[#allocation3 + $0x18] sm:$0xff]
    %v77 = vld [vmem:[#allocation3 + $0x20] sm:$0xff]
    %v78 = vld [vmem:[#allocation3 + $0x28] sm:$0xff]
    %v79 = vpack.c.bf16 %v76, %v73
    %v80 = vpack.c.bf16 %v77, %v74
    %v81 = vpack.c.bf16 %v78, %v75
    %v82 = vld [vmem:[#allocation6] sm:$0xff]
    %v83 = vld [vmem:[#allocation6 + $0x8] sm:$0xff]
    %v84 = vld [vmem:[#allocation6 + $0x10] sm:$0xff]
    %v85 = vld [vmem:[#allocation6 + $0x18] sm:$0xff]
    %v86 = vld [vmem:[#allocation6 + $0x20] sm:$0xff]
    %v87 = vld [vmem:[#allocation6 + $0x28] sm:$0xff]
    %v88 = vld [vmem:[#allocation6 + $0x30] sm:$0xff]
    %v89 = vld [vmem:[#allocation6 + $0x38] sm:$0xff]
    %v90 = vld [vmem:[#allocation6 + $0x40] sm:$0xff]
    %v91 = vld [vmem:[#allocation6 + $0x48] sm:$0xff]
    %v92 = vld [vmem:[#allocation6 + $0x50] sm:$0xff]
    %v93 = vld [vmem:[#allocation6 + $0x58] sm:$0xff]
    %v94 = vld [vmem:[#allocation6 + $0x60] sm:$0xff]
    %v95 = vld [vmem:[#allocation6 + $0x68] sm:$0xff]
    %v96 = vld [vmem:[#allocation6 + $0x70] sm:$0xff]
    %v97 = vld [vmem:[#allocation6 + $0x78] sm:$0xff]
    %v98 = vld [vmem:[#allocation6 + $0x80] sm:$0xff]
    %v99 = vld [vmem:[#allocation6 + $0x88] sm:$0xff]
    %v100 = vld [vmem:[#allocation6 + $0x90] sm:$0xff]
    %v101 = vld [vmem:[#allocation6 + $0x98] sm:$0xff]
    %v102 = vld [vmem:[#allocation6 + $0xa0] sm:$0xff]
    %v103 = vld [vmem:[#allocation6 + $0xa8] sm:$0xff]
    %v104 = vld [vmem:[#allocation6 + $0xb0] sm:$0xff]
    %v105 = vld [vmem:[#allocation6 + $0xb8] sm:$0xff]
    %v106 = vld [vmem:[#allocation6 + $0xc0] sm:$0xff]
    %v107 = vld [vmem:[#allocation6 + $0xc8] sm:$0xff]
    %v108 = vld [vmem:[#allocation6 + $0xd0] sm:$0xff]
    %v109 = vld [vmem:[#allocation6 + $0xd8] sm:$0xff]
    %v110 = vld [vmem:[#allocation6 + $0xe0] sm:$0xff]
    %v111 = vld [vmem:[#allocation6 + $0xe8] sm:$0xff]
    %v112 = vld [vmem:[#allocation6 + $0xf0] sm:$0xff]
    %v113 = vld [vmem:[#allocation6 + $0xf8] sm:$0xff]
    %v114 = vld [vmem:[#allocation6 + $0x100] sm:$0xff]
    %v115 = vld [vmem:[#allocation6 + $0x108] sm:$0xff]
    %v116 = vld [vmem:[#allocation6 + $0x110] sm:$0xff]
    %v117 = vld [vmem:[#allocation6 + $0x118] sm:$0xff]
    %v118 = vld [vmem:[#allocation6 + $0x120] sm:$0xff]
    %v119 = vld [vmem:[#allocation6 + $0x128] sm:$0xff]
    %v120 = vld [vmem:[#allocation6 + $0x130] sm:$0xff]
    %v121 = vld [vmem:[#allocation6 + $0x138] sm:$0xff]
    %v122 = vld [vmem:[#allocation6 + $0x140] sm:$0xff]
    %v123 = vld [vmem:[#allocation6 + $0x148] sm:$0xff]
    %v124 = vld [vmem:[#allocation6 + $0x150] sm:$0xff]
    %v125 = vld [vmem:[#allocation6 + $0x158] sm:$0xff]
    %v126 = vld [vmem:[#allocation6 + $0x160] sm:$0xff]
    %v127 = vld [vmem:[#allocation6 + $0x168] sm:$0xff]
    %v128 = vld [vmem:[#allocation6 + $0x170] sm:$0xff]
    %v129 = vld [vmem:[#allocation6 + $0x178] sm:$0xff]
    %v130 = vld [vmem:[#allocation6 + $0x180] sm:$0xff]
    %v131 = vld [vmem:[#allocation6 + $0x188] sm:$0xff]
    %v132 = vld [vmem:[#allocation6 + $0x190] sm:$0xff]
    %v133 = vld [vmem:[#allocation6 + $0x198] sm:$0xff]
    %v134 = vld [vmem:[#allocation6 + $0x1a0] sm:$0xff]
    %v135 = vld [vmem:[#allocation6 + $0x1a8] sm:$0xff]
    %v136 = vld [vmem:[#allocation6 + $0x1b0] sm:$0xff]
    %v137 = vld [vmem:[#allocation6 + $0x1b8] sm:$0xff]
    %v138 = vld [vmem:[#allocation6 + $0x1c0] sm:$0xff]
    %v139 = vld [vmem:[#allocation6 + $0x1c8] sm:$0xff]
    %v140 = vld [vmem:[#allocation6 + $0x1d0] sm:$0xff]
    %v141 = vld [vmem:[#allocation6 + $0x1d8] sm:$0xff]
    %v142 = vld [vmem:[#allocation6 + $0x1e0] sm:$0xff]
    %v143 = vld [vmem:[#allocation6 + $0x1e8] sm:$0xff]
    %v144 = vld [vmem:[#allocation6 + $0x1f0] sm:$0xff]
    %v145 = vld [vmem:[#allocation6 + $0x1f8] sm:$0xff]
    %v146 = vld [vmem:[#allocation6 + $0x200] sm:$0xff]
    %v147 = vld [vmem:[#allocation6 + $0x208] sm:$0xff]
    %v148 = vld [vmem:[#allocation6 + $0x210] sm:$0xff]
    %v149 = vld [vmem:[#allocation6 + $0x218] sm:$0xff]
    %v150 = vld [vmem:[#allocation6 + $0x220] sm:$0xff]
    %v151 = vld [vmem:[#allocation6 + $0x228] sm:$0xff]
    %v152 = vld [vmem:[#allocation6 + $0x230] sm:$0xff]
    %v153 = vld [vmem:[#allocation6 + $0x238] sm:$0xff]
    %v154 = vld [vmem:[#allocation6 + $0x240] sm:$0xff]
    %v155 = vld [vmem:[#allocation6 + $0x248] sm:$0xff]
    %v156 = vld [vmem:[#allocation6 + $0x250] sm:$0xff]
    %v157 = vld [vmem:[#allocation6 + $0x258] sm:$0xff]
    %v158 = vld [vmem:[#allocation6 + $0x260] sm:$0xff]
    %v159 = vld [vmem:[#allocation6 + $0x268] sm:$0xff]
    %v160 = vld [vmem:[#allocation6 + $0x270] sm:$0xff]
    %v161 = vld [vmem:[#allocation6 + $0x278] sm:$0xff]
    %v162 = vld [vmem:[#allocation6 + $0x280] sm:$0xff]
    %v163 = vld [vmem:[#allocation6 + $0x288] sm:$0xff]
    %v164 = vld [vmem:[#allocation6 + $0x290] sm:$0xff]
    %v165 = vld [vmem:[#allocation6 + $0x298] sm:$0xff]
    %v166 = vld [vmem:[#allocation6 + $0x2a0] sm:$0xff]
    %v167 = vld [vmem:[#allocation6 + $0x2a8] sm:$0xff]
    %v168 = vld [vmem:[#allocation6 + $0x2b0] sm:$0xff]
    %v169 = vld [vmem:[#allocation6 + $0x2b8] sm:$0xff]
    %v170 = vld [vmem:[#allocation6 + $0x2c0] sm:$0xff]
    %v171 = vld [vmem:[#allocation6 + $0x2c8] sm:$0xff]
    %v172 = vld [vmem:[#allocation6 + $0x2d0] sm:$0xff]
    %v173 = vld [vmem:[#allocation6 + $0x2d8] sm:$0xff]
    %v174 = vld [vmem:[#allocation6 + $0x2e0] sm:$0xff]
    %v175 = vld [vmem:[#allocation6 + $0x2e8] sm:$0xff]
    %v176 = vld [vmem:[#allocation6 + $0x2f0] sm:$0xff]
    %v177 = vld [vmem:[#allocation6 + $0x2f8] sm:$0xff]
    %v178 = vld [vmem:[#allocation6 + $0x300] sm:$0xff]
    %v179 = vld [vmem:[#allocation6 + $0x308] sm:$0xff]
    %v180 = vld [vmem:[#allocation6 + $0x310] sm:$0xff]
    %v181 = vld [vmem:[#allocation6 + $0x318] sm:$0xff]
    %v182 = vld [vmem:[#allocation6 + $0x320] sm:$0xff]
    %v183 = vld [vmem:[#allocation6 + $0x328] sm:$0xff]
    %v184 = vld [vmem:[#allocation6 + $0x330] sm:$0xff]
    %v185 = vld [vmem:[#allocation6 + $0x338] sm:$0xff]
    %v186 = vld [vmem:[#allocation6 + $0x340] sm:$0xff]
    %v187 = vld [vmem:[#allocation6 + $0x348] sm:$0xff]
    %v188 = vld [vmem:[#allocation6 + $0x350] sm:$0xff]
    %v189 = vld [vmem:[#allocation6 + $0x358] sm:$0xff]
    %v190 = vld [vmem:[#allocation6 + $0x360] sm:$0xff]
    %v191 = vld [vmem:[#allocation6 + $0x368] sm:$0xff]
    %v192 = vld [vmem:[#allocation6 + $0x370] sm:$0xff]
    %v193 = vld [vmem:[#allocation6 + $0x378] sm:$0xff]
    %v194 = vld [vmem:[#allocation6 + $0x380] sm:$0xff]
    %v195 = vld [vmem:[#allocation6 + $0x388] sm:$0xff]
    %v196 = vld [vmem:[#allocation6 + $0x390] sm:$0xff]
    %v197 = vld [vmem:[#allocation6 + $0x398] sm:$0xff]
    %v198 = vld [vmem:[#allocation6 + $0x3a0] sm:$0xff]
    %v199 = vld [vmem:[#allocation6 + $0x3a8] sm:$0xff]
    %v200 = vld [vmem:[#allocation6 + $0x3b0] sm:$0xff]
    %v201 = vld [vmem:[#allocation6 + $0x3b8] sm:$0xff]
    %v202 = vld [vmem:[#allocation6 + $0x3c0] sm:$0xff]
    %v203 = vld [vmem:[#allocation6 + $0x3c8] sm:$0xff]
    %v204 = vld [vmem:[#allocation6 + $0x3d0] sm:$0xff]
    %v205 = vld [vmem:[#allocation6 + $0x3d8] sm:$0xff]
    %v206 = vld [vmem:[#allocation6 + $0x3e0] sm:$0xff]
    %v207 = vld [vmem:[#allocation6 + $0x3e8] sm:$0xff]
    %v208 = vld [vmem:[#allocation6 + $0x3f0] sm:$0xff]
    %v209 = vld [vmem:[#allocation6 + $0x3f8] sm:$0xff]
    %v210 = vld [vmem:[#allocation6 + $0x400] sm:$0xff]
    %v211 = vld [vmem:[#allocation6 + $0x408] sm:$0xff]
    %v212 = vld [vmem:[#allocation6 + $0x410] sm:$0xff]
    %v213 = vld [vmem:[#allocation6 + $0x418] sm:$0xff]
    %v214 = vld [vmem:[#allocation6 + $0x420] sm:$0xff]
    %v215 = vld [vmem:[#allocation6 + $0x428] sm:$0xff]
    %v216 = vld [vmem:[#allocation6 + $0x430] sm:$0xff]
    %v217 = vld [vmem:[#allocation6 + $0x438] sm:$0xff]
    %v218 = vld [vmem:[#allocation6 + $0x440] sm:$0xff]
    %v219 = vld [vmem:[#allocation6 + $0x448] sm:$0xff]
    %v220 = vld [vmem:[#allocation6 + $0x450] sm:$0xff]
    %v221 = vld [vmem:[#allocation6 + $0x458] sm:$0xff]
    %v222 = vld [vmem:[#allocation6 + $0x460] sm:$0xff]
    %v223 = vld [vmem:[#allocation6 + $0x468] sm:$0xff]
    %v224 = vld [vmem:[#allocation6 + $0x470] sm:$0xff]
    %v225 = vld [vmem:[#allocation6 + $0x478] sm:$0xff]
    %v226 = vld [vmem:[#allocation6 + $0x480] sm:$0xff]
    %v227 = vld [vmem:[#allocation6 + $0x488] sm:$0xff]
    %v228 = vld [vmem:[#allocation6 + $0x490] sm:$0xff]
    %v229 = vld [vmem:[#allocation6 + $0x498] sm:$0xff]
    %v230 = vld [vmem:[#allocation6 + $0x4a0] sm:$0xff]
    %v231 = vld [vmem:[#allocation6 + $0x4a8] sm:$0xff]
    %v232 = vld [vmem:[#allocation6 + $0x4b0] sm:$0xff]
    %v233 = vld [vmem:[#allocation6 + $0x4b8] sm:$0xff]
    %v234 = vld [vmem:[#allocation6 + $0x4c0] sm:$0xff]
    %v235 = vld [vmem:[#allocation6 + $0x4c8] sm:$0xff]
    %v236 = vld [vmem:[#allocation6 + $0x4d0] sm:$0xff]
    %v237 = vld [vmem:[#allocation6 + $0x4d8] sm:$0xff]
    %v238 = vld [vmem:[#allocation6 + $0x4e0] sm:$0xff]
    %v239 = vld [vmem:[#allocation6 + $0x4e8] sm:$0xff]
    %v240 = vld [vmem:[#allocation6 + $0x4f0] sm:$0xff]
    %v241 = vld [vmem:[#allocation6 + $0x4f8] sm:$0xff]
    %v242 = vld [vmem:[#allocation6 + $0x500] sm:$0xff]
    %v243 = vld [vmem:[#allocation6 + $0x508] sm:$0xff]
    %v244 = vld [vmem:[#allocation6 + $0x510] sm:$0xff]
    %v245 = vld [vmem:[#allocation6 + $0x518] sm:$0xff]
    %v246 = vld [vmem:[#allocation6 + $0x520] sm:$0xff]
    %v247 = vld [vmem:[#allocation6 + $0x528] sm:$0xff]
    %v248 = vld [vmem:[#allocation6 + $0x530] sm:$0xff]
    %v249 = vld [vmem:[#allocation6 + $0x538] sm:$0xff]
    %v250 = vld [vmem:[#allocation6 + $0x540] sm:$0xff]
    %v251 = vld [vmem:[#allocation6 + $0x548] sm:$0xff]
    %v252 = vld [vmem:[#allocation6 + $0x550] sm:$0xff]
    %v253 = vld [vmem:[#allocation6 + $0x558] sm:$0xff]
    %v254 = vld [vmem:[#allocation6 + $0x560] sm:$0xff]
    %v255 = vld [vmem:[#allocation6 + $0x568] sm:$0xff]
    %v256 = vld [vmem:[#allocation6 + $0x570] sm:$0xff]
    %v257 = vld [vmem:[#allocation6 + $0x578] sm:$0xff]
    %v258 = vld [vmem:[#allocation6 + $0x580] sm:$0xff]
    %v259 = vld [vmem:[#allocation6 + $0x588] sm:$0xff]
    %v260 = vld [vmem:[#allocation6 + $0x590] sm:$0xff]
    %v261 = vld [vmem:[#allocation6 + $0x598] sm:$0xff]
    %v262 = vld [vmem:[#allocation6 + $0x5a0] sm:$0xff]
    %v263 = vld [vmem:[#allocation6 + $0x5a8] sm:$0xff]
    %v264 = vld [vmem:[#allocation6 + $0x5b0] sm:$0xff]
    %v265 = vld [vmem:[#allocation6 + $0x5b8] sm:$0xff]
    %v266 = vld [vmem:[#allocation6 + $0x5c0] sm:$0xff]
    %v267 = vld [vmem:[#allocation6 + $0x5c8] sm:$0xff]
    %v268 = vld [vmem:[#allocation6 + $0x5d0] sm:$0xff]
    %v269 = vld [vmem:[#allocation6 + $0x5d8] sm:$0xff]
    %v270 = vld [vmem:[#allocation6 + $0x5e0] sm:$0xff]
    %v271 = vld [vmem:[#allocation6 + $0x5e8] sm:$0xff]
    %v272 = vld [vmem:[#allocation6 + $0x5f0] sm:$0xff]
    %v273 = vld [vmem:[#allocation6 + $0x5f8] sm:$0xff]
    %v274 = vld [vmem:[#allocation6 + $0x600] sm:$0xff]
    %v275 = vld [vmem:[#allocation6 + $0x608] sm:$0xff]
    %v276 = vld [vmem:[#allocation6 + $0x610] sm:$0xff]
    %v277 = vld [vmem:[#allocation6 + $0x618] sm:$0xff]
    %v278 = vld [vmem:[#allocation6 + $0x620] sm:$0xff]
    %v279 = vld [vmem:[#allocation6 + $0x628] sm:$0xff]
    %v280 = vld [vmem:[#allocation6 + $0x630] sm:$0xff]
    %v281 = vld [vmem:[#allocation6 + $0x638] sm:$0xff]
    %v282 = vld [vmem:[#allocation6 + $0x640] sm:$0xff]
    %v283 = vld [vmem:[#allocation6 + $0x648] sm:$0xff]
    %v284 = vld [vmem:[#allocation6 + $0x650] sm:$0xff]
    %v285 = vld [vmem:[#allocation6 + $0x658] sm:$0xff]
    %v286 = vld [vmem:[#allocation6 + $0x660] sm:$0xff]
    %v287 = vld [vmem:[#allocation6 + $0x668] sm:$0xff]
    %v288 = vld [vmem:[#allocation6 + $0x670] sm:$0xff]
    %v289 = vld [vmem:[#allocation6 + $0x678] sm:$0xff]
    %v290 = vld [vmem:[#allocation6 + $0x680] sm:$0xff]
    %v291 = vld [vmem:[#allocation6 + $0x688] sm:$0xff]
    %v292 = vld [vmem:[#allocation6 + $0x690] sm:$0xff]
    %v293 = vld [vmem:[#allocation6 + $0x698] sm:$0xff]
    %v294 = vld [vmem:[#allocation6 + $0x6a0] sm:$0xff]
    %v295 = vld [vmem:[#allocation6 + $0x6a8] sm:$0xff]
    %v296 = vld [vmem:[#allocation6 + $0x6b0] sm:$0xff]
    %v297 = vld [vmem:[#allocation6 + $0x6b8] sm:$0xff]
    %v298 = vld [vmem:[#allocation6 + $0x6c0] sm:$0xff]
    %v299 = vld [vmem:[#allocation6 + $0x6c8] sm:$0xff]
    %v300 = vld [vmem:[#allocation6 + $0x6d0] sm:$0xff]
    %v301 = vld [vmem:[#allocation6 + $0x6d8] sm:$0xff]
    %v302 = vld [vmem:[#allocation6 + $0x6e0] sm:$0xff]
    %v303 = vld [vmem:[#allocation6 + $0x6e8] sm:$0xff]
    %v304 = vld [vmem:[#allocation6 + $0x6f0] sm:$0xff]
    %v305 = vld [vmem:[#allocation6 + $0x6f8] sm:$0xff]
    %v306 = vld [vmem:[#allocation6 + $0x700] sm:$0xff]
    %v307 = vld [vmem:[#allocation6 + $0x708] sm:$0xff]
    %v308 = vld [vmem:[#allocation6 + $0x710] sm:$0xff]
    %v309 = vld [vmem:[#allocation6 + $0x718] sm:$0xff]
    %v310 = vld [vmem:[#allocation6 + $0x720] sm:$0xff]
    %v311 = vld [vmem:[#allocation6 + $0x728] sm:$0xff]
    %v312 = vld [vmem:[#allocation6 + $0x730] sm:$0xff]
    %v313 = vld [vmem:[#allocation6 + $0x738] sm:$0xff]
    %v314 = vld [vmem:[#allocation6 + $0x740] sm:$0xff]
    %v315 = vld [vmem:[#allocation6 + $0x748] sm:$0xff]
    %v316 = vld [vmem:[#allocation6 + $0x750] sm:$0xff]
    %v317 = vld [vmem:[#allocation6 + $0x758] sm:$0xff]
    %v318 = vld [vmem:[#allocation6 + $0x760] sm:$0xff]
    %v319 = vld [vmem:[#allocation6 + $0x768] sm:$0xff]
    %v320 = vld [vmem:[#allocation6 + $0x770] sm:$0xff]
    %v321 = vld [vmem:[#allocation6 + $0x778] sm:$0xff]
    %v322 = vld [vmem:[#allocation6 + $0x780] sm:$0xff]
    %v323 = vld [vmem:[#allocation6 + $0x788] sm:$0xff]
    %v324 = vld [vmem:[#allocation6 + $0x790] sm:$0xff]
    %v325 = vld [vmem:[#allocation6 + $0x798] sm:$0xff]
    %v326 = vld [vmem:[#allocation6 + $0x7a0] sm:$0xff]
    %v327 = vld [vmem:[#allocation6 + $0x7a8] sm:$0xff]
    %v328 = vld [vmem:[#allocation6 + $0x7b0] sm:$0xff]
    %v329 = vld [vmem:[#allocation6 + $0x7b8] sm:$0xff]
    %v330 = vld [vmem:[#allocation6 + $0x7c0] sm:$0xff]
    %v331 = vld [vmem:[#allocation6 + $0x7c8] sm:$0xff]
    %v332 = vld [vmem:[#allocation6 + $0x7d0] sm:$0xff]
    %v333 = vld [vmem:[#allocation6 + $0x7d8] sm:$0xff]
    %v334 = vld [vmem:[#allocation6 + $0x7e0] sm:$0xff]
    %v335 = vld [vmem:[#allocation6 + $0x7e8] sm:$0xff]
    %v336 = vld [vmem:[#allocation6 + $0x7f0] sm:$0xff]
    %v337 = vld [vmem:[#allocation6 + $0x7f8] sm:$0xff]
    %v338 = vld [vmem:[#allocation6 + $0x800] sm:$0xff]
    %v339 = vld [vmem:[#allocation6 + $0x808] sm:$0xff]
    %v340 = vld [vmem:[#allocation6 + $0x810] sm:$0xff]
    %v341 = vld [vmem:[#allocation6 + $0x818] sm:$0xff]
    %v342 = vld [vmem:[#allocation6 + $0x820] sm:$0xff]
    %v343 = vld [vmem:[#allocation6 + $0x828] sm:$0xff]
    %v344 = vld [vmem:[#allocation6 + $0x830] sm:$0xff]
    %v345 = vld [vmem:[#allocation6 + $0x838] sm:$0xff]
    %v346 = vld [vmem:[#allocation6 + $0x840] sm:$0xff]
    %v347 = vld [vmem:[#allocation6 + $0x848] sm:$0xff]
    %v348 = vld [vmem:[#allocation6 + $0x850] sm:$0xff]
    %v349 = vld [vmem:[#allocation6 + $0x858] sm:$0xff]
    %v350 = vld [vmem:[#allocation6 + $0x860] sm:$0xff]
    %v351 = vld [vmem:[#allocation6 + $0x868] sm:$0xff]
    %v352 = vld [vmem:[#allocation6 + $0x870] sm:$0xff]
    %v353 = vld [vmem:[#allocation6 + $0x878] sm:$0xff]
    %v354 = vld [vmem:[#allocation6 + $0x880] sm:$0xff]
    %v355 = vld [vmem:[#allocation6 + $0x888] sm:$0xff]
    %v356 = vld [vmem:[#allocation6 + $0x890] sm:$0xff]
    %v357 = vld [vmem:[#allocation6 + $0x898] sm:$0xff]
    %v358 = vld [vmem:[#allocation6 + $0x8a0] sm:$0xff]
    %v359 = vld [vmem:[#allocation6 + $0x8a8] sm:$0xff]
    %v360 = vld [vmem:[#allocation6 + $0x8b0] sm:$0xff]
    %v361 = vld [vmem:[#allocation6 + $0x8b8] sm:$0xff]
    %v362 = vld [vmem:[#allocation6 + $0x8c0] sm:$0xff]
    %v363 = vld [vmem:[#allocation6 + $0x8c8] sm:$0xff]
    %v364 = vld [vmem:[#allocation6 + $0x8d0] sm:$0xff]
    %v365 = vld [vmem:[#allocation6 + $0x8d8] sm:$0xff]
    %v366 = vld [vmem:[#allocation6 + $0x8e0] sm:$0xff]
    %v367 = vld [vmem:[#allocation6 + $0x8e8] sm:$0xff]
    %v368 = vld [vmem:[#allocation6 + $0x8f0] sm:$0xff]
    %v369 = vld [vmem:[#allocation6 + $0x8f8] sm:$0xff]
    %v370 = vld [vmem:[%s2] sm:$0xff]
    %v371 = vld [vmem:[%s2 + $0x8] sm:$0xf]
    %v374 = vlaneseq
    %v375 = vshrl.u32 %v374, 7
    %v376 = vsub.s32 0, %v375
    %v377 = vrot.slane %v370, %v376
    %v378 = vlaneseq
    %v379 = vshrl.u32 %v378, 7
    %v380 = vsub.s32 1, %v379
    %v381 = vrot.slane %v370, %v380
    %v382 = vlaneseq
    %v383 = vshrl.u32 %v382, 7
    %v384 = vsub.s32 2, %v383
    %v385 = vrot.slane %v370, %v384
    %v386 = vlaneseq
    %v387 = vshrl.u32 %v386, 7
    %v388 = vsub.s32 3, %v387
    %v389 = vrot.slane %v370, %v388
    %v390 = vlaneseq
    %v391 = vshrl.u32 %v390, 7
    %v392 = vsub.s32 4, %v391
    %v393 = vrot.slane %v370, %v392
    %v394 = vlaneseq
    %v395 = vshrl.u32 %v394, 7
    %v396 = vsub.s32 5, %v395
    %v397 = vrot.slane %v370, %v396
    %v398 = vlaneseq
    %v399 = vshrl.u32 %v398, 7
    %v400 = vsub.s32 6, %v399
    %v401 = vrot.slane %v370, %v400
    %v402 = vlaneseq
    %v403 = vshrl.u32 %v402, 7
    %v404 = vsub.s32 7, %v403
    %v405 = vrot.slane %v370, %v404
    %v406 = vlaneseq
    %v407 = vshrl.u32 %v406, 7
    %v408 = vsub.s32 0, %v407
    %v409 = vrot.slane %v371, %v408
    %v410 = vlaneseq
    %v411 = vshrl.u32 %v410, 7
    %v412 = vsub.s32 1, %v411
    %v413 = vrot.slane %v371, %v412
    %v414 = vlaneseq
    %v415 = vshrl.u32 %v414, 7
    %v416 = vsub.s32 2, %v415
    %v417 = vrot.slane %v371, %v416
    %v418 = vlaneseq
    %v419 = vshrl.u32 %v418, 7
    %v420 = vsub.s32 3, %v419
    %v421 = vrot.slane %v371, %v420
    %v722 = vunpack.c.l.b16 %v82
    %v723 = vunpack.c.h.b16 %v82
    %v724 = vunpack.c.l.b16 %v83
    %v725 = vunpack.c.h.b16 %v83
    %v726 = vunpack.c.l.b16 %v84
    %v727 = vunpack.c.h.b16 %v84
    %v728 = vunpack.c.l.b16 %v85
    %v729 = vunpack.c.h.b16 %v85
    %v730 = vunpack.c.l.b16 %v86
    %v731 = vunpack.c.h.b16 %v86
    %v732 = vunpack.c.l.b16 %v87
    %v733 = vunpack.c.h.b16 %v87
    %v734 = vunpack.c.l.b16 %v88
    %v735 = vunpack.c.h.b16 %v88
    %v736 = vunpack.c.l.b16 %v89
    %v737 = vunpack.c.h.b16 %v89
    %v738 = vunpack.c.l.b16 %v90
    %v739 = vunpack.c.h.b16 %v90
    %v740 = vunpack.c.l.b16 %v91
    %v741 = vunpack.c.h.b16 %v91
    %v742 = vunpack.c.l.b16 %v92
    %v743 = vunpack.c.h.b16 %v92
    %v744 = vunpack.c.l.b16 %v93
    %v745 = vunpack.c.h.b16 %v93
    %v746 = vunpack.c.l.b16 %v94
    %v747 = vunpack.c.h.b16 %v94
    %v748 = vunpack.c.l.b16 %v95
    %v749 = vunpack.c.h.b16 %v95
    %v750 = vunpack.c.l.b16 %v96
    %v751 = vunpack.c.h.b16 %v96
    %v752 = vunpack.c.l.b16 %v97
    %v753 = vunpack.c.h.b16 %v97
    %v754 = vunpack.c.l.b16 %v98
    %v755 = vunpack.c.h.b16 %v98
    %v756 = vunpack.c.l.b16 %v99
    %v757 = vunpack.c.h.b16 %v99
    %v758 = vunpack.c.l.b16 %v100
    %v759 = vunpack.c.h.b16 %v100
    %v760 = vunpack.c.l.b16 %v101
    %v761 = vunpack.c.h.b16 %v101
    %v762 = vunpack.c.l.b16 %v102
    %v763 = vunpack.c.h.b16 %v102
    %v764 = vunpack.c.l.b16 %v103
    %v765 = vunpack.c.h.b16 %v103
    %v766 = vunpack.c.l.b16 %v104
    %v767 = vunpack.c.h.b16 %v104
    %v768 = vunpack.c.l.b16 %v105
    %v769 = vunpack.c.h.b16 %v105
    %v770 = vunpack.c.l.b16 %v106
    %v771 = vunpack.c.h.b16 %v106
    %v772 = vunpack.c.l.b16 %v107
    %v773 = vunpack.c.h.b16 %v107
    %v774 = vunpack.c.l.b16 %v108
    %v775 = vunpack.c.h.b16 %v108
    %v776 = vunpack.c.l.b16 %v109
    %v777 = vunpack.c.h.b16 %v109
    %v778 = vunpack.c.l.b16 %v110
    %v779 = vunpack.c.h.b16 %v110
    %v780 = vunpack.c.l.b16 %v111
    %v781 = vunpack.c.h.b16 %v111
    %v782 = vunpack.c.l.b16 %v112
    %v783 = vunpack.c.h.b16 %v112
    %v784 = vunpack.c.l.b16 %v113
    %v785 = vunpack.c.h.b16 %v113
    %v786 = vunpack.c.l.b16 %v114
    %v787 = vunpack.c.h.b16 %v114
    %v788 = vunpack.c.l.b16 %v115
    %v789 = vunpack.c.h.b16 %v115
    %v790 = vunpack.c.l.b16 %v116
    %v791 = vunpack.c.h.b16 %v116
    %v792 = vunpack.c.l.b16 %v117
    %v793 = vunpack.c.h.b16 %v117
    %v794 = vunpack.c.l.b16 %v118
    %v795 = vunpack.c.h.b16 %v118
    %v796 = vunpack.c.l.b16 %v119
    %v797 = vunpack.c.h.b16 %v119
    %v798 = vunpack.c.l.b16 %v120
    %v799 = vunpack.c.h.b16 %v120
    %v800 = vunpack.c.l.b16 %v121
    %v801 = vunpack.c.h.b16 %v121
    %v802 = vunpack.c.l.b16 %v122
    %v803 = vunpack.c.h.b16 %v122
    %v804 = vunpack.c.l.b16 %v123
    %v805 = vunpack.c.h.b16 %v123
    %v806 = vunpack.c.l.b16 %v124
    %v807 = vunpack.c.h.b16 %v124
    %v808 = vunpack.c.l.b16 %v125
    %v809 = vunpack.c.h.b16 %v125
    %v810 = vunpack.c.l.b16 %v126
    %v811 = vunpack.c.h.b16 %v126
    %v812 = vunpack.c.l.b16 %v127
    %v813 = vunpack.c.h.b16 %v127
    %v814 = vunpack.c.l.b16 %v128
    %v815 = vunpack.c.h.b16 %v128
    %v816 = vunpack.c.l.b16 %v129
    %v817 = vunpack.c.h.b16 %v129
    %v818 = vunpack.c.l.b16 %v130
    %v819 = vunpack.c.h.b16 %v130
    %v820 = vunpack.c.l.b16 %v131
    %v821 = vunpack.c.h.b16 %v131
    %v822 = vunpack.c.l.b16 %v132
    %v823 = vunpack.c.h.b16 %v132
    %v824 = vunpack.c.l.b16 %v133
    %v825 = vunpack.c.h.b16 %v133
    %v826 = vunpack.c.l.b16 %v134
    %v827 = vunpack.c.h.b16 %v134
    %v828 = vunpack.c.l.b16 %v135
    %v829 = vunpack.c.h.b16 %v135
    %v830 = vunpack.c.l.b16 %v136
    %v831 = vunpack.c.h.b16 %v136
    %v832 = vunpack.c.l.b16 %v137
    %v833 = vunpack.c.h.b16 %v137
    %v834 = vunpack.c.l.b16 %v138
    %v835 = vunpack.c.h.b16 %v138
    %v836 = vunpack.c.l.b16 %v139
    %v837 = vunpack.c.h.b16 %v139
    %v838 = vunpack.c.l.b16 %v140
    %v839 = vunpack.c.h.b16 %v140
    %v840 = vunpack.c.l.b16 %v141
    %v841 = vunpack.c.h.b16 %v141
    %v842 = vunpack.c.l.b16 %v142
    %v843 = vunpack.c.h.b16 %v142
    %v844 = vunpack.c.l.b16 %v143
    %v845 = vunpack.c.h.b16 %v143
    %v846 = vunpack.c.l.b16 %v144
    %v847 = vunpack.c.h.b16 %v144
    %v848 = vunpack.c.l.b16 %v145
    %v849 = vunpack.c.h.b16 %v145
    %v850 = vunpack.c.l.b16 %v146
    %v851 = vunpack.c.h.b16 %v146
    %v852 = vunpack.c.l.b16 %v147
    %v853 = vunpack.c.h.b16 %v147
    %v854 = vunpack.c.l.b16 %v148
    %v855 = vunpack.c.h.b16 %v148
    %v856 = vunpack.c.l.b16 %v149
    %v857 = vunpack.c.h.b16 %v149
    %v858 = vunpack.c.l.b16 %v150
    %v859 = vunpack.c.h.b16 %v150
    %v860 = vunpack.c.l.b16 %v151
    %v861 = vunpack.c.h.b16 %v151
    %v862 = vunpack.c.l.b16 %v152
    %v863 = vunpack.c.h.b16 %v152
    %v864 = vunpack.c.l.b16 %v153
    %v865 = vunpack.c.h.b16 %v153
    %v866 = vunpack.c.l.b16 %v154
    %v867 = vunpack.c.h.b16 %v154
    %v868 = vunpack.c.l.b16 %v155
    %v869 = vunpack.c.h.b16 %v155
    %v870 = vunpack.c.l.b16 %v156
    %v871 = vunpack.c.h.b16 %v156
    %v872 = vunpack.c.l.b16 %v157
    %v873 = vunpack.c.h.b16 %v157
    %v874 = vunpack.c.l.b16 %v158
    %v875 = vunpack.c.h.b16 %v158
    %v876 = vunpack.c.l.b16 %v159
    %v877 = vunpack.c.h.b16 %v159
    %v878 = vunpack.c.l.b16 %v160
    %v879 = vunpack.c.h.b16 %v160
    %v880 = vunpack.c.l.b16 %v161
    %v881 = vunpack.c.h.b16 %v161
    %v882 = vunpack.c.l.b16 %v162
    %v883 = vunpack.c.h.b16 %v162
    %v884 = vunpack.c.l.b16 %v163
    %v885 = vunpack.c.h.b16 %v163
    %v886 = vunpack.c.l.b16 %v164
    %v887 = vunpack.c.h.b16 %v164
    %v888 = vunpack.c.l.b16 %v165
    %v889 = vunpack.c.h.b16 %v165
    %v890 = vunpack.c.l.b16 %v166
    %v891 = vunpack.c.h.b16 %v166
    %v892 = vunpack.c.l.b16 %v167
    %v893 = vunpack.c.h.b16 %v167
    %v894 = vunpack.c.l.b16 %v168
    %v895 = vunpack.c.h.b16 %v168
    %v896 = vunpack.c.l.b16 %v169
    %v897 = vunpack.c.h.b16 %v169
    %v898 = vunpack.c.l.b16 %v170
    %v899 = vunpack.c.h.b16 %v170
    %v900 = vunpack.c.l.b16 %v171
    %v901 = vunpack.c.h.b16 %v171
    %v902 = vunpack.c.l.b16 %v172
    %v903 = vunpack.c.h.b16 %v172
    %v904 = vunpack.c.l.b16 %v173
    %v905 = vunpack.c.h.b16 %v173
    %v906 = vunpack.c.l.b16 %v174
    %v907 = vunpack.c.h.b16 %v174
    %v908 = vunpack.c.l.b16 %v175
    %v909 = vunpack.c.h.b16 %v175
    %v910 = vunpack.c.l.b16 %v176
    %v911 = vunpack.c.h.b16 %v176
    %v912 = vunpack.c.l.b16 %v177
    %v913 = vunpack.c.h.b16 %v177
    %v914 = vunpack.c.l.b16 %v178
    %v915 = vunpack.c.h.b16 %v178
    %v916 = vunpack.c.l.b16 %v179
    %v917 = vunpack.c.h.b16 %v179
    %v918 = vunpack.c.l.b16 %v180
    %v919 = vunpack.c.h.b16 %v180
    %v920 = vunpack.c.l.b16 %v181
    %v921 = vunpack.c.h.b16 %v181
    %v922 = vunpack.c.l.b16 %v182
    %v923 = vunpack.c.h.b16 %v182
    %v924 = vunpack.c.l.b16 %v183
    %v925 = vunpack.c.h.b16 %v183
    %v926 = vunpack.c.l.b16 %v184
    %v927 = vunpack.c.h.b16 %v184
    %v928 = vunpack.c.l.b16 %v185
    %v929 = vunpack.c.h.b16 %v185
    %v930 = vunpack.c.l.b16 %v186
    %v931 = vunpack.c.h.b16 %v186
    %v932 = vunpack.c.l.b16 %v187
    %v933 = vunpack.c.h.b16 %v187
    %v934 = vunpack.c.l.b16 %v188
    %v935 = vunpack.c.h.b16 %v188
    %v936 = vunpack.c.l.b16 %v189
    %v937 = vunpack.c.h.b16 %v189
    %v938 = vunpack.c.l.b16 %v190
    %v939 = vunpack.c.h.b16 %v190
    %v940 = vunpack.c.l.b16 %v191
    %v941 = vunpack.c.h.b16 %v191
    %v942 = vunpack.c.l.b16 %v192
    %v943 = vunpack.c.h.b16 %v192
    %v944 = vunpack.c.l.b16 %v193
    %v945 = vunpack.c.h.b16 %v193
    %v946 = vunpack.c.l.b16 %v194
    %v947 = vunpack.c.h.b16 %v194
    %v948 = vunpack.c.l.b16 %v195
    %v949 = vunpack.c.h.b16 %v195
    %v950 = vunpack.c.l.b16 %v196
    %v951 = vunpack.c.h.b16 %v196
    %v952 = vunpack.c.l.b16 %v197
    %v953 = vunpack.c.h.b16 %v197
    %v954 = vunpack.c.l.b16 %v198
    %v955 = vunpack.c.h.b16 %v198
    %v956 = vunpack.c.l.b16 %v199
    %v957 = vunpack.c.h.b16 %v199
    %v958 = vunpack.c.l.b16 %v200
    %v959 = vunpack.c.h.b16 %v200
    %v960 = vunpack.c.l.b16 %v201
    %v961 = vunpack.c.h.b16 %v201
    %v962 = vunpack.c.l.b16 %v202
    %v963 = vunpack.c.h.b16 %v202
    %v964 = vunpack.c.l.b16 %v203
    %v965 = vunpack.c.h.b16 %v203
    %v966 = vunpack.c.l.b16 %v204
    %v967 = vunpack.c.h.b16 %v204
    %v968 = vunpack.c.l.b16 %v205
    %v969 = vunpack.c.h.b16 %v205
    %v970 = vunpack.c.l.b16 %v206
    %v971 = vunpack.c.h.b16 %v206
    %v972 = vunpack.c.l.b16 %v207
    %v973 = vunpack.c.h.b16 %v207
    %v974 = vunpack.c.l.b16 %v208
    %v975 = vunpack.c.h.b16 %v208
    %v976 = vunpack.c.l.b16 %v209
    %v977 = vunpack.c.h.b16 %v209
    %v978 = vunpack.c.l.b16 %v210
    %v979 = vunpack.c.h.b16 %v210
    %v980 = vunpack.c.l.b16 %v211
    %v981 = vunpack.c.h.b16 %v211
    %v982 = vunpack.c.l.b16 %v212
    %v983 = vunpack.c.h.b16 %v212
    %v984 = vunpack.c.l.b16 %v213
    %v985 = vunpack.c.h.b16 %v213
    %v986 = vunpack.c.l.b16 %v214
    %v987 = vunpack.c.h.b16 %v214
    %v988 = vunpack.c.l.b16 %v215
    %v989 = vunpack.c.h.b16 %v215
    %v990 = vunpack.c.l.b16 %v216
    %v991 = vunpack.c.h.b16 %v216
    %v992 = vunpack.c.l.b16 %v217
    %v993 = vunpack.c.h.b16 %v217
    %v994 = vunpack.c.l.b16 %v218
    %v995 = vunpack.c.h.b16 %v218
    %v996 = vunpack.c.l.b16 %v219
    %v997 = vunpack.c.h.b16 %v219
    %v998 = vunpack.c.l.b16 %v220
    %v999 = vunpack.c.h.b16 %v220
    %v1000 = vunpack.c.l.b16 %v221
    %v1001 = vunpack.c.h.b16 %v221
    %v1002 = vunpack.c.l.b16 %v222
    %v1003 = vunpack.c.h.b16 %v222
    %v1004 = vunpack.c.l.b16 %v223
    %v1005 = vunpack.c.h.b16 %v223
    %v1006 = vunpack.c.l.b16 %v224
    %v1007 = vunpack.c.h.b16 %v224
    %v1008 = vunpack.c.l.b16 %v225
    %v1009 = vunpack.c.h.b16 %v225
    %v1010 = vunpack.c.l.b16 %v226
    %v1011 = vunpack.c.h.b16 %v226
    %v1012 = vunpack.c.l.b16 %v227
    %v1013 = vunpack.c.h.b16 %v227
    %v1014 = vunpack.c.l.b16 %v228
    %v1015 = vunpack.c.h.b16 %v228
    %v1016 = vunpack.c.l.b16 %v229
    %v1017 = vunpack.c.h.b16 %v229
    %v1018 = vunpack.c.l.b16 %v230
    %v1019 = vunpack.c.h.b16 %v230
    %v1020 = vunpack.c.l.b16 %v231
    %v1021 = vunpack.c.h.b16 %v231
    %v1022 = vunpack.c.l.b16 %v232
    %v1023 = vunpack.c.h.b16 %v232
    %v1024 = vunpack.c.l.b16 %v233
    %v1025 = vunpack.c.h.b16 %v233
    %v1026 = vunpack.c.l.b16 %v234
    %v1027 = vunpack.c.h.b16 %v234
    %v1028 = vunpack.c.l.b16 %v235
    %v1029 = vunpack.c.h.b16 %v235
    %v1030 = vunpack.c.l.b16 %v236
    %v1031 = vunpack.c.h.b16 %v236
    %v1032 = vunpack.c.l.b16 %v237
    %v1033 = vunpack.c.h.b16 %v237
    %v1034 = vunpack.c.l.b16 %v238
    %v1035 = vunpack.c.h.b16 %v238
    %v1036 = vunpack.c.l.b16 %v239
    %v1037 = vunpack.c.h.b16 %v239
    %v1038 = vunpack.c.l.b16 %v240
    %v1039 = vunpack.c.h.b16 %v240
    %v1040 = vunpack.c.l.b16 %v241
    %v1041 = vunpack.c.h.b16 %v241
    %v1042 = vunpack.c.l.b16 %v242
    %v1043 = vunpack.c.h.b16 %v242
    %v1044 = vunpack.c.l.b16 %v243
    %v1045 = vunpack.c.h.b16 %v243
    %v1046 = vunpack.c.l.b16 %v244
    %v1047 = vunpack.c.h.b16 %v244
    %v1048 = vunpack.c.l.b16 %v245
    %v1049 = vunpack.c.h.b16 %v245
    %v1050 = vunpack.c.l.b16 %v246
    %v1051 = vunpack.c.h.b16 %v246
    %v1052 = vunpack.c.l.b16 %v247
    %v1053 = vunpack.c.h.b16 %v247
    %v1054 = vunpack.c.l.b16 %v248
    %v1055 = vunpack.c.h.b16 %v248
    %v1056 = vunpack.c.l.b16 %v249
    %v1057 = vunpack.c.h.b16 %v249
    %v1058 = vunpack.c.l.b16 %v250
    %v1059 = vunpack.c.h.b16 %v250
    %v1060 = vunpack.c.l.b16 %v251
    %v1061 = vunpack.c.h.b16 %v251
    %v1062 = vunpack.c.l.b16 %v252
    %v1063 = vunpack.c.h.b16 %v252
    %v1064 = vunpack.c.l.b16 %v253
    %v1065 = vunpack.c.h.b16 %v253
    %v1066 = vunpack.c.l.b16 %v254
    %v1067 = vunpack.c.h.b16 %v254
    %v1068 = vunpack.c.l.b16 %v255
    %v1069 = vunpack.c.h.b16 %v255
    %v1070 = vunpack.c.l.b16 %v256
    %v1071 = vunpack.c.h.b16 %v256
    %v1072 = vunpack.c.l.b16 %v257
    %v1073 = vunpack.c.h.b16 %v257
    %v1074 = vunpack.c.l.b16 %v258
    %v1075 = vunpack.c.h.b16 %v258
    %v1076 = vunpack.c.l.b16 %v259
    %v1077 = vunpack.c.h.b16 %v259
    %v1078 = vunpack.c.l.b16 %v260
    %v1079 = vunpack.c.h.b16 %v260
    %v1080 = vunpack.c.l.b16 %v261
    %v1081 = vunpack.c.h.b16 %v261
    %v1082 = vunpack.c.l.b16 %v262
    %v1083 = vunpack.c.h.b16 %v262
    %v1084 = vunpack.c.l.b16 %v263
    %v1085 = vunpack.c.h.b16 %v263
    %v1086 = vunpack.c.l.b16 %v264
    %v1087 = vunpack.c.h.b16 %v264
    %v1088 = vunpack.c.l.b16 %v265
    %v1089 = vunpack.c.h.b16 %v265
    %v1090 = vunpack.c.l.b16 %v266
    %v1091 = vunpack.c.h.b16 %v266
    %v1092 = vunpack.c.l.b16 %v267
    %v1093 = vunpack.c.h.b16 %v267
    %v1094 = vunpack.c.l.b16 %v268
    %v1095 = vunpack.c.h.b16 %v268
    %v1096 = vunpack.c.l.b16 %v269
    %v1097 = vunpack.c.h.b16 %v269
    %v1098 = vunpack.c.l.b16 %v270
    %v1099 = vunpack.c.h.b16 %v270
    %v1100 = vunpack.c.l.b16 %v271
    %v1101 = vunpack.c.h.b16 %v271
    %v1102 = vunpack.c.l.b16 %v272
    %v1103 = vunpack.c.h.b16 %v272
    %v1104 = vunpack.c.l.b16 %v273
    %v1105 = vunpack.c.h.b16 %v273
    %v1106 = vunpack.c.l.b16 %v274
    %v1107 = vunpack.c.h.b16 %v274
    %v1108 = vunpack.c.l.b16 %v275
    %v1109 = vunpack.c.h.b16 %v275
    %v1110 = vunpack.c.l.b16 %v276
    %v1111 = vunpack.c.h.b16 %v276
    %v1112 = vunpack.c.l.b16 %v277
    %v1113 = vunpack.c.h.b16 %v277
    %v1114 = vunpack.c.l.b16 %v278
    %v1115 = vunpack.c.h.b16 %v278
    %v1116 = vunpack.c.l.b16 %v279
    %v1117 = vunpack.c.h.b16 %v279
    %v1118 = vunpack.c.l.b16 %v280
    %v1119 = vunpack.c.h.b16 %v280
    %v1120 = vunpack.c.l.b16 %v281
    %v1121 = vunpack.c.h.b16 %v281
    %v1122 = vunpack.c.l.b16 %v282
    %v1123 = vunpack.c.h.b16 %v282
    %v1124 = vunpack.c.l.b16 %v283
    %v1125 = vunpack.c.h.b16 %v283
    %v1126 = vunpack.c.l.b16 %v284
    %v1127 = vunpack.c.h.b16 %v284
    %v1128 = vunpack.c.l.b16 %v285
    %v1129 = vunpack.c.h.b16 %v285
    %v1130 = vunpack.c.l.b16 %v286
    %v1131 = vunpack.c.h.b16 %v286
    %v1132 = vunpack.c.l.b16 %v287
    %v1133 = vunpack.c.h.b16 %v287
    %v1134 = vunpack.c.l.b16 %v288
    %v1135 = vunpack.c.h.b16 %v288
    %v1136 = vunpack.c.l.b16 %v289
    %v1137 = vunpack.c.h.b16 %v289
    %v1138 = vunpack.c.l.b16 %v290
    %v1139 = vunpack.c.h.b16 %v290
    %v1140 = vunpack.c.l.b16 %v291
    %v1141 = vunpack.c.h.b16 %v291
    %v1142 = vunpack.c.l.b16 %v292
    %v1143 = vunpack.c.h.b16 %v292
    %v1144 = vunpack.c.l.b16 %v293
    %v1145 = vunpack.c.h.b16 %v293
    %v1146 = vunpack.c.l.b16 %v294
    %v1147 = vunpack.c.h.b16 %v294
    %v1148 = vunpack.c.l.b16 %v295
    %v1149 = vunpack.c.h.b16 %v295
    %v1150 = vunpack.c.l.b16 %v296
    %v1151 = vunpack.c.h.b16 %v296
    %v1152 = vunpack.c.l.b16 %v297
    %v1153 = vunpack.c.h.b16 %v297
    %v1154 = vunpack.c.l.b16 %v298
    %v1155 = vunpack.c.h.b16 %v298
    %v1156 = vunpack.c.l.b16 %v299
    %v1157 = vunpack.c.h.b16 %v299
    %v1158 = vunpack.c.l.b16 %v300
    %v1159 = vunpack.c.h.b16 %v300
    %v1160 = vunpack.c.l.b16 %v301
    %v1161 = vunpack.c.h.b16 %v301
    %v1162 = vunpack.c.l.b16 %v302
    %v1163 = vunpack.c.h.b16 %v302
    %v1164 = vunpack.c.l.b16 %v303
    %v1165 = vunpack.c.h.b16 %v303
    %v1166 = vunpack.c.l.b16 %v304
    %v1167 = vunpack.c.h.b16 %v304
    %v1168 = vunpack.c.l.b16 %v305
    %v1169 = vunpack.c.h.b16 %v305
    %v1170 = vunpack.c.l.b16 %v306
    %v1171 = vunpack.c.h.b16 %v306
    %v1172 = vunpack.c.l.b16 %v307
    %v1173 = vunpack.c.h.b16 %v307
    %v1174 = vunpack.c.l.b16 %v308
    %v1175 = vunpack.c.h.b16 %v308
    %v1176 = vunpack.c.l.b16 %v309
    %v1177 = vunpack.c.h.b16 %v309
    %v1178 = vunpack.c.l.b16 %v310
    %v1179 = vunpack.c.h.b16 %v310
    %v1180 = vunpack.c.l.b16 %v311
    %v1181 = vunpack.c.h.b16 %v311
    %v1182 = vunpack.c.l.b16 %v312
    %v1183 = vunpack.c.h.b16 %v312
    %v1184 = vunpack.c.l.b16 %v313
    %v1185 = vunpack.c.h.b16 %v313
    %v1186 = vunpack.c.l.b16 %v314
    %v1187 = vunpack.c.h.b16 %v314
    %v1188 = vunpack.c.l.b16 %v315
    %v1189 = vunpack.c.h.b16 %v315
    %v1190 = vunpack.c.l.b16 %v316
    %v1191 = vunpack.c.h.b16 %v316
    %v1192 = vunpack.c.l.b16 %v317
    %v1193 = vunpack.c.h.b16 %v317
    %v1194 = vunpack.c.l.b16 %v318
    %v1195 = vunpack.c.h.b16 %v318
    %v1196 = vunpack.c.l.b16 %v319
    %v1197 = vunpack.c.h.b16 %v319
    %v1198 = vunpack.c.l.b16 %v320
    %v1199 = vunpack.c.h.b16 %v320
    %v1200 = vunpack.c.l.b16 %v321
    %v1201 = vunpack.c.h.b16 %v321
    %v1202 = vunpack.c.l.b16 %v322
    %v1203 = vunpack.c.h.b16 %v322
    %v1204 = vunpack.c.l.b16 %v323
    %v1205 = vunpack.c.h.b16 %v323
    %v1206 = vunpack.c.l.b16 %v324
    %v1207 = vunpack.c.h.b16 %v324
    %v1208 = vunpack.c.l.b16 %v325
    %v1209 = vunpack.c.h.b16 %v325
    %v1210 = vunpack.c.l.b16 %v326
    %v1211 = vunpack.c.h.b16 %v326
    %v1212 = vunpack.c.l.b16 %v327
    %v1213 = vunpack.c.h.b16 %v327
    %v1214 = vunpack.c.l.b16 %v328
    %v1215 = vunpack.c.h.b16 %v328
    %v1216 = vunpack.c.l.b16 %v329
    %v1217 = vunpack.c.h.b16 %v329
    %v1218 = vunpack.c.l.b16 %v330
    %v1219 = vunpack.c.h.b16 %v330
    %v1220 = vunpack.c.l.b16 %v331
    %v1221 = vunpack.c.h.b16 %v331
    %v1222 = vunpack.c.l.b16 %v332
    %v1223 = vunpack.c.h.b16 %v332
    %v1224 = vunpack.c.l.b16 %v333
    %v1225 = vunpack.c.h.b16 %v333
    %v1226 = vunpack.c.l.b16 %v334
    %v1227 = vunpack.c.h.b16 %v334
    %v1228 = vunpack.c.l.b16 %v335
    %v1229 = vunpack.c.h.b16 %v335
    %v1230 = vunpack.c.l.b16 %v336
    %v1231 = vunpack.c.h.b16 %v336
    %v1232 = vunpack.c.l.b16 %v337
    %v1233 = vunpack.c.h.b16 %v337
    %v1234 = vunpack.c.l.b16 %v338
    %v1235 = vunpack.c.h.b16 %v338
    %v1236 = vunpack.c.l.b16 %v339
    %v1237 = vunpack.c.h.b16 %v339
    %v1238 = vunpack.c.l.b16 %v340
    %v1239 = vunpack.c.h.b16 %v340
    %v1240 = vunpack.c.l.b16 %v341
    %v1241 = vunpack.c.h.b16 %v341
    %v1242 = vunpack.c.l.b16 %v342
    %v1243 = vunpack.c.h.b16 %v342
    %v1244 = vunpack.c.l.b16 %v343
    %v1245 = vunpack.c.h.b16 %v343
    %v1246 = vunpack.c.l.b16 %v344
    %v1247 = vunpack.c.h.b16 %v344
    %v1248 = vunpack.c.l.b16 %v345
    %v1249 = vunpack.c.h.b16 %v345
    %v1250 = vunpack.c.l.b16 %v346
    %v1251 = vunpack.c.h.b16 %v346
    %v1252 = vunpack.c.l.b16 %v347
    %v1253 = vunpack.c.h.b16 %v347
    %v1254 = vunpack.c.l.b16 %v348
    %v1255 = vunpack.c.h.b16 %v348
    %v1256 = vunpack.c.l.b16 %v349
    %v1257 = vunpack.c.h.b16 %v349
    %v1258 = vunpack.c.l.b16 %v350
    %v1259 = vunpack.c.h.b16 %v350
    %v1260 = vunpack.c.l.b16 %v351
    %v1261 = vunpack.c.h.b16 %v351
    %v1262 = vunpack.c.l.b16 %v352
    %v1263 = vunpack.c.h.b16 %v352
    %v1264 = vunpack.c.l.b16 %v353
    %v1265 = vunpack.c.h.b16 %v353
    %v1266 = vunpack.c.l.b16 %v354
    %v1267 = vunpack.c.h.b16 %v354
    %v1268 = vunpack.c.l.b16 %v355
    %v1269 = vunpack.c.h.b16 %v355
    %v1270 = vunpack.c.l.b16 %v356
    %v1271 = vunpack.c.h.b16 %v356
    %v1272 = vunpack.c.l.b16 %v357
    %v1273 = vunpack.c.h.b16 %v357
    %v1274 = vunpack.c.l.b16 %v358
    %v1275 = vunpack.c.h.b16 %v358
    %v1276 = vunpack.c.l.b16 %v359
    %v1277 = vunpack.c.h.b16 %v359
    %v1278 = vunpack.c.l.b16 %v360
    %v1279 = vunpack.c.h.b16 %v360
    %v1280 = vunpack.c.l.b16 %v361
    %v1281 = vunpack.c.h.b16 %v361
    %v1282 = vunpack.c.l.b16 %v362
    %v1283 = vunpack.c.h.b16 %v362
    %v1284 = vunpack.c.l.b16 %v363
    %v1285 = vunpack.c.h.b16 %v363
    %v1286 = vunpack.c.l.b16 %v364
    %v1287 = vunpack.c.h.b16 %v364
    %v1288 = vunpack.c.l.b16 %v365
    %v1289 = vunpack.c.h.b16 %v365
    %v1290 = vunpack.c.l.b16 %v366
    %v1291 = vunpack.c.h.b16 %v366
    %v1292 = vunpack.c.l.b16 %v367
    %v1293 = vunpack.c.h.b16 %v367
    %v1294 = vunpack.c.l.b16 %v368
    %v1295 = vunpack.c.h.b16 %v368
    %v1296 = vunpack.c.l.b16 %v369
    %v1297 = vunpack.c.h.b16 %v369
    %v1298 = vpack.c.b16 %v734, %v722
    %v1299 = vpack.c.b16 %v735, %v723
    %v1300 = vpack.c.b16 %v736, %v724
    %v1301 = vpack.c.b16 %v737, %v725
    %v1302 = vpack.c.b16 %v738, %v726
    %v1303 = vpack.c.b16 %v739, %v727
    %v1304 = vpack.c.b16 %v740, %v728
    %v1305 = vpack.c.b16 %v741, %v729
    %v1306 = vpack.c.b16 %v742, %v730
    %v1307 = vpack.c.b16 %v743, %v731
    %v1308 = vpack.c.b16 %v744, %v732
    %v1309 = vpack.c.b16 %v745, %v733
    %v1310 = vpack.c.b16 %v758, %v746
    %v1311 = vpack.c.b16 %v759, %v747
    %v1312 = vpack.c.b16 %v760, %v748
    %v1313 = vpack.c.b16 %v761, %v749
    %v1314 = vpack.c.b16 %v762, %v750
    %v1315 = vpack.c.b16 %v763, %v751
    %v1316 = vpack.c.b16 %v764, %v752
    %v1317 = vpack.c.b16 %v765, %v753
    %v1318 = vpack.c.b16 %v766, %v754
    %v1319 = vpack.c.b16 %v767, %v755
    %v1320 = vpack.c.b16 %v768, %v756
    %v1321 = vpack.c.b16 %v769, %v757
    %v1322 = vpack.c.b16 %v782, %v770
    %v1323 = vpack.c.b16 %v783, %v771
    %v1324 = vpack.c.b16 %v784, %v772
    %v1325 = vpack.c.b16 %v785, %v773
    %v1326 = vpack.c.b16 %v786, %v774
    %v1327 = vpack.c.b16 %v787, %v775
    %v1328 = vpack.c.b16 %v788, %v776
    %v1329 = vpack.c.b16 %v789, %v777
    %v1330 = vpack.c.b16 %v790, %v778
    %v1331 = vpack.c.b16 %v791, %v779
    %v1332 = vpack.c.b16 %v792, %v780
    %v1333 = vpack.c.b16 %v793, %v781
    %v1334 = vpack.c.b16 %v806, %v794
    %v1335 = vpack.c.b16 %v807, %v795
    %v1336 = vpack.c.b16 %v808, %v796
    %v1337 = vpack.c.b16 %v809, %v797
    %v1338 = vpack.c.b16 %v810, %v798
    %v1339 = vpack.c.b16 %v811, %v799
    %v1340 = vpack.c.b16 %v812, %v800
    %v1341 = vpack.c.b16 %v813, %v801
    %v1342 = vpack.c.b16 %v814, %v802
    %v1343 = vpack.c.b16 %v815, %v803
    %v1344 = vpack.c.b16 %v816, %v804
    %v1345 = vpack.c.b16 %v817, %v805
    %v1346 = vpack.c.b16 %v830, %v818
    %v1347 = vpack.c.b16 %v831, %v819
    %v1348 = vpack.c.b16 %v832, %v820
    %v1349 = vpack.c.b16 %v833, %v821
    %v1350 = vpack.c.b16 %v834, %v822
    %v1351 = vpack.c.b16 %v835, %v823
    %v1352 = vpack.c.b16 %v836, %v824
    %v1353 = vpack.c.b16 %v837, %v825
    %v1354 = vpack.c.b16 %v838, %v826
    %v1355 = vpack.c.b16 %v839, %v827
    %v1356 = vpack.c.b16 %v840, %v828
    %v1357 = vpack.c.b16 %v841, %v829
    %v1358 = vpack.c.b16 %v854, %v842
    %v1359 = vpack.c.b16 %v855, %v843
    %v1360 = vpack.c.b16 %v856, %v844
    %v1361 = vpack.c.b16 %v857, %v845
    %v1362 = vpack.c.b16 %v858, %v846
    %v1363 = vpack.c.b16 %v859, %v847
    %v1364 = vpack.c.b16 %v860, %v848
    %v1365 = vpack.c.b16 %v861, %v849
    %v1366 = vpack.c.b16 %v862, %v850
    %v1367 = vpack.c.b16 %v863, %v851
    %v1368 = vpack.c.b16 %v864, %v852
    %v1369 = vpack.c.b16 %v865, %v853
    %v1370 = vpack.c.b16 %v878, %v866
    %v1371 = vpack.c.b16 %v879, %v867
    %v1372 = vpack.c.b16 %v880, %v868
    %v1373 = vpack.c.b16 %v881, %v869
    %v1374 = vpack.c.b16 %v882, %v870
    %v1375 = vpack.c.b16 %v883, %v871
    %v1376 = vpack.c.b16 %v884, %v872
    %v1377 = vpack.c.b16 %v885, %v873
    %v1378 = vpack.c.b16 %v886, %v874
    %v1379 = vpack.c.b16 %v887, %v875
    %v1380 = vpack.c.b16 %v888, %v876
    %v1381 = vpack.c.b16 %v889, %v877
    %v1382 = vpack.c.b16 %v902, %v890
    %v1383 = vpack.c.b16 %v903, %v891
    %v1384 = vpack.c.b16 %v904, %v892
    %v1385 = vpack.c.b16 %v905, %v893
    %v1386 = vpack.c.b16 %v906, %v894
    %v1387 = vpack.c.b16 %v907, %v895
    %v1388 = vpack.c.b16 %v908, %v896
    %v1389 = vpack.c.b16 %v909, %v897
    %v1390 = vpack.c.b16 %v910, %v898
    %v1391 = vpack.c.b16 %v911, %v899
    %v1392 = vpack.c.b16 %v912, %v900
    %v1393 = vpack.c.b16 %v913, %v901
    %v1394 = vpack.c.b16 %v926, %v914
    %v1395 = vpack.c.b16 %v927, %v915
    %v1396 = vpack.c.b16 %v928, %v916
    %v1397 = vpack.c.b16 %v929, %v917
    %v1398 = vpack.c.b16 %v930, %v918
    %v1399 = vpack.c.b16 %v931, %v919
    %v1400 = vpack.c.b16 %v932, %v920
    %v1401 = vpack.c.b16 %v933, %v921
    %v1402 = vpack.c.b16 %v934, %v922
    %v1403 = vpack.c.b16 %v935, %v923
    %v1404 = vpack.c.b16 %v936, %v924
    %v1405 = vpack.c.b16 %v937, %v925
    %v1406 = vpack.c.b16 %v950, %v938
    %v1407 = vpack.c.b16 %v951, %v939
    %v1408 = vpack.c.b16 %v952, %v940
    %v1409 = vpack.c.b16 %v953, %v941
    %v1410 = vpack.c.b16 %v954, %v942
    %v1411 = vpack.c.b16 %v955, %v943
    %v1412 = vpack.c.b16 %v956, %v944
    %v1413 = vpack.c.b16 %v957, %v945
    %v1414 = vpack.c.b16 %v958, %v946
    %v1415 = vpack.c.b16 %v959, %v947
    %v1416 = vpack.c.b16 %v960, %v948
    %v1417 = vpack.c.b16 %v961, %v949
    %v1418 = vpack.c.b16 %v974, %v962
    %v1419 = vpack.c.b16 %v975, %v963
    %v1420 = vpack.c.b16 %v976, %v964
    %v1421 = vpack.c.b16 %v977, %v965
    %v1422 = vpack.c.b16 %v978, %v966
    %v1423 = vpack.c.b16 %v979, %v967
    %v1424 = vpack.c.b16 %v980, %v968
    %v1425 = vpack.c.b16 %v981, %v969
    %v1426 = vpack.c.b16 %v982, %v970
    %v1427 = vpack.c.b16 %v983, %v971
    %v1428 = vpack.c.b16 %v984, %v972
    %v1429 = vpack.c.b16 %v985, %v973
    %v1430 = vpack.c.b16 %v998, %v986
    %v1431 = vpack.c.b16 %v999, %v987
    %v1432 = vpack.c.b16 %v1000, %v988
    %v1433 = vpack.c.b16 %v1001, %v989
    %v1434 = vpack.c.b16 %v1002, %v990
    %v1435 = vpack.c.b16 %v1003, %v991
    %v1436 = vpack.c.b16 %v1004, %v992
    %v1437 = vpack.c.b16 %v1005, %v993
    %v1438 = vpack.c.b16 %v1006, %v994
    %v1439 = vpack.c.b16 %v1007, %v995
    %v1440 = vpack.c.b16 %v1008, %v996
    %v1441 = vpack.c.b16 %v1009, %v997
    %v1442 = vpack.c.b16 %v1022, %v1010
    %v1443 = vpack.c.b16 %v1023, %v1011
    %v1444 = vpack.c.b16 %v1024, %v1012
    %v1445 = vpack.c.b16 %v1025, %v1013
    %v1446 = vpack.c.b16 %v1026, %v1014
    %v1447 = vpack.c.b16 %v1027, %v1015
    %v1448 = vpack.c.b16 %v1028, %v1016
    %v1449 = vpack.c.b16 %v1029, %v1017
    %v1450 = vpack.c.b16 %v1030, %v1018
    %v1451 = vpack.c.b16 %v1031, %v1019
    %v1452 = vpack.c.b16 %v1032, %v1020
    %v1453 = vpack.c.b16 %v1033, %v1021
    %v1454 = vpack.c.b16 %v1046, %v1034
    %v1455 = vpack.c.b16 %v1047, %v1035
    %v1456 = vpack.c.b16 %v1048, %v1036
    %v1457 = vpack.c.b16 %v1049, %v1037
    %v1458 = vpack.c.b16 %v1050, %v1038
    %v1459 = vpack.c.b16 %v1051, %v1039
    %v1460 = vpack.c.b16 %v1052, %v1040
    %v1461 = vpack.c.b16 %v1053, %v1041
    %v1462 = vpack.c.b16 %v1054, %v1042
    %v1463 = vpack.c.b16 %v1055, %v1043
    %v1464 = vpack.c.b16 %v1056, %v1044
    %v1465 = vpack.c.b16 %v1057, %v1045
    %v1466 = vpack.c.b16 %v1070, %v1058
    %v1467 = vpack.c.b16 %v1071, %v1059
    %v1468 = vpack.c.b16 %v1072, %v1060
    %v1469 = vpack.c.b16 %v1073, %v1061
    %v1470 = vpack.c.b16 %v1074, %v1062
    %v1471 = vpack.c.b16 %v1075, %v1063
    %v1472 = vpack.c.b16 %v1076, %v1064
    %v1473 = vpack.c.b16 %v1077, %v1065
    %v1474 = vpack.c.b16 %v1078, %v1066
    %v1475 = vpack.c.b16 %v1079, %v1067
    %v1476 = vpack.c.b16 %v1080, %v1068
    %v1477 = vpack.c.b16 %v1081, %v1069
    %v1478 = vpack.c.b16 %v1094, %v1082
    %v1479 = vpack.c.b16 %v1095, %v1083
    %v1480 = vpack.c.b16 %v1096, %v1084
    %v1481 = vpack.c.b16 %v1097, %v1085
    %v1482 = vpack.c.b16 %v1098, %v1086
    %v1483 = vpack.c.b16 %v1099, %v1087
    %v1484 = vpack.c.b16 %v1100, %v1088
    %v1485 = vpack.c.b16 %v1101, %v1089
    %v1486 = vpack.c.b16 %v1102, %v1090
    %v1487 = vpack.c.b16 %v1103, %v1091
    %v1488 = vpack.c.b16 %v1104, %v1092
    %v1489 = vpack.c.b16 %v1105, %v1093
    %v1490 = vpack.c.b16 %v1118, %v1106
    %v1491 = vpack.c.b16 %v1119, %v1107
    %v1492 = vpack.c.b16 %v1120, %v1108
    %v1493 = vpack.c.b16 %v1121, %v1109
    %v1494 = vpack.c.b16 %v1122, %v1110
    %v1495 = vpack.c.b16 %v1123, %v1111
    %v1496 = vpack.c.b16 %v1124, %v1112
    %v1497 = vpack.c.b16 %v1125, %v1113
    %v1498 = vpack.c.b16 %v1126, %v1114
    %v1499 = vpack.c.b16 %v1127, %v1115
    %v1500 = vpack.c.b16 %v1128, %v1116
    %v1501 = vpack.c.b16 %v1129, %v1117
    %v1502 = vpack.c.b16 %v1142, %v1130
    %v1503 = vpack.c.b16 %v1143, %v1131
    %v1504 = vpack.c.b16 %v1144, %v1132
    %v1505 = vpack.c.b16 %v1145, %v1133
    %v1506 = vpack.c.b16 %v1146, %v1134
    %v1507 = vpack.c.b16 %v1147, %v1135
    %v1508 = vpack.c.b16 %v1148, %v1136
    %v1509 = vpack.c.b16 %v1149, %v1137
    %v1510 = vpack.c.b16 %v1150, %v1138
    %v1511 = vpack.c.b16 %v1151, %v1139
    %v1512 = vpack.c.b16 %v1152, %v1140
    %v1513 = vpack.c.b16 %v1153, %v1141
    %v1514 = vpack.c.b16 %v1166, %v1154
    %v1515 = vpack.c.b16 %v1167, %v1155
    %v1516 = vpack.c.b16 %v1168, %v1156
    %v1517 = vpack.c.b16 %v1169, %v1157
    %v1518 = vpack.c.b16 %v1170, %v1158
    %v1519 = vpack.c.b16 %v1171, %v1159
    %v1520 = vpack.c.b16 %v1172, %v1160
    %v1521 = vpack.c.b16 %v1173, %v1161
    %v1522 = vpack.c.b16 %v1174, %v1162
    %v1523 = vpack.c.b16 %v1175, %v1163
    %v1524 = vpack.c.b16 %v1176, %v1164
    %v1525 = vpack.c.b16 %v1177, %v1165
    %v1526 = vpack.c.b16 %v1190, %v1178
    %v1527 = vpack.c.b16 %v1191, %v1179
    %v1528 = vpack.c.b16 %v1192, %v1180
    %v1529 = vpack.c.b16 %v1193, %v1181
    %v1530 = vpack.c.b16 %v1194, %v1182
    %v1531 = vpack.c.b16 %v1195, %v1183
    %v1532 = vpack.c.b16 %v1196, %v1184
    %v1533 = vpack.c.b16 %v1197, %v1185
    %v1534 = vpack.c.b16 %v1198, %v1186
    %v1535 = vpack.c.b16 %v1199, %v1187
    %v1536 = vpack.c.b16 %v1200, %v1188
    %v1537 = vpack.c.b16 %v1201, %v1189
    %v1538 = vpack.c.b16 %v1214, %v1202
    %v1539 = vpack.c.b16 %v1215, %v1203
    %v1540 = vpack.c.b16 %v1216, %v1204
    %v1541 = vpack.c.b16 %v1217, %v1205
    %v1542 = vpack.c.b16 %v1218, %v1206
    %v1543 = vpack.c.b16 %v1219, %v1207
    %v1544 = vpack.c.b16 %v1220, %v1208
    %v1545 = vpack.c.b16 %v1221, %v1209
    %v1546 = vpack.c.b16 %v1222, %v1210
    %v1547 = vpack.c.b16 %v1223, %v1211
    %v1548 = vpack.c.b16 %v1224, %v1212
    %v1549 = vpack.c.b16 %v1225, %v1213
    %v1550 = vpack.c.b16 %v1238, %v1226
    %v1551 = vpack.c.b16 %v1239, %v1227
    %v1552 = vpack.c.b16 %v1240, %v1228
    %v1553 = vpack.c.b16 %v1241, %v1229
    %v1554 = vpack.c.b16 %v1242, %v1230
    %v1555 = vpack.c.b16 %v1243, %v1231
    %v1556 = vpack.c.b16 %v1244, %v1232
    %v1557 = vpack.c.b16 %v1245, %v1233
    %v1558 = vpack.c.b16 %v1246, %v1234
    %v1559 = vpack.c.b16 %v1247, %v1235
    %v1560 = vpack.c.b16 %v1248, %v1236
    %v1561 = vpack.c.b16 %v1249, %v1237
    %v1562 = vpack.c.b16 %v1262, %v1250
    %v1563 = vpack.c.b16 %v1263, %v1251
    %v1564 = vpack.c.b16 %v1264, %v1252
    %v1565 = vpack.c.b16 %v1265, %v1253
    %v1566 = vpack.c.b16 %v1266, %v1254
    %v1567 = vpack.c.b16 %v1267, %v1255
    %v1568 = vpack.c.b16 %v1268, %v1256
    %v1569 = vpack.c.b16 %v1269, %v1257
    %v1570 = vpack.c.b16 %v1270, %v1258
    %v1571 = vpack.c.b16 %v1271, %v1259
    %v1572 = vpack.c.b16 %v1272, %v1260
    %v1573 = vpack.c.b16 %v1273, %v1261
    %v1574 = vpack.c.b16 %v1286, %v1274
    %v1575 = vpack.c.b16 %v1287, %v1275
    %v1576 = vpack.c.b16 %v1288, %v1276
    %v1577 = vpack.c.b16 %v1289, %v1277
    %v1578 = vpack.c.b16 %v1290, %v1278
    %v1579 = vpack.c.b16 %v1291, %v1279
    %v1580 = vpack.c.b16 %v1292, %v1280
    %v1581 = vpack.c.b16 %v1293, %v1281
    %v1582 = vpack.c.b16 %v1294, %v1282
    %v1583 = vpack.c.b16 %v1295, %v1283
    %v1584 = vpack.c.b16 %v1296, %v1284
    %v1585 = vpack.c.b16 %v1297, %v1285
    %1874 = vmatprep.subr.bf16.mxu0 %v1299
    %1875 = vmatpush1.bf16.msra.mxu0 %v1298
    %1876 = vmatprep.subr.bf16.mxu0 %v1311
    %1877 = vmatpush1.bf16.msra.mxu0 %v1310
    %1878 = vmatprep.subr.bf16.mxu0 %v1323
    %1879 = vmatpush1.bf16.msra.mxu0 %v1322
    %1880 = vmatprep.subr.bf16.mxu0 %v1335
    %1881 = vmatpush1.bf16.msra.mxu0 %v1334
    %1882 = vmatprep.subr.bf16.mxu0 %v1347
    %1883 = vmatpush1.bf16.msra.mxu0 %v1346
    %1884 = vmatprep.subr.bf16.mxu0 %v1359
    %1885 = vmatpush1.bf16.msra.mxu0 %v1358
    %1886 = vmatprep.subr.bf16.mxu0 %v1371
    %1887 = vmatpush1.bf16.msra.mxu0 %v1370
    %1888 = vmatprep.subr.bf16.mxu0 %v1383
    %1889 = vmatpush1.bf16.msra.mxu0 %v1382
    %1890 = vmatprep.subr.bf16.mxu0 %v1395
    %1891 = vmatpush1.bf16.msra.mxu0 %v1394
    %1892 = vmatprep.subr.bf16.mxu0 %v1407
    %1893 = vmatpush1.bf16.msra.mxu0 %v1406
    %1894 = vmatprep.subr.bf16.mxu0 %v1419
    %1895 = vmatpush1.bf16.msra.mxu0 %v1418
    %1896 = vmatprep.subr.bf16.mxu0 %v1431
    %1897 = vmatpush1.bf16.msra.mxu0 %v1430
    %1898 = vmatprep.subr.bf16.mxu0 %v1443
    %1899 = vmatpush1.bf16.msra.mxu0 %v1442
    %1900 = vmatprep.subr.bf16.mxu0 %v1455
    %1901 = vmatpush1.bf16.msra.mxu0 %v1454
    %1902 = vmatprep.subr.bf16.mxu0 %v1467
    %1903 = vmatpush1.bf16.msra.mxu0 %v1466
    %1904 = vmatprep.subr.bf16.mxu0 %v1479
    %1905 = vmatpush1.bf16.msra.mxu0 %v1478
    %1906 = vmatprep.mubr.bf16.mxu0 %v80
    %1907 = vmatmul.mubr.bf16.gmra.mrb[0].mxu0 %v79
    %v1908 = vpop.f32.mrb[0].mxu0
    %v1909 = vadd.f32 %v377, %v1908
    %v1910 = vpop.f32.mrb[0].mxu0
    %v1911 = vadd.f32 %v381, %v1910
    %v1912 = vpop.f32.mrb[0].mxu0
    %v1913 = vadd.f32 %v377, %v1912
    %v1914 = vpop.f32.mrb[0].mxu0
    %v1915 = vadd.f32 %v381, %v1914
    %1916 = vdwg.mxu0
    %1917 = vmatprep.subr.bf16.mxu0 %v1491
    %1918 = vmatpush1.bf16.msra.mxu0 %v1490
    %1919 = vmatprep.subr.bf16.mxu0 %v1503
    %1920 = vmatpush1.bf16.msra.mxu0 %v1502
    %1921 = vmatprep.subr.bf16.mxu0 %v1515
    %1922 = vmatpush1.bf16.msra.mxu0 %v1514
    %1923 = vmatprep.subr.bf16.mxu0 %v1527
    %1924 = vmatpush1.bf16.msra.mxu0 %v1526
    %1925 = vmatprep.subr.bf16.mxu0 %v1539
    %1926 = vmatpush1.bf16.msra.mxu0 %v1538
    %1927 = vmatprep.subr.bf16.mxu0 %v1551
    %1928 = vmatpush1.bf16.msra.mxu0 %v1550
    %1929 = vmatprep.subr.bf16.mxu0 %v1563
    %1930 = vmatpush1.bf16.msra.mxu0 %v1562
    %1931 = vmatprep.subr.bf16.mxu0 %v1575
    %1932 = vmatpush1.bf16.msra.mxu0 %v1574
    %1933 = vmatprep.subr.bf16.mxu0 0
    %1934 = vmatpush1.bf16.msra.mxu0 0
    %1935 = vmatprep.subr.bf16.mxu0 0
    %1936 = vmatpush1.bf16.msra.mxu0 0
    %1937 = vmatprep.subr.bf16.mxu0 0
    %1938 = vmatpush1.bf16.msra.mxu0 0
    %1939 = vmatprep.subr.bf16.mxu0 0
    %1940 = vmatpush1.bf16.msra.mxu0 0
    %1941 = vmatprep.subr.bf16.mxu0 0
    %1942 = vmatpush1.bf16.msra.mxu0 0
    %1943 = vmatprep.subr.bf16.mxu0 0
    %1944 = vmatpush1.bf16.msra.mxu0 0
    %1945 = vmatprep.subr.bf16.mxu0 0
    %1946 = vmatpush1.bf16.msra.mxu0 0
    %1947 = vmatprep.subr.bf16.mxu0 0
    %1948 = vmatpush1.bf16.msra.mxu0 0
    %1949 = vmatprep.mubr.bf16.mxu0 0
    %1950 = vmatmul.mubr.bf16.gmra.mrb[0].mxu0 %v81
    %v1951 = vpop.f32.mrb[0].mxu0
    %v1952 = vadd.f32 %v1909, %v1951
    %v1953 = vpop.f32.mrb[0].mxu0
    %v1954 = vadd.f32 %v1911, %v1953
    %v1955 = vpop.f32.mrb[0].mxu0
    %v1956 = vadd.f32 %v1913, %v1955
    %v1957 = vpop.f32.mrb[0].mxu0
    %v1958 = vadd.f32 %v1915, %v1957
    %1959 = vdwg.mxu0
    %1960 = vmatprep.subr.bf16.mxu0 %v1301
    %1961 = vmatpush1.bf16.msra.mxu0 %v1300
    %1962 = vmatprep.subr.bf16.mxu0 %v1313
    %1963 = vmatpush1.bf16.msra.mxu0 %v1312
    %1964 = vmatprep.subr.bf16.mxu0 %v1325
    %1965 = vmatpush1.bf16.msra.mxu0 %v1324
    %1966 = vmatprep.subr.bf16.mxu0 %v1337
    %1967 = vmatpush1.bf16.msra.mxu0 %v1336
    %1968 = vmatprep.subr.bf16.mxu0 %v1349
    %1969 = vmatpush1.bf16.msra.mxu0 %v1348
    %1970 = vmatprep.subr.bf16.mxu0 %v1361
    %1971 = vmatpush1.bf16.msra.mxu0 %v1360
    %1972 = vmatprep.subr.bf16.mxu0 %v1373
    %1973 = vmatpush1.bf16.msra.mxu0 %v1372
    %1974 = vmatprep.subr.bf16.mxu0 %v1385
    %1975 = vmatpush1.bf16.msra.mxu0 %v1384
    %1976 = vmatprep.subr.bf16.mxu0 %v1397
    %1977 = vmatpush1.bf16.msra.mxu0 %v1396
    %1978 = vmatprep.subr.bf16.mxu0 %v1409
    %1979 = vmatpush1.bf16.msra.mxu0 %v1408
    %1980 = vmatprep.subr.bf16.mxu0 %v1421
    %1981 = vmatpush1.bf16.msra.mxu0 %v1420
    %1982 = vmatprep.subr.bf16.mxu0 %v1433
    %1983 = vmatpush1.bf16.msra.mxu0 %v1432
    %1984 = vmatprep.subr.bf16.mxu0 %v1445
    %1985 = vmatpush1.bf16.msra.mxu0 %v1444
    %1986 = vmatprep.subr.bf16.mxu0 %v1457
    %1987 = vmatpush1.bf16.msra.mxu0 %v1456
    %1988 = vmatprep.subr.bf16.mxu0 %v1469
    %1989 = vmatpush1.bf16.msra.mxu0 %v1468
    %1990 = vmatprep.subr.bf16.mxu0 %v1481
    %1991 = vmatpush1.bf16.msra.mxu0 %v1480
    %1992 = vmatprep.mubr.bf16.mxu0 %v80
    %1993 = vmatmul.mubr.bf16.gmra.mrb[0].mxu0 %v79
    %v1994 = vpop.f32.mrb[0].mxu0
    %v1995 = vadd.f32 %v385, %v1994
    %v1996 = vpop.f32.mrb[0].mxu0
    %v1997 = vadd.f32 %v389, %v1996
    %v1998 = vpop.f32.mrb[0].mxu0
    %v1999 = vadd.f32 %v385, %v1998
    %v2000 = vpop.f32.mrb[0].mxu0
    %v2001 = vadd.f32 %v389, %v2000
    %2002 = vdwg.mxu0
    %2003 = vmatprep.subr.bf16.mxu0 %v1493
    %2004 = vmatpush1.bf16.msra.mxu0 %v1492
    %2005 = vmatprep.subr.bf16.mxu0 %v1505
    %2006 = vmatpush1.bf16.msra.mxu0 %v1504
    %2007 = vmatprep.subr.bf16.mxu0 %v1517
    %2008 = vmatpush1.bf16.msra.mxu0 %v1516
    %2009 = vmatprep.subr.bf16.mxu0 %v1529
    %2010 = vmatpush1.bf16.msra.mxu0 %v1528
    %2011 = vmatprep.subr.bf16.mxu0 %v1541
    %2012 = vmatpush1.bf16.msra.mxu0 %v1540
    %2013 = vmatprep.subr.bf16.mxu0 %v1553
    %2014 = vmatpush1.bf16.msra.mxu0 %v1552
    %2015 = vmatprep.subr.bf16.mxu0 %v1565
    %2016 = vmatpush1.bf16.msra.mxu0 %v1564
    %2017 = vmatprep.subr.bf16.mxu0 %v1577
    %2018 = vmatpush1.bf16.msra.mxu0 %v1576
    %2019 = vmatprep.subr.bf16.mxu0 0
    %2020 = vmatpush1.bf16.msra.mxu0 0
    %2021 = vmatprep.subr.bf16.mxu0 0
    %2022 = vmatpush1.bf16.msra.mxu0 0
    %2023 = vmatprep.subr.bf16.mxu0 0
    %2024 = vmatpush1.bf16.msra.mxu0 0
    %2025 = vmatprep.subr.bf16.mxu0 0
    %2026 = vmatpush1.bf16.msra.mxu0 0
    %2027 = vmatprep.subr.bf16.mxu0 0
    %2028 = vmatpush1.bf16.msra.mxu0 0
    %2029 = vmatprep.subr.bf16.mxu0 0
    %2030 = vmatpush1.bf16.msra.mxu0 0
    %2031 = vmatprep.subr.bf16.mxu0 0
    %2032 = vmatpush1.bf16.msra.mxu0 0
    %2033 = vmatprep.subr.bf16.mxu0 0
    %2034 = vmatpush1.bf16.msra.mxu0 0
    %2035 = vmatprep.mubr.bf16.mxu0 0
    %2036 = vmatmul.mubr.bf16.gmra.mrb[0].mxu0 %v81
    %v2037 = vpop.f32.mrb[0].mxu0
    %v2038 = vadd.f32 %v1995, %v2037
    %v2039 = vpop.f32.mrb[0].mxu0
    %v2040 = vadd.f32 %v1997, %v2039
    %v2041 = vpop.f32.mrb[0].mxu0
    %v2042 = vadd.f32 %v1999, %v2041
    %v2043 = vpop.f32.mrb[0].mxu0
    %v2044 = vadd.f32 %v2001, %v2043
    %2045 = vdwg.mxu0
    %2046 = vmatprep.subr.bf16.mxu0 %v1303
    %2047 = vmatpush1.bf16.msra.mxu0 %v1302
    %2048 = vmatprep.subr.bf16.mxu0 %v1315
    %2049 = vmatpush1.bf16.msra.mxu0 %v1314
    %2050 = vmatprep.subr.bf16.mxu0 %v1327
    %2051 = vmatpush1.bf16.msra.mxu0 %v1326
    %2052 = vmatprep.subr.bf16.mxu0 %v1339
    %2053 = vmatpush1.bf16.msra.mxu0 %v1338
    %2054 = vmatprep.subr.bf16.mxu0 %v1351
    %2055 = vmatpush1.bf16.msra.mxu0 %v1350
    %2056 = vmatprep.subr.bf16.mxu0 %v1363
    %2057 = vmatpush1.bf16.msra.mxu0 %v1362
    %2058 = vmatprep.subr.bf16.mxu0 %v1375
    %2059 = vmatpush1.bf16.msra.mxu0 %v1374
    %2060 = vmatprep.subr.bf16.mxu0 %v1387
    %2061 = vmatpush1.bf16.msra.mxu0 %v1386
    %2062 = vmatprep.subr.bf16.mxu0 %v1399
    %2063 = vmatpush1.bf16.msra.mxu0 %v1398
    %2064 = vmatprep.subr.bf16.mxu0 %v1411
    %2065 = vmatpush1.bf16.msra.mxu0 %v1410
    %2066 = vmatprep.subr.bf16.mxu0 %v1423
    %2067 = vmatpush1.bf16.msra.mxu0 %v1422
    %2068 = vmatprep.subr.bf16.mxu0 %v1435
    %2069 = vmatpush1.bf16.msra.mxu0 %v1434
    %2070 = vmatprep.subr.bf16.mxu0 %v1447
    %2071 = vmatpush1.bf16.msra.mxu0 %v1446
    %2072 = vmatprep.subr.bf16.mxu0 %v1459
    %2073 = vmatpush1.bf16.msra.mxu0 %v1458
    %2074 = vmatprep.subr.bf16.mxu0 %v1471
    %2075 = vmatpush1.bf16.msra.mxu0 %v1470
    %2076 = vmatprep.subr.bf16.mxu0 %v1483
    %2077 = vmatpush1.bf16.msra.mxu0 %v1482
    %2078 = vmatprep.mubr.bf16.mxu0 %v80
    %2079 = vmatmul.mubr.bf16.gmra.mrb[0].mxu0 %v79
    %v2080 = vpop.f32.mrb[0].mxu0
    %v2081 = vadd.f32 %v393, %v2080
    %v2082 = vpop.f32.mrb[0].mxu0
    %v2083 = vadd.f32 %v397, %v2082
    %v2084 = vpop.f32.mrb[0].mxu0
    %v2085 = vadd.f32 %v393, %v2084
    %v2086 = vpop.f32.mrb[0].mxu0
    %v2087 = vadd.f32 %v397, %v2086
    %2088 = vdwg.mxu0
    %2089 = vmatprep.subr.bf16.mxu0 %v1495
    %2090 = vmatpush1.bf16.msra.mxu0 %v1494
    %2091 = vmatprep.subr.bf16.mxu0 %v1507
    %2092 = vmatpush1.bf16.msra.mxu0 %v1506
    %2093 = vmatprep.subr.bf16.mxu0 %v1519
    %2094 = vmatpush1.bf16.msra.mxu0 %v1518
    %2095 = vmatprep.subr.bf16.mxu0 %v1531
    %2096 = vmatpush1.bf16.msra.mxu0 %v1530
    %2097 = vmatprep.subr.bf16.mxu0 %v1543
    %2098 = vmatpush1.bf16.msra.mxu0 %v1542
    %2099 = vmatprep.subr.bf16.mxu0 %v1555
    %2100 = vmatpush1.bf16.msra.mxu0 %v1554
    %2101 = vmatprep.subr.bf16.mxu0 %v1567
    %2102 = vmatpush1.bf16.msra.mxu0 %v1566
    %2103 = vmatprep.subr.bf16.mxu0 %v1579
    %2104 = vmatpush1.bf16.msra.mxu0 %v1578
    %2105 = vmatprep.subr.bf16.mxu0 0
    %2106 = vmatpush1.bf16.msra.mxu0 0
    %2107 = vmatprep.subr.bf16.mxu0 0
    %2108 = vmatpush1.bf16.msra.mxu0 0
    %2109 = vmatprep.subr.bf16.mxu0 0
    %2110 = vmatpush1.bf16.msra.mxu0 0
    %2111 = vmatprep.subr.bf16.mxu0 0
    %2112 = vmatpush1.bf16.msra.mxu0 0
    %2113 = vmatprep.subr.bf16.mxu0 0
    %2114 = vmatpush1.bf16.msra.mxu0 0
    %2115 = vmatprep.subr.bf16.mxu0 0
    %2116 = vmatpush1.bf16.msra.mxu0 0
    %2117 = vmatprep.subr.bf16.mxu0 0
    %2118 = vmatpush1.bf16.msra.mxu0 0
    %2119 = vmatprep.subr.bf16.mxu0 0
    %2120 = vmatpush1.bf16.msra.mxu0 0
    %2121 = vmatprep.mubr.bf16.mxu0 0
    %2122 = vmatmul.mubr.bf16.gmra.mrb[0].mxu0 %v81
    %v2123 = vpop.f32.mrb[0].mxu0
    %v2124 = vadd.f32 %v2081, %v2123
    %v2125 = vpop.f32.mrb[0].mxu0
    %v2126 = vadd.f32 %v2083, %v2125
    %v2127 = vpop.f32.mrb[0].mxu0
    %v2128 = vadd.f32 %v2085, %v2127
    %v2129 = vpop.f32.mrb[0].mxu0
    %v2130 = vadd.f32 %v2087, %v2129
    %2131 = vdwg.mxu0
    %2132 = vmatprep.subr.bf16.mxu0 %v1305
    %2133 = vmatpush1.bf16.msra.mxu0 %v1304
    %2134 = vmatprep.subr.bf16.mxu0 %v1317
    %2135 = vmatpush1.bf16.msra.mxu0 %v1316
    %2136 = vmatprep.subr.bf16.mxu0 %v1329
    %2137 = vmatpush1.bf16.msra.mxu0 %v1328
    %2138 = vmatprep.subr.bf16.mxu0 %v1341
    %2139 = vmatpush1.bf16.msra.mxu0 %v1340
    %2140 = vmatprep.subr.bf16.mxu0 %v1353
    %2141 = vmatpush1.bf16.msra.mxu0 %v1352
    %2142 = vmatprep.subr.bf16.mxu0 %v1365
    %2143 = vmatpush1.bf16.msra.mxu0 %v1364
    %2144 = vmatprep.subr.bf16.mxu0 %v1377
    %2145 = vmatpush1.bf16.msra.mxu0 %v1376
    %2146 = vmatprep.subr.bf16.mxu0 %v1389
    %2147 = vmatpush1.bf16.msra.mxu0 %v1388
    %2148 = vmatprep.subr.bf16.mxu0 %v1401
    %2149 = vmatpush1.bf16.msra.mxu0 %v1400
    %2150 = vmatprep.subr.bf16.mxu0 %v1413
    %2151 = vmatpush1.bf16.msra.mxu0 %v1412
    %2152 = vmatprep.subr.bf16.mxu0 %v1425
    %2153 = vmatpush1.bf16.msra.mxu0 %v1424
    %2154 = vmatprep.subr.bf16.mxu0 %v1437
    %2155 = vmatpush1.bf16.msra.mxu0 %v1436
    %2156 = vmatprep.subr.bf16.mxu0 %v1449
    %2157 = vmatpush1.bf16.msra.mxu0 %v1448
    %2158 = vmatprep.subr.bf16.mxu0 %v1461
    %2159 = vmatpush1.bf16.msra.mxu0 %v1460
    %2160 = vmatprep.subr.bf16.mxu0 %v1473
    %2161 = vmatpush1.bf16.msra.mxu0 %v1472
    %2162 = vmatprep.subr.bf16.mxu0 %v1485
    %2163 = vmatpush1.bf16.msra.mxu0 %v1484
    %2164 = vmatprep.mubr.bf16.mxu0 %v80
    %2165 = vmatmul.mubr.bf16.gmra.mrb[0].mxu0 %v79
    %v2166 = vpop.f32.mrb[0].mxu0
    %v2167 = vadd.f32 %v401, %v2166
    %v2168 = vpop.f32.mrb[0].mxu0
    %v2169 = vadd.f32 %v405, %v2168
    %v2170 = vpop.f32.mrb[0].mxu0
    %v2171 = vadd.f32 %v401, %v2170
    %v2172 = vpop.f32.mrb[0].mxu0
    %v2173 = vadd.f32 %v405, %v2172
    %2174 = vdwg.mxu0
    %2175 = vmatprep.subr.bf16.mxu0 %v1497
    %2176 = vmatpush1.bf16.msra.mxu0 %v1496
    %2177 = vmatprep.subr.bf16.mxu0 %v1509
    %2178 = vmatpush1.bf16.msra.mxu0 %v1508
    %2179 = vmatprep.subr.bf16.mxu0 %v1521
    %2180 = vmatpush1.bf16.msra.mxu0 %v1520
    %2181 = vmatprep.subr.bf16.mxu0 %v1533
    %2182 = vmatpush1.bf16.msra.mxu0 %v1532
    %2183 = vmatprep.subr.bf16.mxu0 %v1545
    %2184 = vmatpush1.bf16.msra.mxu0 %v1544
    %2185 = vmatprep.subr.bf16.mxu0 %v1557
    %2186 = vmatpush1.bf16.msra.mxu0 %v1556
    %2187 = vmatprep.subr.bf16.mxu0 %v1569
    %2188 = vmatpush1.bf16.msra.mxu0 %v1568
    %2189 = vmatprep.subr.bf16.mxu0 %v1581
    %2190 = vmatpush1.bf16.msra.mxu0 %v1580
    %2191 = vmatprep.subr.bf16.mxu0 0
    %2192 = vmatpush1.bf16.msra.mxu0 0
    %2193 = vmatprep.subr.bf16.mxu0 0
    %2194 = vmatpush1.bf16.msra.mxu0 0
    %2195 = vmatprep.subr.bf16.mxu0 0
    %2196 = vmatpush1.bf16.msra.mxu0 0
    %2197 = vmatprep.subr.bf16.mxu0 0
    %2198 = vmatpush1.bf16.msra.mxu0 0
    %2199 = vmatprep.subr.bf16.mxu0 0
    %2200 = vmatpush1.bf16.msra.mxu0 0
    %2201 = vmatprep.subr.bf16.mxu0 0
    %2202 = vmatpush1.bf16.msra.mxu0 0
    %2203 = vmatprep.subr.bf16.mxu0 0
    %2204 = vmatpush1.bf16.msra.mxu0 0
    %2205 = vmatprep.subr.bf16.mxu0 0
    %2206 = vmatpush1.bf16.msra.mxu0 0
    %2207 = vmatprep.mubr.bf16.mxu0 0
    %2208 = vmatmul.mubr.bf16.gmra.mrb[0].mxu0 %v81
    %v2209 = vpop.f32.mrb[0].mxu0
    %v2210 = vadd.f32 %v2167, %v2209
    %v2211 = vpop.f32.mrb[0].mxu0
    %v2212 = vadd.f32 %v2169, %v2211
    %v2213 = vpop.f32.mrb[0].mxu0
    %v2214 = vadd.f32 %v2171, %v2213
    %v2215 = vpop.f32.mrb[0].mxu0
    %v2216 = vadd.f32 %v2173, %v2215
    %2217 = vdwg.mxu0
    %2218 = vmatprep.subr.bf16.mxu0 %v1307
    %2219 = vmatpush1.bf16.msra.mxu0 %v1306
    %2220 = vmatprep.subr.bf16.mxu0 %v1319
    %2221 = vmatpush1.bf16.msra.mxu0 %v1318
    %2222 = vmatprep.subr.bf16.mxu0 %v1331
    %2223 = vmatpush1.bf16.msra.mxu0 %v1330
    %2224 = vmatprep.subr.bf16.mxu0 %v1343
    %2225 = vmatpush1.bf16.msra.mxu0 %v1342
    %2226 = vmatprep.subr.bf16.mxu0 %v1355
    %2227 = vmatpush1.bf16.msra.mxu0 %v1354
    %2228 = vmatprep.subr.bf16.mxu0 %v1367
    %2229 = vmatpush1.bf16.msra.mxu0 %v1366
    %2230 = vmatprep.subr.bf16.mxu0 %v1379
    %2231 = vmatpush1.bf16.msra.mxu0 %v1378
    %2232 = vmatprep.subr.bf16.mxu0 %v1391
    %2233 = vmatpush1.bf16.msra.mxu0 %v1390
    %2234 = vmatprep.subr.bf16.mxu0 %v1403
    %2235 = vmatpush1.bf16.msra.mxu0 %v1402
    %2236 = vmatprep.subr.bf16.mxu0 %v1415
    %2237 = vmatpush1.bf16.msra.mxu0 %v1414
    %2238 = vmatprep.subr.bf16.mxu0 %v1427
    %2239 = vmatpush1.bf16.msra.mxu0 %v1426
    %2240 = vmatprep.subr.bf16.mxu0 %v1439
    %2241 = vmatpush1.bf16.msra.mxu0 %v1438
    %2242 = vmatprep.subr.bf16.mxu0 %v1451
    %2243 = vmatpush1.bf16.msra.mxu0 %v1450
    %2244 = vmatprep.subr.bf16.mxu0 %v1463
    %2245 = vmatpush1.bf16.msra.mxu0 %v1462
    %2246 = vmatprep.subr.bf16.mxu0 %v1475
    %2247 = vmatpush1.bf16.msra.mxu0 %v1474
    %2248 = vmatprep.subr.bf16.mxu0 %v1487
    %2249 = vmatpush1.bf16.msra.mxu0 %v1486
    %2250 = vmatprep.mubr.bf16.mxu0 %v80
    %2251 = vmatmul.mubr.bf16.gmra.mrb[0].mxu0 %v79
    %v2252 = vpop.f32.mrb[0].mxu0
    %v2253 = vadd.f32 %v409, %v2252
    %v2254 = vpop.f32.mrb[0].mxu0
    %v2255 = vadd.f32 %v413, %v2254
    %v2256 = vpop.f32.mrb[0].mxu0
    %v2257 = vadd.f32 %v409, %v2256
    %v2258 = vpop.f32.mrb[0].mxu0
    %v2259 = vadd.f32 %v413, %v2258
    %2260 = vdwg.mxu0
    %2261 = vmatprep.subr.bf16.mxu0 %v1499
    %2262 = vmatpush1.bf16.msra.mxu0 %v1498
    %2263 = vmatprep.subr.bf16.mxu0 %v1511
    %2264 = vmatpush1.bf16.msra.mxu0 %v1510
    %2265 = vmatprep.subr.bf16.mxu0 %v1523
    %2266 = vmatpush1.bf16.msra.mxu0 %v1522
    %2267 = vmatprep.subr.bf16.mxu0 %v1535
    %2268 = vmatpush1.bf16.msra.mxu0 %v1534
    %2269 = vmatprep.subr.bf16.mxu0 %v1547
    %2270 = vmatpush1.bf16.msra.mxu0 %v1546
    %2271 = vmatprep.subr.bf16.mxu0 %v1559
    %2272 = vmatpush1.bf16.msra.mxu0 %v1558
    %2273 = vmatprep.subr.bf16.mxu0 %v1571
    %2274 = vmatpush1.bf16.msra.mxu0 %v1570
    %2275 = vmatprep.subr.bf16.mxu0 %v1583
    %2276 = vmatpush1.bf16.msra.mxu0 %v1582
    %2277 = vmatprep.subr.bf16.mxu0 0
    %2278 = vmatpush1.bf16.msra.mxu0 0
    %2279 = vmatprep.subr.bf16.mxu0 0
    %2280 = vmatpush1.bf16.msra.mxu0 0
    %2281 = vmatprep.subr.bf16.mxu0 0
    %2282 = vmatpush1.bf16.msra.mxu0 0
    %2283 = vmatprep.subr.bf16.mxu0 0
    %2284 = vmatpush1.bf16.msra.mxu0 0
    %2285 = vmatprep.subr.bf16.mxu0 0
    %2286 = vmatpush1.bf16.msra.mxu0 0
    %2287 = vmatprep.subr.bf16.mxu0 0
    %2288 = vmatpush1.bf16.msra.mxu0 0
    %2289 = vmatprep.subr.bf16.mxu0 0
    %2290 = vmatpush1.bf16.msra.mxu0 0
    %2291 = vmatprep.subr.bf16.mxu0 0
    %2292 = vmatpush1.bf16.msra.mxu0 0
    %2293 = vmatprep.mubr.bf16.mxu0 0
    %2294 = vmatmul.mubr.bf16.gmra.mrb[0].mxu0 %v81
    %v2295 = vpop.f32.mrb[0].mxu0
    %v2296 = vadd.f32 %v2253, %v2295
    %v2297 = vpop.f32.mrb[0].mxu0
    %v2298 = vadd.f32 %v2255, %v2297
    %v2299 = vpop.f32.mrb[0].mxu0
    %v2300 = vadd.f32 %v2257, %v2299
    %v2301 = vpop.f32.mrb[0].mxu0
    %v2302 = vadd.f32 %v2259, %v2301
    %2303 = vdwg.mxu0
    %2304 = vmatprep.subr.bf16.mxu0 %v1309
    %2305 = vmatpush1.bf16.msra.mxu0 %v1308
    %2306 = vmatprep.subr.bf16.mxu0 %v1321
    %2307 = vmatpush1.bf16.msra.mxu0 %v1320
    %2308 = vmatprep.subr.bf16.mxu0 %v1333
    %2309 = vmatpush1.bf16.msra.mxu0 %v1332
    %2310 = vmatprep.subr.bf16.mxu0 %v1345
    %2311 = vmatpush1.bf16.msra.mxu0 %v1344
    %2312 = vmatprep.subr.bf16.mxu0 %v1357
    %2313 = vmatpush1.bf16.msra.mxu0 %v1356
    %2314 = vmatprep.subr.bf16.mxu0 %v1369
    %2315 = vmatpush1.bf16.msra.mxu0 %v1368
    %2316 = vmatprep.subr.bf16.mxu0 %v1381
    %2317 = vmatpush1.bf16.msra.mxu0 %v1380
    %2318 = vmatprep.subr.bf16.mxu0 %v1393
    %2319 = vmatpush1.bf16.msra.mxu0 %v1392
    %2320 = vmatprep.subr.bf16.mxu0 %v1405
    %2321 = vmatpush1.bf16.msra.mxu0 %v1404
    %2322 = vmatprep.subr.bf16.mxu0 %v1417
    %2323 = vmatpush1.bf16.msra.mxu0 %v1416
    %2324 = vmatprep.subr.bf16.mxu0 %v1429
    %2325 = vmatpush1.bf16.msra.mxu0 %v1428
    %2326 = vmatprep.subr.bf16.mxu0 %v1441
    %2327 = vmatpush1.bf16.msra.mxu0 %v1440
    %2328 = vmatprep.subr.bf16.mxu0 %v1453
    %2329 = vmatpush1.bf16.msra.mxu0 %v1452
    %2330 = vmatprep.subr.bf16.mxu0 %v1465
    %2331 = vmatpush1.bf16.msra.mxu0 %v1464
    %2332 = vmatprep.subr.bf16.mxu0 %v1477
    %2333 = vmatpush1.bf16.msra.mxu0 %v1476
    %2334 = vmatprep.subr.bf16.mxu0 %v1489
    %2335 = vmatpush1.bf16.msra.mxu0 %v1488
    %2336 = vmatprep.mubr.bf16.mxu0 %v80
    %2337 = vmatmul.mubr.bf16.gmra.mrb[0].mxu0 %v79
    %v2338 = vpop.f32.mrb[0].mxu0
    %v2339 = vadd.f32 %v417, %v2338
    %v2340 = vpop.f32.mrb[0].mxu0
    %v2341 = vadd.f32 %v421, %v2340
    %v2342 = vpop.f32.mrb[0].mxu0
    %v2343 = vadd.f32 %v417, %v2342
    %v2344 = vpop.f32.mrb[0].mxu0
    %v2345 = vadd.f32 %v421, %v2344
    %2346 = vdwg.mxu0
    %2347 = vmatprep.subr.bf16.mxu0 %v1501
    %2348 = vmatpush1.bf16.msra.mxu0 %v1500
    %2349 = vmatprep.subr.bf16.mxu0 %v1513
    %2350 = vmatpush1.bf16.msra.mxu0 %v1512
    %2351 = vmatprep.subr.bf16.mxu0 %v1525
    %2352 = vmatpush1.bf16.msra.mxu0 %v1524
    %2353 = vmatprep.subr.bf16.mxu0 %v1537
    %2354 = vmatpush1.bf16.msra.mxu0 %v1536
    %2355 = vmatprep.subr.bf16.mxu0 %v1549
    %2356 = vmatpush1.bf16.msra.mxu0 %v1548
    %2357 = vmatprep.subr.bf16.mxu0 %v1561
    %2358 = vmatpush1.bf16.msra.mxu0 %v1560
    %2359 = vmatprep.subr.bf16.mxu0 %v1573
    %2360 = vmatpush1.bf16.msra.mxu0 %v1572
    %2361 = vmatprep.subr.bf16.mxu0 %v1585
    %2362 = vmatpush1.bf16.msra.mxu0 %v1584
    %2363 = vmatprep.subr.bf16.mxu0 0
    %2364 = vmatpush1.bf16.msra.mxu0 0
    %2365 = vmatprep.subr.bf16.mxu0 0
    %2366 = vmatpush1.bf16.msra.mxu0 0
    %2367 = vmatprep.subr.bf16.mxu0 0
    %2368 = vmatpush1.bf16.msra.mxu0 0
    %2369 = vmatprep.subr.bf16.mxu0 0
    %2370 = vmatpush1.bf16.msra.mxu0 0
    %2371 = vmatprep.subr.bf16.mxu0 0
    %2372 = vmatpush1.bf16.msra.mxu0 0
    %2373 = vmatprep.subr.bf16.mxu0 0
    %2374 = vmatpush1.bf16.msra.mxu0 0
    %2375 = vmatprep.subr.bf16.mxu0 0
    %2376 = vmatpush1.bf16.msra.mxu0 0
    %2377 = vmatprep.subr.bf16.mxu0 0
    %2378 = vmatpush1.bf16.msra.mxu0 0
    %2379 = vmatprep.mubr.bf16.mxu0 0
    %2380 = vmatmul.mubr.bf16.gmra.mrb[0].mxu0 %v81
    %v2381 = vpop.f32.mrb[0].mxu0
    %v2382 = vadd.f32 %v2339, %v2381
    %v2383 = vpop.f32.mrb[0].mxu0
    %v2384 = vadd.f32 %v2341, %v2383
    %v2385 = vpop.f32.mrb[0].mxu0
    %v2386 = vadd.f32 %v2343, %v2385
    %v2387 = vpop.f32.mrb[0].mxu0
    %v2388 = vadd.f32 %v2345, %v2387
    %2389 = vdwg.mxu0
    %v2390 = vmax.f32 %v1952, 0.0
    %v2391 = vmax.f32 %v1954, 0.0
    %v2392 = vmax.f32 %v2038, 0.0
    %v2393 = vmax.f32 %v2040, 0.0
    %v2394 = vmax.f32 %v2124, 0.0
    %v2395 = vmax.f32 %v2126, 0.0
    %v2396 = vmax.f32 %v2210, 0.0
    %v2397 = vmax.f32 %v2212, 0.0
    %v2398 = vmax.f32 %v2296, 0.0
    %v2399 = vmax.f32 %v2298, 0.0
    %v2400 = vmax.f32 %v2382, 0.0
    %v2401 = vmax.f32 %v2384, 0.0
    %v2402 = vmax.f32 %v1956, 0.0
    %v2403 = vmax.f32 %v1958, 0.0
    %v2404 = vmax.f32 %v2042, 0.0
    %v2405 = vmax.f32 %v2044, 0.0
    %v2406 = vmax.f32 %v2128, 0.0
    %v2407 = vmax.f32 %v2130, 0.0
    %v2408 = vmax.f32 %v2214, 0.0
    %v2409 = vmax.f32 %v2216, 0.0
    %v2410 = vmax.f32 %v2300, 0.0
    %v2411 = vmax.f32 %v2302, 0.0
    %v2412 = vmax.f32 %v2386, 0.0
    %v2413 = vmax.f32 %v2388, 0.0
    %v2414 = vld [vmem:[#allocation2] sm:$0xff]
    %v2415 = vld [vmem:[#allocation2 + $0x8] sm:$0xff]
    %v2416 = vld [vmem:[#allocation2 + $0x10] sm:$0xff]
    %v2417 = vld [vmem:[#allocation2 + $0x18] sm:$0xff]
    %v2418 = vld [vmem:[#allocation2 + $0x20] sm:$0xff]
    %v2419 = vld [vmem:[#allocation2 + $0x28] sm:$0xff]
    %v2420 = vpack.c.bf16 %v2402, %v2390
    %v2421 = vpack.c.bf16 %v2403, %v2391
    %v2422 = vpack.c.bf16 %v2404, %v2392
    %v2423 = vpack.c.bf16 %v2405, %v2393
    %v2424 = vpack.c.bf16 %v2406, %v2394
    %v2425 = vpack.c.bf16 %v2407, %v2395
    %v2426 = vpack.c.bf16 %v2408, %v2396
    %v2427 = vpack.c.bf16 %v2409, %v2397
    %v2428 = vpack.c.bf16 %v2410, %v2398
    %v2429 = vpack.c.bf16 %v2411, %v2399
    %v2430 = vpack.c.bf16 %v2412, %v2400
    %v2431 = vpack.c.bf16 %v2413, %v2401
    %v2432 = vld [vmem:[#allocation8] sm:$0xff]
    %v2433 = vld [vmem:[#allocation8 + $0x8] sm:$0xf]
    %v2434 = vld [vmem:[#allocation8 + $0xc] sm:$0xff]
    %v2435 = vld [vmem:[#allocation8 + $0x14] sm:$0xf]
    %v2436 = vld [vmem:[#allocation8 + $0x18] sm:$0xff]
    %v2437 = vld [vmem:[#allocation8 + $0x20] sm:$0xf]
    %v2438 = vld [vmem:[#allocation8 + $0x24] sm:$0xff]
    %v2439 = vld [vmem:[#allocation8 + $0x2c] sm:$0xf]
    %v2440 = vld [vmem:[#allocation8 + $0x30] sm:$0xff]
    %v2441 = vld [vmem:[#allocation8 + $0x38] sm:$0xf]
    %v2442 = vld [vmem:[#allocation8 + $0x3c] sm:$0xff]
    %v2443 = vld [vmem:[#allocation8 + $0x44] sm:$0xf]
    %v2444 = vld [vmem:[#allocation8 + $0x48] sm:$0xff]
    %v2445 = vld [vmem:[#allocation8 + $0x50] sm:$0xf]
    %v2446 = vld [vmem:[#allocation8 + $0x54] sm:$0xff]
    %v2447 = vld [vmem:[#allocation8 + $0x5c] sm:$0xf]
    %v2448 = vld [vmem:[#allocation8 + $0x60] sm:$0xff]
    %v2449 = vld [vmem:[#allocation8 + $0x68] sm:$0xf]
    %v2450 = vld [vmem:[#allocation8 + $0x6c] sm:$0xff]
    %v2451 = vld [vmem:[#allocation8 + $0x74] sm:$0xf]
    %v2452 = vld [vmem:[#allocation8 + $0x78] sm:$0xff]
    %v2453 = vld [vmem:[#allocation8 + $0x80] sm:$0xf]
    %v2454 = vld [vmem:[#allocation8 + $0x84] sm:$0xff]
    %v2455 = vld [vmem:[#allocation8 + $0x8c] sm:$0xf]
    %v2456 = vld [vmem:[#allocation8 + $0x90] sm:$0xff]
    %v2457 = vld [vmem:[#allocation8 + $0x98] sm:$0xf]
    %v2458 = vld [vmem:[#allocation8 + $0x9c] sm:$0xff]
    %v2459 = vld [vmem:[#allocation8 + $0xa4] sm:$0xf]
    %v2460 = vld [vmem:[#allocation8 + $0xa8] sm:$0xff]
    %v2461 = vld [vmem:[#allocation8 + $0xb0] sm:$0xf]
    %v2462 = vld [vmem:[#allocation8 + $0xb4] sm:$0xff]
    %v2463 = vld [vmem:[#allocation8 + $0xbc] sm:$0xf]
    %v2464 = vld [vmem:[#allocation8 + $0xc0] sm:$0xff]
    %v2465 = vld [vmem:[#allocation8 + $0xc8] sm:$0xf]
    %v2466 = vld [vmem:[#allocation8 + $0xcc] sm:$0xff]
    %v2467 = vld [vmem:[#allocation8 + $0xd4] sm:$0xf]
    %v2468 = vld [vmem:[#allocation8 + $0xd8] sm:$0xff]
    %v2469 = vld [vmem:[#allocation8 + $0xe0] sm:$0xf]
    %v2470 = vld [vmem:[#allocation8 + $0xe4] sm:$0xff]
    %v2471 = vld [vmem:[#allocation8 + $0xec] sm:$0xf]
    %v2472 = vld [vmem:[#allocation8 + $0xf0] sm:$0xff]
    %v2473 = vld [vmem:[#allocation8 + $0xf8] sm:$0xf]
    %v2474 = vld [vmem:[#allocation8 + $0xfc] sm:$0xff]
    %v2475 = vld [vmem:[#allocation8 + $0x104] sm:$0xf]
    %v2476 = vld [vmem:[#allocation8 + $0x108] sm:$0xff]
    %v2477 = vld [vmem:[#allocation8 + $0x110] sm:$0xf]
    %v2478 = vld [vmem:[#allocation8 + $0x114] sm:$0xff]
    %v2479 = vld [vmem:[#allocation8 + $0x11c] sm:$0xf]
    %v2480 = vld [vmem:[#allocation8 + $0x120] sm:$0xff]
    %v2481 = vld [vmem:[#allocation8 + $0x128] sm:$0xf]
    %v2482 = vld [vmem:[#allocation8 + $0x12c] sm:$0xff]
    %v2483 = vld [vmem:[#allocation8 + $0x134] sm:$0xf]
    %v2484 = vld [vmem:[#allocation8 + $0x138] sm:$0xff]
    %v2485 = vld [vmem:[#allocation8 + $0x140] sm:$0xf]
    %v2486 = vld [vmem:[#allocation8 + $0x144] sm:$0xff]
    %v2487 = vld [vmem:[#allocation8 + $0x14c] sm:$0xf]
    %v2488 = vld [vmem:[#allocation8 + $0x150] sm:$0xff]
    %v2489 = vld [vmem:[#allocation8 + $0x158] sm:$0xf]
    %v2490 = vld [vmem:[#allocation8 + $0x15c] sm:$0xff]
    %v2491 = vld [vmem:[#allocation8 + $0x164] sm:$0xf]
    %v2492 = vld [vmem:[#allocation8 + $0x168] sm:$0xff]
    %v2493 = vld [vmem:[#allocation8 + $0x170] sm:$0xf]
    %v2494 = vld [vmem:[#allocation8 + $0x174] sm:$0xff]
    %v2495 = vld [vmem:[#allocation8 + $0x17c] sm:$0xf]
    %v2496 = vld [vmem:[#allocation8 + $0x180] sm:$0xff]
    %v2497 = vld [vmem:[#allocation8 + $0x188] sm:$0xf]
    %v2498 = vld [vmem:[#allocation8 + $0x18c] sm:$0xff]
    %v2499 = vld [vmem:[#allocation8 + $0x194] sm:$0xf]
    %v2500 = vld [vmem:[#allocation8 + $0x198] sm:$0xff]
    %v2501 = vld [vmem:[#allocation8 + $0x1a0] sm:$0xf]
    %v2502 = vld [vmem:[#allocation8 + $0x1a4] sm:$0xff]
    %v2503 = vld [vmem:[#allocation8 + $0x1ac] sm:$0xf]
    %v2504 = vld [vmem:[#allocation8 + $0x1b0] sm:$0xff]
    %v2505 = vld [vmem:[#allocation8 + $0x1b8] sm:$0xf]
    %v2506 = vld [vmem:[#allocation8 + $0x1bc] sm:$0xff]
    %v2507 = vld [vmem:[#allocation8 + $0x1c4] sm:$0xf]
    %v2508 = vld [vmem:[#allocation8 + $0x1c8] sm:$0xff]
    %v2509 = vld [vmem:[#allocation8 + $0x1d0] sm:$0xf]
    %v2510 = vld [vmem:[#allocation8 + $0x1d4] sm:$0xff]
    %v2511 = vld [vmem:[#allocation8 + $0x1dc] sm:$0xf]
    %v2512 = vld [vmem:[#allocation8 + $0x1e0] sm:$0xff]
    %v2513 = vld [vmem:[#allocation8 + $0x1e8] sm:$0xf]
    %v2514 = vld [vmem:[#allocation8 + $0x1ec] sm:$0xff]
    %v2515 = vld [vmem:[#allocation8 + $0x1f4] sm:$0xf]
    %v2516 = vld [vmem:[#allocation8 + $0x1f8] sm:$0xff]
    %v2517 = vld [vmem:[#allocation8 + $0x200] sm:$0xf]
    %v2518 = vld [vmem:[#allocation8 + $0x204] sm:$0xff]
    %v2519 = vld [vmem:[#allocation8 + $0x20c] sm:$0xf]
    %v2520 = vld [vmem:[#allocation8 + $0x210] sm:$0xff]
    %v2521 = vld [vmem:[#allocation8 + $0x218] sm:$0xf]
    %v2522 = vld [vmem:[#allocation8 + $0x21c] sm:$0xff]
    %v2523 = vld [vmem:[#allocation8 + $0x224] sm:$0xf]
    %v2524 = vld [vmem:[#allocation8 + $0x228] sm:$0xff]
    %v2525 = vld [vmem:[#allocation8 + $0x230] sm:$0xf]
    %v2526 = vld [vmem:[#allocation8 + $0x234] sm:$0xff]
    %v2527 = vld [vmem:[#allocation8 + $0x23c] sm:$0xf]
    %v2528 = vld [vmem:[#allocation8 + $0x240] sm:$0xff]
    %v2529 = vld [vmem:[#allocation8 + $0x248] sm:$0xf]
    %v2530 = vld [vmem:[#allocation8 + $0x24c] sm:$0xff]
    %v2531 = vld [vmem:[#allocation8 + $0x254] sm:$0xf]
    %v2532 = vld [vmem:[#allocation8 + $0x258] sm:$0xff]
    %v2533 = vld [vmem:[#allocation8 + $0x260] sm:$0xf]
    %v2534 = vld [vmem:[#allocation8 + $0x264] sm:$0xff]
    %v2535 = vld [vmem:[#allocation8 + $0x26c] sm:$0xf]
    %v2536 = vld [vmem:[#allocation8 + $0x270] sm:$0xff]
    %v2537 = vld [vmem:[#allocation8 + $0x278] sm:$0xf]
    %v2538 = vld [vmem:[#allocation8 + $0x27c] sm:$0xff]
    %v2539 = vld [vmem:[#allocation8 + $0x284] sm:$0xf]
    %v2540 = vld [vmem:[#allocation8 + $0x288] sm:$0xff]
    %v2541 = vld [vmem:[#allocation8 + $0x290] sm:$0xf]
    %v2542 = vld [vmem:[#allocation8 + $0x294] sm:$0xff]
    %v2543 = vld [vmem:[#allocation8 + $0x29c] sm:$0xf]
    %v2544 = vld [vmem:[#allocation8 + $0x2a0] sm:$0xff]
    %v2545 = vld [vmem:[#allocation8 + $0x2a8] sm:$0xf]
    %v2546 = vld [vmem:[#allocation8 + $0x2ac] sm:$0xff]
    %v2547 = vld [vmem:[#allocation8 + $0x2b4] sm:$0xf]
    %v2548 = vld [vmem:[#allocation8 + $0x2b8] sm:$0xff]
    %v2549 = vld [vmem:[#allocation8 + $0x2c0] sm:$0xf]
    %v2550 = vld [vmem:[#allocation8 + $0x2c4] sm:$0xff]
    %v2551 = vld [vmem:[#allocation8 + $0x2cc] sm:$0xf]
    %v2552 = vld [vmem:[#allocation8 + $0x2d0] sm:$0xff]
    %v2553 = vld [vmem:[#allocation8 + $0x2d8] sm:$0xf]
    %v2554 = vld [vmem:[#allocation8 + $0x2dc] sm:$0xff]
    %v2555 = vld [vmem:[#allocation8 + $0x2e4] sm:$0xf]
    %v2556 = vld [vmem:[#allocation8 + $0x2e8] sm:$0xff]
    %v2557 = vld [vmem:[#allocation8 + $0x2f0] sm:$0xf]
    %v2558 = vld [vmem:[#allocation8 + $0x2f4] sm:$0xff]
    %v2559 = vld [vmem:[#allocation8 + $0x2fc] sm:$0xf]
    %v2560 = vld [vmem:[#allocation8 + $0x300] sm:$0xff]
    %v2561 = vld [vmem:[#allocation8 + $0x308] sm:$0xf]
    %v2562 = vld [vmem:[#allocation8 + $0x30c] sm:$0xff]
    %v2563 = vld [vmem:[#allocation8 + $0x314] sm:$0xf]
    %v2564 = vld [vmem:[#allocation8 + $0x318] sm:$0xff]
    %v2565 = vld [vmem:[#allocation8 + $0x320] sm:$0xf]
    %v2566 = vld [vmem:[#allocation8 + $0x324] sm:$0xff]
    %v2567 = vld [vmem:[#allocation8 + $0x32c] sm:$0xf]
    %v2568 = vld [vmem:[#allocation8 + $0x330] sm:$0xff]
    %v2569 = vld [vmem:[#allocation8 + $0x338] sm:$0xf]
    %v2570 = vld [vmem:[#allocation8 + $0x33c] sm:$0xff]
    %v2571 = vld [vmem:[#allocation8 + $0x344] sm:$0xf]
    %v2572 = vld [vmem:[#allocation8 + $0x348] sm:$0xff]
    %v2573 = vld [vmem:[#allocation8 + $0x350] sm:$0xf]
    %v2574 = vld [vmem:[#allocation8 + $0x354] sm:$0xff]
    %v2575 = vld [vmem:[#allocation8 + $0x35c] sm:$0xf]
    %v2576 = vld [vmem:[#allocation8 + $0x360] sm:$0xff]
    %v2577 = vld [vmem:[#allocation8 + $0x368] sm:$0xf]
    %v2578 = vld [vmem:[#allocation8 + $0x36c] sm:$0xff]
    %v2579 = vld [vmem:[#allocation8 + $0x374] sm:$0xf]
    %v2580 = vld [vmem:[#allocation8 + $0x378] sm:$0xff]
    %v2581 = vld [vmem:[#allocation8 + $0x380] sm:$0xf]
    %v2582 = vld [vmem:[#allocation8 + $0x384] sm:$0xff]
    %v2583 = vld [vmem:[#allocation8 + $0x38c] sm:$0xf]
    %v2584 = vld [vmem:[#allocation8 + $0x390] sm:$0xff]
    %v2585 = vld [vmem:[#allocation8 + $0x398] sm:$0xf]
    %v2586 = vld [vmem:[#allocation8 + $0x39c] sm:$0xff]
    %v2587 = vld [vmem:[#allocation8 + $0x3a4] sm:$0xf]
    %v2588 = vld [vmem:[#allocation8 + $0x3a8] sm:$0xff]
    %v2589 = vld [vmem:[#allocation8 + $0x3b0] sm:$0xf]
    %v2590 = vld [vmem:[#allocation8 + $0x3b4] sm:$0xff]
    %v2591 = vld [vmem:[#allocation8 + $0x3bc] sm:$0xf]
    %v2592 = vld [vmem:[#allocation8 + $0x3c0] sm:$0xff]
    %v2593 = vld [vmem:[#allocation8 + $0x3c8] sm:$0xf]
    %v2594 = vld [vmem:[#allocation8 + $0x3cc] sm:$0xff]
    %v2595 = vld [vmem:[#allocation8 + $0x3d4] sm:$0xf]
    %v2596 = vld [vmem:[#allocation8 + $0x3d8] sm:$0xff]
    %v2597 = vld [vmem:[#allocation8 + $0x3e0] sm:$0xf]
    %v2598 = vld [vmem:[#allocation8 + $0x3e4] sm:$0xff]
    %v2599 = vld [vmem:[#allocation8 + $0x3ec] sm:$0xf]
    %v2600 = vld [vmem:[#allocation8 + $0x3f0] sm:$0xff]
    %v2601 = vld [vmem:[#allocation8 + $0x3f8] sm:$0xf]
    %v2602 = vld [vmem:[#allocation8 + $0x3fc] sm:$0xff]
    %v2603 = vld [vmem:[#allocation8 + $0x404] sm:$0xf]
    %v2604 = vld [vmem:[#allocation8 + $0x408] sm:$0xff]
    %v2605 = vld [vmem:[#allocation8 + $0x410] sm:$0xf]
    %v2606 = vld [vmem:[#allocation8 + $0x414] sm:$0xff]
    %v2607 = vld [vmem:[#allocation8 + $0x41c] sm:$0xf]
    %v2608 = vld [vmem:[#allocation8 + $0x420] sm:$0xff]
    %v2609 = vld [vmem:[#allocation8 + $0x428] sm:$0xf]
    %v2610 = vld [vmem:[#allocation8 + $0x42c] sm:$0xff]
    %v2611 = vld [vmem:[#allocation8 + $0x434] sm:$0xf]
    %v2612 = vld [vmem:[#allocation8 + $0x438] sm:$0xff]
    %v2613 = vld [vmem:[#allocation8 + $0x440] sm:$0xf]
    %v2614 = vld [vmem:[#allocation8 + $0x444] sm:$0xff]
    %v2615 = vld [vmem:[#allocation8 + $0x44c] sm:$0xf]
    %v2616 = vld [vmem:[#allocation8 + $0x450] sm:$0xff]
    %v2617 = vld [vmem:[#allocation8 + $0x458] sm:$0xf]
    %v2618 = vld [vmem:[#allocation8 + $0x45c] sm:$0xff]
    %v2619 = vld [vmem:[#allocation8 + $0x464] sm:$0xf]
    %v2620 = vld [vmem:[#allocation8 + $0x468] sm:$0xff]
    %v2621 = vld [vmem:[#allocation8 + $0x470] sm:$0xf]
    %v2622 = vld [vmem:[#allocation8 + $0x474] sm:$0xff]
    %v2623 = vld [vmem:[#allocation8 + $0x47c] sm:$0xf]
    %v2624 = vld [vmem:[#allocation8 + $0x480] sm:$0xff]
    %v2625 = vld [vmem:[#allocation8 + $0x488] sm:$0xf]
    %v2626 = vld [vmem:[#allocation8 + $0x48c] sm:$0xff]
    %v2627 = vld [vmem:[#allocation8 + $0x494] sm:$0xf]
    %v2628 = vld [vmem:[#allocation8 + $0x498] sm:$0xff]
    %v2629 = vld [vmem:[#allocation8 + $0x4a0] sm:$0xf]
    %v2630 = vld [vmem:[#allocation8 + $0x4a4] sm:$0xff]
    %v2631 = vld [vmem:[#allocation8 + $0x4ac] sm:$0xf]
    %v2632 = vld [vmem:[#allocation8 + $0x4b0] sm:$0xff]
    %v2633 = vld [vmem:[#allocation8 + $0x4b8] sm:$0xf]
    %v2634 = vld [vmem:[#allocation8 + $0x4bc] sm:$0xff]
    %v2635 = vld [vmem:[#allocation8 + $0x4c4] sm:$0xf]
    %v2636 = vld [vmem:[#allocation8 + $0x4c8] sm:$0xff]
    %v2637 = vld [vmem:[#allocation8 + $0x4d0] sm:$0xf]
    %v2638 = vld [vmem:[#allocation8 + $0x4d4] sm:$0xff]
    %v2639 = vld [vmem:[#allocation8 + $0x4dc] sm:$0xf]
    %v2640 = vld [vmem:[#allocation8 + $0x4e0] sm:$0xff]
    %v2641 = vld [vmem:[#allocation8 + $0x4e8] sm:$0xf]
    %v2642 = vld [vmem:[#allocation8 + $0x4ec] sm:$0xff]
    %v2643 = vld [vmem:[#allocation8 + $0x4f4] sm:$0xf]
    %v2644 = vld [vmem:[#allocation8 + $0x4f8] sm:$0xff]
    %v2645 = vld [vmem:[#allocation8 + $0x500] sm:$0xf]
    %v2646 = vld [vmem:[#allocation8 + $0x504] sm:$0xff]
    %v2647 = vld [vmem:[#allocation8 + $0x50c] sm:$0xf]
    %v2648 = vld [vmem:[#allocation8 + $0x510] sm:$0xff]
    %v2649 = vld [vmem:[#allocation8 + $0x518] sm:$0xf]
    %v2650 = vld [vmem:[#allocation8 + $0x51c] sm:$0xff]
    %v2651 = vld [vmem:[#allocation8 + $0x524] sm:$0xf]
    %v2652 = vld [vmem:[#allocation8 + $0x528] sm:$0xff]
    %v2653 = vld [vmem:[#allocation8 + $0x530] sm:$0xf]
    %v2654 = vld [vmem:[#allocation8 + $0x534] sm:$0xff]
    %v2655 = vld [vmem:[#allocation8 + $0x53c] sm:$0xf]
    %v2656 = vld [vmem:[#allocation8 + $0x540] sm:$0xff]
    %v2657 = vld [vmem:[#allocation8 + $0x548] sm:$0xf]
    %v2658 = vld [vmem:[#allocation8 + $0x54c] sm:$0xff]
    %v2659 = vld [vmem:[#allocation8 + $0x554] sm:$0xf]
    %v2660 = vld [vmem:[#allocation8 + $0x558] sm:$0xff]
    %v2661 = vld [vmem:[#allocation8 + $0x560] sm:$0xf]
    %v2662 = vld [vmem:[#allocation8 + $0x564] sm:$0xff]
    %v2663 = vld [vmem:[#allocation8 + $0x56c] sm:$0xf]
    %v2664 = vld [vmem:[#allocation8 + $0x570] sm:$0xff]
    %v2665 = vld [vmem:[#allocation8 + $0x578] sm:$0xf]
    %v2666 = vld [vmem:[#allocation8 + $0x57c] sm:$0xff]
    %v2667 = vld [vmem:[#allocation8 + $0x584] sm:$0xf]
    %v2668 = vld [vmem:[#allocation8 + $0x588] sm:$0xff]
    %v2669 = vld [vmem:[#allocation8 + $0x590] sm:$0xf]
    %v2670 = vld [vmem:[#allocation8 + $0x594] sm:$0xff]
    %v2671 = vld [vmem:[#allocation8 + $0x59c] sm:$0xf]
    %v2672 = vld [vmem:[#allocation8 + $0x5a0] sm:$0xff]
    %v2673 = vld [vmem:[#allocation8 + $0x5a8] sm:$0xf]
    %v2674 = vld [vmem:[#allocation8 + $0x5ac] sm:$0xff]
    %v2675 = vld [vmem:[#allocation8 + $0x5b4] sm:$0xf]
    %v2676 = vld [vmem:[#allocation8 + $0x5b8] sm:$0xff]
    %v2677 = vld [vmem:[#allocation8 + $0x5c0] sm:$0xf]
    %v2678 = vld [vmem:[#allocation8 + $0x5c4] sm:$0xff]
    %v2679 = vld [vmem:[#allocation8 + $0x5cc] sm:$0xf]
    %v2680 = vld [vmem:[#allocation8 + $0x5d0] sm:$0xff]
    %v2681 = vld [vmem:[#allocation8 + $0x5d8] sm:$0xf]
    %v2682 = vld [vmem:[#allocation8 + $0x5dc] sm:$0xff]
    %v2683 = vld [vmem:[#allocation8 + $0x5e4] sm:$0xf]
    %v2684 = vld [vmem:[#allocation8 + $0x5e8] sm:$0xff]
    %v2685 = vld [vmem:[#allocation8 + $0x5f0] sm:$0xf]
    %v2686 = vld [vmem:[#allocation8 + $0x5f4] sm:$0xff]
    %v2687 = vld [vmem:[#allocation8 + $0x5fc] sm:$0xf]
    %v2688 = vld [vmem:[#allocation8 + $0x600] sm:$0xff]
    %v2689 = vld [vmem:[#allocation8 + $0x608] sm:$0xf]
    %v2690 = vld [vmem:[#allocation8 + $0x60c] sm:$0xff]
    %v2691 = vld [vmem:[#allocation8 + $0x614] sm:$0xf]
    %v2692 = vld [vmem:[#allocation8 + $0x618] sm:$0xff]
    %v2693 = vld [vmem:[#allocation8 + $0x620] sm:$0xf]
    %v2694 = vld [vmem:[#allocation8 + $0x624] sm:$0xff]
    %v2695 = vld [vmem:[#allocation8 + $0x62c] sm:$0xf]
    %v2696 = vld [vmem:[#allocation8 + $0x630] sm:$0xff]
    %v2697 = vld [vmem:[#allocation8 + $0x638] sm:$0xf]
    %v2698 = vld [vmem:[#allocation8 + $0x63c] sm:$0xff]
    %v2699 = vld [vmem:[#allocation8 + $0x644] sm:$0xf]
    %v2700 = vld [vmem:[#allocation8 + $0x648] sm:$0xff]
    %v2701 = vld [vmem:[#allocation8 + $0x650] sm:$0xf]
    %v2702 = vld [vmem:[#allocation8 + $0x654] sm:$0xff]
    %v2703 = vld [vmem:[#allocation8 + $0x65c] sm:$0xf]
    %v2704 = vld [vmem:[#allocation8 + $0x660] sm:$0xff]
    %v2705 = vld [vmem:[#allocation8 + $0x668] sm:$0xf]
    %v2706 = vld [vmem:[#allocation8 + $0x66c] sm:$0xff]
    %v2707 = vld [vmem:[#allocation8 + $0x674] sm:$0xf]
    %v2708 = vld [vmem:[#allocation8 + $0x678] sm:$0xff]
    %v2709 = vld [vmem:[#allocation8 + $0x680] sm:$0xf]
    %v2710 = vld [vmem:[#allocation8 + $0x684] sm:$0xff]
    %v2711 = vld [vmem:[#allocation8 + $0x68c] sm:$0xf]
    %v2712 = vld [vmem:[#allocation8 + $0x690] sm:$0xff]
    %v2713 = vld [vmem:[#allocation8 + $0x698] sm:$0xf]
    %v2714 = vld [vmem:[#allocation8 + $0x69c] sm:$0xff]
    %v2715 = vld [vmem:[#allocation8 + $0x6a4] sm:$0xf]
    %v2716 = vld [vmem:[#allocation8 + $0x6a8] sm:$0xff]
    %v2717 = vld [vmem:[#allocation8 + $0x6b0] sm:$0xf]
    %v2718 = vld [vmem:[#allocation8 + $0x6b4] sm:$0xff]
    %v2719 = vld [vmem:[#allocation8 + $0x6bc] sm:$0xf]
    %v2720 = vld [vmem:[#allocation8 + $0x6c0] sm:$0xff]
    %v2721 = vld [vmem:[#allocation8 + $0x6c8] sm:$0xf]
    %v2722 = vld [vmem:[#allocation8 + $0x6cc] sm:$0xff]
    %v2723 = vld [vmem:[#allocation8 + $0x6d4] sm:$0xf]
    %v2724 = vld [vmem:[#allocation8 + $0x6d8] sm:$0xff]
    %v2725 = vld [vmem:[#allocation8 + $0x6e0] sm:$0xf]
    %v2726 = vld [vmem:[#allocation8 + $0x6e4] sm:$0xff]
    %v2727 = vld [vmem:[#allocation8 + $0x6ec] sm:$0xf]
    %v2728 = vld [vmem:[#allocation8 + $0x6f0] sm:$0xff]
    %v2729 = vld [vmem:[#allocation8 + $0x6f8] sm:$0xf]
    %v2730 = vld [vmem:[#allocation8 + $0x6fc] sm:$0xff]
    %v2731 = vld [vmem:[#allocation8 + $0x704] sm:$0xf]
    %v2732 = vld [vmem:[#allocation8 + $0x708] sm:$0xff]
    %v2733 = vld [vmem:[#allocation8 + $0x710] sm:$0xf]
    %v2734 = vld [vmem:[#allocation8 + $0x714] sm:$0xff]
    %v2735 = vld [vmem:[#allocation8 + $0x71c] sm:$0xf]
    %v2736 = vld [vmem:[#allocation8 + $0x720] sm:$0xff]
    %v2737 = vld [vmem:[#allocation8 + $0x728] sm:$0xf]
    %v2738 = vld [vmem:[#allocation8 + $0x72c] sm:$0xff]
    %v2739 = vld [vmem:[#allocation8 + $0x734] sm:$0xf]
    %v2740 = vld [vmem:[#allocation8 + $0x738] sm:$0xff]
    %v2741 = vld [vmem:[#allocation8 + $0x740] sm:$0xf]
    %v2742 = vld [vmem:[#allocation8 + $0x744] sm:$0xff]
    %v2743 = vld [vmem:[#allocation8 + $0x74c] sm:$0xf]
    %v2744 = vld [vmem:[#allocation8 + $0x750] sm:$0xff]
    %v2745 = vld [vmem:[#allocation8 + $0x758] sm:$0xf]
    %v2746 = vld [vmem:[#allocation8 + $0x75c] sm:$0xff]
    %v2747 = vld [vmem:[#allocation8 + $0x764] sm:$0xf]
    %v2748 = vld [vmem:[#allocation8 + $0x768] sm:$0xff]
    %v2749 = vld [vmem:[#allocation8 + $0x770] sm:$0xf]
    %v2750 = vld [vmem:[#allocation8 + $0x774] sm:$0xff]
    %v2751 = vld [vmem:[#allocation8 + $0x77c] sm:$0xf]
    %v2752 = vld [vmem:[#allocation8 + $0x780] sm:$0xff]
    %v2753 = vld [vmem:[#allocation8 + $0x788] sm:$0xf]
    %v2754 = vld [vmem:[#allocation8 + $0x78c] sm:$0xff]
    %v2755 = vld [vmem:[#allocation8 + $0x794] sm:$0xf]
    %v2756 = vld [vmem:[#allocation8 + $0x798] sm:$0xff]
    %v2757 = vld [vmem:[#allocation8 + $0x7a0] sm:$0xf]
    %v2758 = vld [vmem:[#allocation8 + $0x7a4] sm:$0xff]
    %v2759 = vld [vmem:[#allocation8 + $0x7ac] sm:$0xf]
    %v2760 = vld [vmem:[#allocation8 + $0x7b0] sm:$0xff]
    %v2761 = vld [vmem:[#allocation8 + $0x7b8] sm:$0xf]
    %v2762 = vld [vmem:[#allocation8 + $0x7bc] sm:$0xff]
    %v2763 = vld [vmem:[#allocation8 + $0x7c4] sm:$0xf]
    %v2764 = vld [vmem:[#allocation8 + $0x7c8] sm:$0xff]
    %v2765 = vld [vmem:[#allocation8 + $0x7d0] sm:$0xf]
    %v2766 = vld [vmem:[#allocation8 + $0x7d4] sm:$0xff]
    %v2767 = vld [vmem:[#allocation8 + $0x7dc] sm:$0xf]
    %v2768 = vld [vmem:[#allocation8 + $0x7e0] sm:$0xff]
    %v2769 = vld [vmem:[#allocation8 + $0x7e8] sm:$0xf]
    %v2770 = vld [vmem:[#allocation8 + $0x7ec] sm:$0xff]
    %v2771 = vld [vmem:[#allocation8 + $0x7f4] sm:$0xf]
    %v2772 = vld [vmem:[#allocation8 + $0x7f8] sm:$0xff]
    %v2773 = vld [vmem:[#allocation8 + $0x800] sm:$0xf]
    %v2774 = vld [vmem:[#allocation8 + $0x804] sm:$0xff]
    %v2775 = vld [vmem:[#allocation8 + $0x80c] sm:$0xf]
    %v2776 = vld [vmem:[#allocation8 + $0x810] sm:$0xff]
    %v2777 = vld [vmem:[#allocation8 + $0x818] sm:$0xf]
    %v2778 = vld [vmem:[#allocation8 + $0x81c] sm:$0xff]
    %v2779 = vld [vmem:[#allocation8 + $0x824] sm:$0xf]
    %v2780 = vld [vmem:[#allocation8 + $0x828] sm:$0xff]
    %v2781 = vld [vmem:[#allocation8 + $0x830] sm:$0xf]
    %v2782 = vld [vmem:[#allocation8 + $0x834] sm:$0xff]
    %v2783 = vld [vmem:[#allocation8 + $0x83c] sm:$0xf]
    %v2784 = vld [vmem:[#allocation8 + $0x840] sm:$0xff]
    %v2785 = vld [vmem:[#allocation8 + $0x848] sm:$0xf]
    %v2786 = vld [vmem:[#allocation8 + $0x84c] sm:$0xff]
    %v2787 = vld [vmem:[#allocation8 + $0x854] sm:$0xf]
    %v2788 = vld [vmem:[#allocation8 + $0x858] sm:$0xff]
    %v2789 = vld [vmem:[#allocation8 + $0x860] sm:$0xf]
    %v2790 = vld [vmem:[#allocation8 + $0x864] sm:$0xff]
    %v2791 = vld [vmem:[#allocation8 + $0x86c] sm:$0xf]
    %v2792 = vld [vmem:[#allocation8 + $0x870] sm:$0xff]
    %v2793 = vld [vmem:[#allocation8 + $0x878] sm:$0xf]
    %v2794 = vld [vmem:[#allocation8 + $0x87c] sm:$0xff]
    %v2795 = vld [vmem:[#allocation8 + $0x884] sm:$0xf]
    %v2796 = vld [vmem:[#allocation8 + $0x888] sm:$0xff]
    %v2797 = vld [vmem:[#allocation8 + $0x890] sm:$0xf]
    %v2798 = vld [vmem:[#allocation8 + $0x894] sm:$0xff]
    %v2799 = vld [vmem:[#allocation8 + $0x89c] sm:$0xf]
    %v2800 = vld [vmem:[#allocation8 + $0x8a0] sm:$0xff]
    %v2801 = vld [vmem:[#allocation8 + $0x8a8] sm:$0xf]
    %v2802 = vld [vmem:[#allocation8 + $0x8ac] sm:$0xff]
    %v2803 = vld [vmem:[#allocation8 + $0x8b4] sm:$0xf]
    %v2804 = vld [vmem:[#allocation8 + $0x8b8] sm:$0xff]
    %v2805 = vld [vmem:[#allocation8 + $0x8c0] sm:$0xf]
    %v2806 = vld [vmem:[#allocation8 + $0x8c4] sm:$0xff]
    %v2807 = vld [vmem:[#allocation8 + $0x8cc] sm:$0xf]
    %v2808 = vld [vmem:[#allocation8 + $0x8d0] sm:$0xff]
    %v2809 = vld [vmem:[#allocation8 + $0x8d8] sm:$0xf]
    %v2810 = vld [vmem:[#allocation8 + $0x8dc] sm:$0xff]
    %v2811 = vld [vmem:[#allocation8 + $0x8e4] sm:$0xf]
    %v2812 = vld [vmem:[#allocation8 + $0x8e8] sm:$0xff]
    %v2813 = vld [vmem:[#allocation8 + $0x8f0] sm:$0xf]
    %v2814 = vld [vmem:[#allocation8 + $0x8f4] sm:$0xff]
    %v2815 = vld [vmem:[#allocation8 + $0x8fc] sm:$0xf]
    %v3200 = vunpack.c.l.b16 %v2432
    %v3201 = vunpack.c.h.b16 %v2432
    %v3202 = vunpack.c.l.b16 %v2433
    %v3203 = vunpack.c.l.b16 %v2434
    %v3204 = vunpack.c.h.b16 %v2434
    %v3205 = vunpack.c.l.b16 %v2435
    %v3206 = vunpack.c.l.b16 %v2436
    %v3207 = vunpack.c.h.b16 %v2436
    %v3208 = vunpack.c.l.b16 %v2437
    %v3209 = vunpack.c.l.b16 %v2438
    %v3210 = vunpack.c.h.b16 %v2438
    %v3211 = vunpack.c.l.b16 %v2439
    %v3212 = vunpack.c.l.b16 %v2440
    %v3213 = vunpack.c.h.b16 %v2440
    %v3214 = vunpack.c.l.b16 %v2441
    %v3215 = vunpack.c.l.b16 %v2442
    %v3216 = vunpack.c.h.b16 %v2442
    %v3217 = vunpack.c.l.b16 %v2443
    %v3218 = vunpack.c.l.b16 %v2444
    %v3219 = vunpack.c.h.b16 %v2444
    %v3220 = vunpack.c.l.b16 %v2445
    %v3221 = vunpack.c.l.b16 %v2446
    %v3222 = vunpack.c.h.b16 %v2446
    %v3223 = vunpack.c.l.b16 %v2447
    %v3224 = vunpack.c.l.b16 %v2448
    %v3225 = vunpack.c.h.b16 %v2448
    %v3226 = vunpack.c.l.b16 %v2449
    %v3227 = vunpack.c.l.b16 %v2450
    %v3228 = vunpack.c.h.b16 %v2450
    %v3229 = vunpack.c.l.b16 %v2451
    %v3230 = vunpack.c.l.b16 %v2452
    %v3231 = vunpack.c.h.b16 %v2452
    %v3232 = vunpack.c.l.b16 %v2453
    %v3233 = vunpack.c.l.b16 %v2454
    %v3234 = vunpack.c.h.b16 %v2454
    %v3235 = vunpack.c.l.b16 %v2455
    %v3236 = vunpack.c.l.b16 %v2456
    %v3237 = vunpack.c.h.b16 %v2456
    %v3238 = vunpack.c.l.b16 %v2457
    %v3239 = vunpack.c.l.b16 %v2458
    %v3240 = vunpack.c.h.b16 %v2458
    %v3241 = vunpack.c.l.b16 %v2459
    %v3242 = vunpack.c.l.b16 %v2460
    %v3243 = vunpack.c.h.b16 %v2460
    %v3244 = vunpack.c.l.b16 %v2461
    %v3245 = vunpack.c.l.b16 %v2462
    %v3246 = vunpack.c.h.b16 %v2462
    %v3247 = vunpack.c.l.b16 %v2463
    %v3248 = vunpack.c.l.b16 %v2464
    %v3249 = vunpack.c.h.b16 %v2464
    %v3250 = vunpack.c.l.b16 %v2465
    %v3251 = vunpack.c.l.b16 %v2466
    %v3252 = vunpack.c.h.b16 %v2466
    %v3253 = vunpack.c.l.b16 %v2467
    %v3254 = vunpack.c.l.b16 %v2468
    %v3255 = vunpack.c.h.b16 %v2468
    %v3256 = vunpack.c.l.b16 %v2469
    %v3257 = vunpack.c.l.b16 %v2470
    %v3258 = vunpack.c.h.b16 %v2470
    %v3259 = vunpack.c.l.b16 %v2471
    %v3260 = vunpack.c.l.b16 %v2472
    %v3261 = vunpack.c.h.b16 %v2472
    %v3262 = vunpack.c.l.b16 %v2473
    %v3263 = vunpack.c.l.b16 %v2474
    %v3264 = vunpack.c.h.b16 %v2474
    %v3265 = vunpack.c.l.b16 %v2475
    %v3266 = vunpack.c.l.b16 %v2476
    %v3267 = vunpack.c.h.b16 %v2476
    %v3268 = vunpack.c.l.b16 %v2477
    %v3269 = vunpack.c.l.b16 %v2478
    %v3270 = vunpack.c.h.b16 %v2478
    %v3271 = vunpack.c.l.b16 %v2479
    %v3272 = vunpack.c.l.b16 %v2480
    %v3273 = vunpack.c.h.b16 %v2480
    %v3274 = vunpack.c.l.b16 %v2481
    %v3275 = vunpack.c.l.b16 %v2482
    %v3276 = vunpack.c.h.b16 %v2482
    %v3277 = vunpack.c.l.b16 %v2483
    %v3278 = vunpack.c.l.b16 %v2484
    %v3279 = vunpack.c.h.b16 %v2484
    %v3280 = vunpack.c.l.b16 %v2485
    %v3281 = vunpack.c.l.b16 %v2486
    %v3282 = vunpack.c.h.b16 %v2486
    %v3283 = vunpack.c.l.b16 %v2487
    %v3284 = vunpack.c.l.b16 %v2488
    %v3285 = vunpack.c.h.b16 %v2488
    %v3286 = vunpack.c.l.b16 %v2489
    %v3287 = vunpack.c.l.b16 %v2490
    %v3288 = vunpack.c.h.b16 %v2490
    %v3289 = vunpack.c.l.b16 %v2491
    %v3290 = vunpack.c.l.b16 %v2492
    %v3291 = vunpack.c.h.b16 %v2492
    %v3292 = vunpack.c.l.b16 %v2493
    %v3293 = vunpack.c.l.b16 %v2494
    %v3294 = vunpack.c.h.b16 %v2494
    %v3295 = vunpack.c.l.b16 %v2495
    %v3296 = vunpack.c.l.b16 %v2496
    %v3297 = vunpack.c.h.b16 %v2496
    %v3298 = vunpack.c.l.b16 %v2497
    %v3299 = vunpack.c.l.b16 %v2498
    %v3300 = vunpack.c.h.b16 %v2498
    %v3301 = vunpack.c.l.b16 %v2499
    %v3302 = vunpack.c.l.b16 %v2500
    %v3303 = vunpack.c.h.b16 %v2500
    %v3304 = vunpack.c.l.b16 %v2501
    %v3305 = vunpack.c.l.b16 %v2502
    %v3306 = vunpack.c.h.b16 %v2502
    %v3307 = vunpack.c.l.b16 %v2503
    %v3308 = vunpack.c.l.b16 %v2504
    %v3309 = vunpack.c.h.b16 %v2504
    %v3310 = vunpack.c.l.b16 %v2505
    %v3311 = vunpack.c.l.b16 %v2506
    %v3312 = vunpack.c.h.b16 %v2506
    %v3313 = vunpack.c.l.b16 %v2507
    %v3314 = vunpack.c.l.b16 %v2508
    %v3315 = vunpack.c.h.b16 %v2508
    %v3316 = vunpack.c.l.b16 %v2509
    %v3317 = vunpack.c.l.b16 %v2510
    %v3318 = vunpack.c.h.b16 %v2510
    %v3319 = vunpack.c.l.b16 %v2511
    %v3320 = vunpack.c.l.b16 %v2512
    %v3321 = vunpack.c.h.b16 %v2512
    %v3322 = vunpack.c.l.b16 %v2513
    %v3323 = vunpack.c.l.b16 %v2514
    %v3324 = vunpack.c.h.b16 %v2514
    %v3325 = vunpack.c.l.b16 %v2515
    %v3326 = vunpack.c.l.b16 %v2516
    %v3327 = vunpack.c.h.b16 %v2516
    %v3328 = vunpack.c.l.b16 %v2517
    %v3329 = vunpack.c.l.b16 %v2518
    %v3330 = vunpack.c.h.b16 %v2518
    %v3331 = vunpack.c.l.b16 %v2519
    %v3332 = vunpack.c.l.b16 %v2520
    %v3333 = vunpack.c.h.b16 %v2520
    %v3334 = vunpack.c.l.b16 %v2521
    %v3335 = vunpack.c.l.b16 %v2522
    %v3336 = vunpack.c.h.b16 %v2522
    %v3337 = vunpack.c.l.b16 %v2523
    %v3338 = vunpack.c.l.b16 %v2524
    %v3339 = vunpack.c.h.b16 %v2524
    %v3340 = vunpack.c.l.b16 %v2525
    %v3341 = vunpack.c.l.b16 %v2526
    %v3342 = vunpack.c.h.b16 %v2526
    %v3343 = vunpack.c.l.b16 %v2527
    %v3344 = vunpack.c.l.b16 %v2528
    %v3345 = vunpack.c.h.b16 %v2528
    %v3346 = vunpack.c.l.b16 %v2529
    %v3347 = vunpack.c.l.b16 %v2530
    %v3348 = vunpack.c.h.b16 %v2530
    %v3349 = vunpack.c.l.b16 %v2531
    %v3350 = vunpack.c.l.b16 %v2532
    %v3351 = vunpack.c.h.b16 %v2532
    %v3352 = vunpack.c.l.b16 %v2533
    %v3353 = vunpack.c.l.b16 %v2534
    %v3354 = vunpack.c.h.b16 %v2534
    %v3355 = vunpack.c.l.b16 %v2535
    %v3356 = vunpack.c.l.b16 %v2536
    %v3357 = vunpack.c.h.b16 %v2536
    %v3358 = vunpack.c.l.b16 %v2537
    %v3359 = vunpack.c.l.b16 %v2538
    %v3360 = vunpack.c.h.b16 %v2538
    %v3361 = vunpack.c.l.b16 %v2539
    %v3362 = vunpack.c.l.b16 %v2540
    %v3363 = vunpack.c.h.b16 %v2540
    %v3364 = vunpack.c.l.b16 %v2541
    %v3365 = vunpack.c.l.b16 %v2542
    %v3366 = vunpack.c.h.b16 %v2542
    %v3367 = vunpack.c.l.b16 %v2543
    %v3368 = vunpack.c.l.b16 %v2544
    %v3369 = vunpack.c.h.b16 %v2544
    %v3370 = vunpack.c.l.b16 %v2545
    %v3371 = vunpack.c.l.b16 %v2546
    %v3372 = vunpack.c.h.b16 %v2546
    %v3373 = vunpack.c.l.b16 %v2547
    %v3374 = vunpack.c.l.b16 %v2548
    %v3375 = vunpack.c.h.b16 %v2548
    %v3376 = vunpack.c.l.b16 %v2549
    %v3377 = vunpack.c.l.b16 %v2550
    %v3378 = vunpack.c.h.b16 %v2550
    %v3379 = vunpack.c.l.b16 %v2551
    %v3380 = vunpack.c.l.b16 %v2552
    %v3381 = vunpack.c.h.b16 %v2552
    %v3382 = vunpack.c.l.b16 %v2553
    %v3383 = vunpack.c.l.b16 %v2554
    %v3384 = vunpack.c.h.b16 %v2554
    %v3385 = vunpack.c.l.b16 %v2555
    %v3386 = vunpack.c.l.b16 %v2556
    %v3387 = vunpack.c.h.b16 %v2556
    %v3388 = vunpack.c.l.b16 %v2557
    %v3389 = vunpack.c.l.b16 %v2558
    %v3390 = vunpack.c.h.b16 %v2558
    %v3391 = vunpack.c.l.b16 %v2559
    %v3392 = vunpack.c.l.b16 %v2560
    %v3393 = vunpack.c.h.b16 %v2560
    %v3394 = vunpack.c.l.b16 %v2561
    %v3395 = vunpack.c.l.b16 %v2562
    %v3396 = vunpack.c.h.b16 %v2562
    %v3397 = vunpack.c.l.b16 %v2563
    %v3398 = vunpack.c.l.b16 %v2564
    %v3399 = vunpack.c.h.b16 %v2564
    %v3400 = vunpack.c.l.b16 %v2565
    %v3401 = vunpack.c.l.b16 %v2566
    %v3402 = vunpack.c.h.b16 %v2566
    %v3403 = vunpack.c.l.b16 %v2567
    %v3404 = vunpack.c.l.b16 %v2568
    %v3405 = vunpack.c.h.b16 %v2568
    %v3406 = vunpack.c.l.b16 %v2569
    %v3407 = vunpack.c.l.b16 %v2570
    %v3408 = vunpack.c.h.b16 %v2570
    %v3409 = vunpack.c.l.b16 %v2571
    %v3410 = vunpack.c.l.b16 %v2572
    %v3411 = vunpack.c.h.b16 %v2572
    %v3412 = vunpack.c.l.b16 %v2573
    %v3413 = vunpack.c.l.b16 %v2574
    %v3414 = vunpack.c.h.b16 %v2574
    %v3415 = vunpack.c.l.b16 %v2575
    %v3416 = vunpack.c.l.b16 %v2576
    %v3417 = vunpack.c.h.b16 %v2576
    %v3418 = vunpack.c.l.b16 %v2577
    %v3419 = vunpack.c.l.b16 %v2578
    %v3420 = vunpack.c.h.b16 %v2578
    %v3421 = vunpack.c.l.b16 %v2579
    %v3422 = vunpack.c.l.b16 %v2580
    %v3423 = vunpack.c.h.b16 %v2580
    %v3424 = vunpack.c.l.b16 %v2581
    %v3425 = vunpack.c.l.b16 %v2582
    %v3426 = vunpack.c.h.b16 %v2582
    %v3427 = vunpack.c.l.b16 %v2583
    %v3428 = vunpack.c.l.b16 %v2584
    %v3429 = vunpack.c.h.b16 %v2584
    %v3430 = vunpack.c.l.b16 %v2585
    %v3431 = vunpack.c.l.b16 %v2586
    %v3432 = vunpack.c.h.b16 %v2586
    %v3433 = vunpack.c.l.b16 %v2587
    %v3434 = vunpack.c.l.b16 %v2588
    %v3435 = vunpack.c.h.b16 %v2588
    %v3436 = vunpack.c.l.b16 %v2589
    %v3437 = vunpack.c.l.b16 %v2590
    %v3438 = vunpack.c.h.b16 %v2590
    %v3439 = vunpack.c.l.b16 %v2591
    %v3440 = vunpack.c.l.b16 %v2592
    %v3441 = vunpack.c.h.b16 %v2592
    %v3442 = vunpack.c.l.b16 %v2593
    %v3443 = vunpack.c.l.b16 %v2594
    %v3444 = vunpack.c.h.b16 %v2594
    %v3445 = vunpack.c.l.b16 %v2595
    %v3446 = vunpack.c.l.b16 %v2596
    %v3447 = vunpack.c.h.b16 %v2596
    %v3448 = vunpack.c.l.b16 %v2597
    %v3449 = vunpack.c.l.b16 %v2598
    %v3450 = vunpack.c.h.b16 %v2598
    %v3451 = vunpack.c.l.b16 %v2599
    %v3452 = vunpack.c.l.b16 %v2600
    %v3453 = vunpack.c.h.b16 %v2600
    %v3454 = vunpack.c.l.b16 %v2601
    %v3455 = vunpack.c.l.b16 %v2602
    %v3456 = vunpack.c.h.b16 %v2602
    %v3457 = vunpack.c.l.b16 %v2603
    %v3458 = vunpack.c.l.b16 %v2604
    %v3459 = vunpack.c.h.b16 %v2604
    %v3460 = vunpack.c.l.b16 %v2605
    %v3461 = vunpack.c.l.b16 %v2606
    %v3462 = vunpack.c.h.b16 %v2606
    %v3463 = vunpack.c.l.b16 %v2607
    %v3464 = vunpack.c.l.b16 %v2608
    %v3465 = vunpack.c.h.b16 %v2608
    %v3466 = vunpack.c.l.b16 %v2609
    %v3467 = vunpack.c.l.b16 %v2610
    %v3468 = vunpack.c.h.b16 %v2610
    %v3469 = vunpack.c.l.b16 %v2611
    %v3470 = vunpack.c.l.b16 %v2612
    %v3471 = vunpack.c.h.b16 %v2612
    %v3472 = vunpack.c.l.b16 %v2613
    %v3473 = vunpack.c.l.b16 %v2614
    %v3474 = vunpack.c.h.b16 %v2614
    %v3475 = vunpack.c.l.b16 %v2615
    %v3476 = vunpack.c.l.b16 %v2616
    %v3477 = vunpack.c.h.b16 %v2616
    %v3478 = vunpack.c.l.b16 %v2617
    %v3479 = vunpack.c.l.b16 %v2618
    %v3480 = vunpack.c.h.b16 %v2618
    %v3481 = vunpack.c.l.b16 %v2619
    %v3482 = vunpack.c.l.b16 %v2620
    %v3483 = vunpack.c.h.b16 %v2620
    %v3484 = vunpack.c.l.b16 %v2621
    %v3485 = vunpack.c.l.b16 %v2622
    %v3486 = vunpack.c.h.b16 %v2622
    %v3487 = vunpack.c.l.b16 %v2623
    %v3488 = vunpack.c.l.b16 %v2624
    %v3489 = vunpack.c.h.b16 %v2624
    %v3490 = vunpack.c.l.b16 %v2625
    %v3491 = vunpack.c.l.b16 %v2626
    %v3492 = vunpack.c.h.b16 %v2626
    %v3493 = vunpack.c.l.b16 %v2627
    %v3494 = vunpack.c.l.b16 %v2628
    %v3495 = vunpack.c.h.b16 %v2628
    %v3496 = vunpack.c.l.b16 %v2629
    %v3497 = vunpack.c.l.b16 %v2630
    %v3498 = vunpack.c.h.b16 %v2630
    %v3499 = vunpack.c.l.b16 %v2631
    %v3500 = vunpack.c.l.b16 %v2632
    %v3501 = vunpack.c.h.b16 %v2632
    %v3502 = vunpack.c.l.b16 %v2633
    %v3503 = vunpack.c.l.b16 %v2634
    %v3504 = vunpack.c.h.b16 %v2634
    %v3505 = vunpack.c.l.b16 %v2635
    %v3506 = vunpack.c.l.b16 %v2636
    %v3507 = vunpack.c.h.b16 %v2636
    %v3508 = vunpack.c.l.b16 %v2637
    %v3509 = vunpack.c.l.b16 %v2638
    %v3510 = vunpack.c.h.b16 %v2638
    %v3511 = vunpack.c.l.b16 %v2639
    %v3512 = vunpack.c.l.b16 %v2640
    %v3513 = vunpack.c.h.b16 %v2640
    %v3514 = vunpack.c.l.b16 %v2641
    %v3515 = vunpack.c.l.b16 %v2642
    %v3516 = vunpack.c.h.b16 %v2642
    %v3517 = vunpack.c.l.b16 %v2643
    %v3518 = vunpack.c.l.b16 %v2644
    %v3519 = vunpack.c.h.b16 %v2644
    %v3520 = vunpack.c.l.b16 %v2645
    %v3521 = vunpack.c.l.b16 %v2646
    %v3522 = vunpack.c.h.b16 %v2646
    %v3523 = vunpack.c.l.b16 %v2647
    %v3524 = vunpack.c.l.b16 %v2648
    %v3525 = vunpack.c.h.b16 %v2648
    %v3526 = vunpack.c.l.b16 %v2649
    %v3527 = vunpack.c.l.b16 %v2650
    %v3528 = vunpack.c.h.b16 %v2650
    %v3529 = vunpack.c.l.b16 %v2651
    %v3530 = vunpack.c.l.b16 %v2652
    %v3531 = vunpack.c.h.b16 %v2652
    %v3532 = vunpack.c.l.b16 %v2653
    %v3533 = vunpack.c.l.b16 %v2654
    %v3534 = vunpack.c.h.b16 %v2654
    %v3535 = vunpack.c.l.b16 %v2655
    %v3536 = vunpack.c.l.b16 %v2656
    %v3537 = vunpack.c.h.b16 %v2656
    %v3538 = vunpack.c.l.b16 %v2657
    %v3539 = vunpack.c.l.b16 %v2658
    %v3540 = vunpack.c.h.b16 %v2658
    %v3541 = vunpack.c.l.b16 %v2659
    %v3542 = vunpack.c.l.b16 %v2660
    %v3543 = vunpack.c.h.b16 %v2660
    %v3544 = vunpack.c.l.b16 %v2661
    %v3545 = vunpack.c.l.b16 %v2662
    %v3546 = vunpack.c.h.b16 %v2662
    %v3547 = vunpack.c.l.b16 %v2663
    %v3548 = vunpack.c.l.b16 %v2664
    %v3549 = vunpack.c.h.b16 %v2664
    %v3550 = vunpack.c.l.b16 %v2665
    %v3551 = vunpack.c.l.b16 %v2666
    %v3552 = vunpack.c.h.b16 %v2666
    %v3553 = vunpack.c.l.b16 %v2667
    %v3554 = vunpack.c.l.b16 %v2668
    %v3555 = vunpack.c.h.b16 %v2668
    %v3556 = vunpack.c.l.b16 %v2669
    %v3557 = vunpack.c.l.b16 %v2670
    %v3558 = vunpack.c.h.b16 %v2670
    %v3559 = vunpack.c.l.b16 %v2671
    %v3560 = vunpack.c.l.b16 %v2672
    %v3561 = vunpack.c.h.b16 %v2672
    %v3562 = vunpack.c.l.b16 %v2673
    %v3563 = vunpack.c.l.b16 %v2674
    %v3564 = vunpack.c.h.b16 %v2674
    %v3565 = vunpack.c.l.b16 %v2675
    %v3566 = vunpack.c.l.b16 %v2676
    %v3567 = vunpack.c.h.b16 %v2676
    %v3568 = vunpack.c.l.b16 %v2677
    %v3569 = vunpack.c.l.b16 %v2678
    %v3570 = vunpack.c.h.b16 %v2678
    %v3571 = vunpack.c.l.b16 %v2679
    %v3572 = vunpack.c.l.b16 %v2680
    %v3573 = vunpack.c.h.b16 %v2680
    %v3574 = vunpack.c.l.b16 %v2681
    %v3575 = vunpack.c.l.b16 %v2682
    %v3576 = vunpack.c.h.b16 %v2682
    %v3577 = vunpack.c.l.b16 %v2683
    %v3578 = vunpack.c.l.b16 %v2684
    %v3579 = vunpack.c.h.b16 %v2684
    %v3580 = vunpack.c.l.b16 %v2685
    %v3581 = vunpack.c.l.b16 %v2686
    %v3582 = vunpack.c.h.b16 %v2686
    %v3583 = vunpack.c.l.b16 %v2687
    %v3584 = vunpack.c.l.b16 %v2688
    %v3585 = vunpack.c.h.b16 %v2688
    %v3586 = vunpack.c.l.b16 %v2689
    %v3587 = vunpack.c.l.b16 %v2690
    %v3588 = vunpack.c.h.b16 %v2690
    %v3589 = vunpack.c.l.b16 %v2691
    %v3590 = vunpack.c.l.b16 %v2692
    %v3591 = vunpack.c.h.b16 %v2692
    %v3592 = vunpack.c.l.b16 %v2693
    %v3593 = vunpack.c.l.b16 %v2694
    %v3594 = vunpack.c.h.b16 %v2694
    %v3595 = vunpack.c.l.b16 %v2695
    %v3596 = vunpack.c.l.b16 %v2696
    %v3597 = vunpack.c.h.b16 %v2696
    %v3598 = vunpack.c.l.b16 %v2697
    %v3599 = vunpack.c.l.b16 %v2698
    %v3600 = vunpack.c.h.b16 %v2698
    %v3601 = vunpack.c.l.b16 %v2699
    %v3602 = vunpack.c.l.b16 %v2700
    %v3603 = vunpack.c.h.b16 %v2700
    %v3604 = vunpack.c.l.b16 %v2701
    %v3605 = vunpack.c.l.b16 %v2702
    %v3606 = vunpack.c.h.b16 %v2702
    %v3607 = vunpack.c.l.b16 %v2703
    %v3608 = vunpack.c.l.b16 %v2704
    %v3609 = vunpack.c.h.b16 %v2704
    %v3610 = vunpack.c.l.b16 %v2705
    %v3611 = vunpack.c.l.b16 %v2706
    %v3612 = vunpack.c.h.b16 %v2706
    %v3613 = vunpack.c.l.b16 %v2707
    %v3614 = vunpack.c.l.b16 %v2708
    %v3615 = vunpack.c.h.b16 %v2708
    %v3616 = vunpack.c.l.b16 %v2709
    %v3617 = vunpack.c.l.b16 %v2710
    %v3618 = vunpack.c.h.b16 %v2710
    %v3619 = vunpack.c.l.b16 %v2711
    %v3620 = vunpack.c.l.b16 %v2712
    %v3621 = vunpack.c.h.b16 %v2712
    %v3622 = vunpack.c.l.b16 %v2713
    %v3623 = vunpack.c.l.b16 %v2714
    %v3624 = vunpack.c.h.b16 %v2714
    %v3625 = vunpack.c.l.b16 %v2715
    %v3626 = vunpack.c.l.b16 %v2716
    %v3627 = vunpack.c.h.b16 %v2716
    %v3628 = vunpack.c.l.b16 %v2717
    %v3629 = vunpack.c.l.b16 %v2718
    %v3630 = vunpack.c.h.b16 %v2718
    %v3631 = vunpack.c.l.b16 %v2719
    %v3632 = vunpack.c.l.b16 %v2720
    %v3633 = vunpack.c.h.b16 %v2720
    %v3634 = vunpack.c.l.b16 %v2721
    %v3635 = vunpack.c.l.b16 %v2722
    %v3636 = vunpack.c.h.b16 %v2722
    %v3637 = vunpack.c.l.b16 %v2723
    %v3638 = vunpack.c.l.b16 %v2724
    %v3639 = vunpack.c.h.b16 %v2724
    %v3640 = vunpack.c.l.b16 %v2725
    %v3641 = vunpack.c.l.b16 %v2726
    %v3642 = vunpack.c.h.b16 %v2726
    %v3643 = vunpack.c.l.b16 %v2727
    %v3644 = vunpack.c.l.b16 %v2728
    %v3645 = vunpack.c.h.b16 %v2728
    %v3646 = vunpack.c.l.b16 %v2729
    %v3647 = vunpack.c.l.b16 %v2730
    %v3648 = vunpack.c.h.b16 %v2730
    %v3649 = vunpack.c.l.b16 %v2731
    %v3650 = vunpack.c.l.b16 %v2732
    %v3651 = vunpack.c.h.b16 %v2732
    %v3652 = vunpack.c.l.b16 %v2733
    %v3653 = vunpack.c.l.b16 %v2734
    %v3654 = vunpack.c.h.b16 %v2734
    %v3655 = vunpack.c.l.b16 %v2735
    %v3656 = vunpack.c.l.b16 %v2736
    %v3657 = vunpack.c.h.b16 %v2736
    %v3658 = vunpack.c.l.b16 %v2737
    %v3659 = vunpack.c.l.b16 %v2738
    %v3660 = vunpack.c.h.b16 %v2738
    %v3661 = vunpack.c.l.b16 %v2739
    %v3662 = vunpack.c.l.b16 %v2740
    %v3663 = vunpack.c.h.b16 %v2740
    %v3664 = vunpack.c.l.b16 %v2741
    %v3665 = vunpack.c.l.b16 %v2742
    %v3666 = vunpack.c.h.b16 %v2742
    %v3667 = vunpack.c.l.b16 %v2743
    %v3668 = vunpack.c.l.b16 %v2744
    %v3669 = vunpack.c.h.b16 %v2744
    %v3670 = vunpack.c.l.b16 %v2745
    %v3671 = vunpack.c.l.b16 %v2746
    %v3672 = vunpack.c.h.b16 %v2746
    %v3673 = vunpack.c.l.b16 %v2747
    %v3674 = vunpack.c.l.b16 %v2748
    %v3675 = vunpack.c.h.b16 %v2748
    %v3676 = vunpack.c.l.b16 %v2749
    %v3677 = vunpack.c.l.b16 %v2750
    %v3678 = vunpack.c.h.b16 %v2750
    %v3679 = vunpack.c.l.b16 %v2751
    %v3680 = vunpack.c.l.b16 %v2752
    %v3681 = vunpack.c.h.b16 %v2752
    %v3682 = vunpack.c.l.b16 %v2753
    %v3683 = vunpack.c.l.b16 %v2754
    %v3684 = vunpack.c.h.b16 %v2754
    %v3685 = vunpack.c.l.b16 %v2755
    %v3686 = vunpack.c.l.b16 %v2756
    %v3687 = vunpack.c.h.b16 %v2756
    %v3688 = vunpack.c.l.b16 %v2757
    %v3689 = vunpack.c.l.b16 %v2758
    %v3690 = vunpack.c.h.b16 %v2758
    %v3691 = vunpack.c.l.b16 %v2759
    %v3692 = vunpack.c.l.b16 %v2760
    %v3693 = vunpack.c.h.b16 %v2760
    %v3694 = vunpack.c.l.b16 %v2761
    %v3695 = vunpack.c.l.b16 %v2762
    %v3696 = vunpack.c.h.b16 %v2762
    %v3697 = vunpack.c.l.b16 %v2763
    %v3698 = vunpack.c.l.b16 %v2764
    %v3699 = vunpack.c.h.b16 %v2764
    %v3700 = vunpack.c.l.b16 %v2765
    %v3701 = vunpack.c.l.b16 %v2766
    %v3702 = vunpack.c.h.b16 %v2766
    %v3703 = vunpack.c.l.b16 %v2767
    %v3704 = vunpack.c.l.b16 %v2768
    %v3705 = vunpack.c.h.b16 %v2768
    %v3706 = vunpack.c.l.b16 %v2769
    %v3707 = vunpack.c.l.b16 %v2770
    %v3708 = vunpack.c.h.b16 %v2770
    %v3709 = vunpack.c.l.b16 %v2771
    %v3710 = vunpack.c.l.b16 %v2772
    %v3711 = vunpack.c.h.b16 %v2772
    %v3712 = vunpack.c.l.b16 %v2773
    %v3713 = vunpack.c.l.b16 %v2774
    %v3714 = vunpack.c.h.b16 %v2774
    %v3715 = vunpack.c.l.b16 %v2775
    %v3716 = vunpack.c.l.b16 %v2776
    %v3717 = vunpack.c.h.b16 %v2776
    %v3718 = vunpack.c.l.b16 %v2777
    %v3719 = vunpack.c.l.b16 %v2778
    %v3720 = vunpack.c.h.b16 %v2778
    %v3721 = vunpack.c.l.b16 %v2779
    %v3722 = vunpack.c.l.b16 %v2780
    %v3723 = vunpack.c.h.b16 %v2780
    %v3724 = vunpack.c.l.b16 %v2781
    %v3725 = vunpack.c.l.b16 %v2782
    %v3726 = vunpack.c.h.b16 %v2782
    %v3727 = vunpack.c.l.b16 %v2783
    %v3728 = vunpack.c.l.b16 %v2784
    %v3729 = vunpack.c.h.b16 %v2784
    %v3730 = vunpack.c.l.b16 %v2785
    %v3731 = vunpack.c.l.b16 %v2786
    %v3732 = vunpack.c.h.b16 %v2786
    %v3733 = vunpack.c.l.b16 %v2787
    %v3734 = vunpack.c.l.b16 %v2788
    %v3735 = vunpack.c.h.b16 %v2788
    %v3736 = vunpack.c.l.b16 %v2789
    %v3737 = vunpack.c.l.b16 %v2790
    %v3738 = vunpack.c.h.b16 %v2790
    %v3739 = vunpack.c.l.b16 %v2791
    %v3740 = vunpack.c.l.b16 %v2792
    %v3741 = vunpack.c.h.b16 %v2792
    %v3742 = vunpack.c.l.b16 %v2793
    %v3743 = vunpack.c.l.b16 %v2794
    %v3744 = vunpack.c.h.b16 %v2794
    %v3745 = vunpack.c.l.b16 %v2795
    %v3746 = vunpack.c.l.b16 %v2796
    %v3747 = vunpack.c.h.b16 %v2796
    %v3748 = vunpack.c.l.b16 %v2797
    %v3749 = vunpack.c.l.b16 %v2798
    %v3750 = vunpack.c.h.b16 %v2798
    %v3751 = vunpack.c.l.b16 %v2799
    %v3752 = vunpack.c.l.b16 %v2800
    %v3753 = vunpack.c.h.b16 %v2800
    %v3754 = vunpack.c.l.b16 %v2801
    %v3755 = vunpack.c.l.b16 %v2802
    %v3756 = vunpack.c.h.b16 %v2802
    %v3757 = vunpack.c.l.b16 %v2803
    %v3758 = vunpack.c.l.b16 %v2804
    %v3759 = vunpack.c.h.b16 %v2804
    %v3760 = vunpack.c.l.b16 %v2805
    %v3761 = vunpack.c.l.b16 %v2806
    %v3762 = vunpack.c.h.b16 %v2806
    %v3763 = vunpack.c.l.b16 %v2807
    %v3764 = vunpack.c.l.b16 %v2808
    %v3765 = vunpack.c.h.b16 %v2808
    %v3766 = vunpack.c.l.b16 %v2809
    %v3767 = vunpack.c.l.b16 %v2810
    %v3768 = vunpack.c.h.b16 %v2810
    %v3769 = vunpack.c.l.b16 %v2811
    %v3770 = vunpack.c.l.b16 %v2812
    %v3771 = vunpack.c.h.b16 %v2812
    %v3772 = vunpack.c.l.b16 %v2813
    %v3773 = vunpack.c.l.b16 %v2814
    %v3774 = vunpack.c.h.b16 %v2814
    %v3775 = vunpack.c.l.b16 %v2815
    %v3776 = vpack.c.b16 %v3203, %v3200
    %v3777 = vpack.c.b16 %v3204, %v3201
    %v3778 = vpack.c.b16 %v3205, %v3202
    %v3779 = vpack.c.b16 %v3209, %v3206
    %v3780 = vpack.c.b16 %v3210, %v3207
    %v3781 = vpack.c.b16 %v3211, %v3208
    %v3782 = vpack.c.b16 %v3215, %v3212
    %v3783 = vpack.c.b16 %v3216, %v3213
    %v3784 = vpack.c.b16 %v3217, %v3214
    %v3785 = vpack.c.b16 %v3221, %v3218
    %v3786 = vpack.c.b16 %v3222, %v3219
    %v3787 = vpack.c.b16 %v3223, %v3220
    %v3788 = vpack.c.b16 %v3227, %v3224
    %v3789 = vpack.c.b16 %v3228, %v3225
    %v3790 = vpack.c.b16 %v3229, %v3226
    %v3791 = vpack.c.b16 %v3233, %v3230
    %v3792 = vpack.c.b16 %v3234, %v3231
    %v3793 = vpack.c.b16 %v3235, %v3232
    %v3794 = vpack.c.b16 %v3239, %v3236
    %v3795 = vpack.c.b16 %v3240, %v3237
    %v3796 = vpack.c.b16 %v3241, %v3238
    %v3797 = vpack.c.b16 %v3245, %v3242
    %v3798 = vpack.c.b16 %v3246, %v3243
    %v3799 = vpack.c.b16 %v3247, %v3244
    %v3800 = vpack.c.b16 %v3251, %v3248
    %v3801 = vpack.c.b16 %v3252, %v3249
    %v3802 = vpack.c.b16 %v3253, %v3250
    %v3803 = vpack.c.b16 %v3257, %v3254
    %v3804 = vpack.c.b16 %v3258, %v3255
    %v3805 = vpack.c.b16 %v3259, %v3256
    %v3806 = vpack.c.b16 %v3263, %v3260
    %v3807 = vpack.c.b16 %v3264, %v3261
    %v3808 = vpack.c.b16 %v3265, %v3262
    %v3809 = vpack.c.b16 %v3269, %v3266
    %v3810 = vpack.c.b16 %v3270, %v3267
    %v3811 = vpack.c.b16 %v3271, %v3268
    %v3812 = vpack.c.b16 %v3275, %v3272
    %v3813 = vpack.c.b16 %v3276, %v3273
    %v3814 = vpack.c.b16 %v3277, %v3274
    %v3815 = vpack.c.b16 %v3281, %v3278
    %v3816 = vpack.c.b16 %v3282, %v3279
    %v3817 = vpack.c.b16 %v3283, %v3280
    %v3818 = vpack.c.b16 %v3287, %v3284
    %v3819 = vpack.c.b16 %v3288, %v3285
    %v3820 = vpack.c.b16 %v3289, %v3286
    %v3821 = vpack.c.b16 %v3293, %v3290
    %v3822 = vpack.c.b16 %v3294, %v3291
    %v3823 = vpack.c.b16 %v3295, %v3292
    %v3824 = vpack.c.b16 %v3299, %v3296
    %v3825 = vpack.c.b16 %v3300, %v3297
    %v3826 = vpack.c.b16 %v3301, %v3298
    %v3827 = vpack.c.b16 %v3305, %v3302
    %v3828 = vpack.c.b16 %v3306, %v3303
    %v3829 = vpack.c.b16 %v3307, %v3304
    %v3830 = vpack.c.b16 %v3311, %v3308
    %v3831 = vpack.c.b16 %v3312, %v3309
    %v3832 = vpack.c.b16 %v3313, %v3310
    %v3833 = vpack.c.b16 %v3317, %v3314
    %v3834 = vpack.c.b16 %v3318, %v3315
    %v3835 = vpack.c.b16 %v3319, %v3316
    %v3836 = vpack.c.b16 %v3323, %v3320
    %v3837 = vpack.c.b16 %v3324, %v3321
    %v3838 = vpack.c.b16 %v3325, %v3322
    %v3839 = vpack.c.b16 %v3329, %v3326
    %v3840 = vpack.c.b16 %v3330, %v3327
    %v3841 = vpack.c.b16 %v3331, %v3328
    %v3842 = vpack.c.b16 %v3335, %v3332
    %v3843 = vpack.c.b16 %v3336, %v3333
    %v3844 = vpack.c.b16 %v3337, %v3334
    %v3845 = vpack.c.b16 %v3341, %v3338
    %v3846 = vpack.c.b16 %v3342, %v3339
    %v3847 = vpack.c.b16 %v3343, %v3340
    %v3848 = vpack.c.b16 %v3347, %v3344
    %v3849 = vpack.c.b16 %v3348, %v3345
    %v3850 = vpack.c.b16 %v3349, %v3346
    %v3851 = vpack.c.b16 %v3353, %v3350
    %v3852 = vpack.c.b16 %v3354, %v3351
    %v3853 = vpack.c.b16 %v3355, %v3352
    %v3854 = vpack.c.b16 %v3359, %v3356
    %v3855 = vpack.c.b16 %v3360, %v3357
    %v3856 = vpack.c.b16 %v3361, %v3358
    %v3857 = vpack.c.b16 %v3365, %v3362
    %v3858 = vpack.c.b16 %v3366, %v3363
    %v3859 = vpack.c.b16 %v3367, %v3364
    %v3860 = vpack.c.b16 %v3371, %v3368
    %v3861 = vpack.c.b16 %v3372, %v3369
    %v3862 = vpack.c.b16 %v3373, %v3370
    %v3863 = vpack.c.b16 %v3377, %v3374
    %v3864 = vpack.c.b16 %v3378, %v3375
    %v3865 = vpack.c.b16 %v3379, %v3376
    %v3866 = vpack.c.b16 %v3383, %v3380
    %v3867 = vpack.c.b16 %v3384, %v3381
    %v3868 = vpack.c.b16 %v3385, %v3382
    %v3869 = vpack.c.b16 %v3389, %v3386
    %v3870 = vpack.c.b16 %v3390, %v3387
    %v3871 = vpack.c.b16 %v3391, %v3388
    %v3872 = vpack.c.b16 %v3395, %v3392
    %v3873 = vpack.c.b16 %v3396, %v3393
    %v3874 = vpack.c.b16 %v3397, %v3394
    %v3875 = vpack.c.b16 %v3401, %v3398
    %v3876 = vpack.c.b16 %v3402, %v3399
    %v3877 = vpack.c.b16 %v3403, %v3400
    %v3878 = vpack.c.b16 %v3407, %v3404
    %v3879 = vpack.c.b16 %v3408, %v3405
    %v3880 = vpack.c.b16 %v3409, %v3406
    %v3881 = vpack.c.b16 %v3413, %v3410
    %v3882 = vpack.c.b16 %v3414, %v3411
    %v3883 = vpack.c.b16 %v3415, %v3412
    %v3884 = vpack.c.b16 %v3419, %v3416
    %v3885 = vpack.c.b16 %v3420, %v3417
    %v3886 = vpack.c.b16 %v3421, %v3418
    %v3887 = vpack.c.b16 %v3425, %v3422
    %v3888 = vpack.c.b16 %v3426, %v3423
    %v3889 = vpack.c.b16 %v3427, %v3424
    %v3890 = vpack.c.b16 %v3431, %v3428
    %v3891 = vpack.c.b16 %v3432, %v3429
    %v3892 = vpack.c.b16 %v3433, %v3430
    %v3893 = vpack.c.b16 %v3437, %v3434
    %v3894 = vpack.c.b16 %v3438, %v3435
    %v3895 = vpack.c.b16 %v3439, %v3436
    %v3896 = vpack.c.b16 %v3443, %v3440
    %v3897 = vpack.c.b16 %v3444, %v3441
    %v3898 = vpack.c.b16 %v3445, %v3442
    %v3899 = vpack.c.b16 %v3449, %v3446
    %v3900 = vpack.c.b16 %v3450, %v3447
    %v3901 = vpack.c.b16 %v3451, %v3448
    %v3902 = vpack.c.b16 %v3455, %v3452
    %v3903 = vpack.c.b16 %v3456, %v3453
    %v3904 = vpack.c.b16 %v3457, %v3454
    %v3905 = vpack.c.b16 %v3461, %v3458
    %v3906 = vpack.c.b16 %v3462, %v3459
    %v3907 = vpack.c.b16 %v3463, %v3460
    %v3908 = vpack.c.b16 %v3467, %v3464
    %v3909 = vpack.c.b16 %v3468, %v3465
    %v3910 = vpack.c.b16 %v3469, %v3466
    %v3911 = vpack.c.b16 %v3473, %v3470
    %v3912 = vpack.c.b16 %v3474, %v3471
    %v3913 = vpack.c.b16 %v3475, %v3472
    %v3914 = vpack.c.b16 %v3479, %v3476
    %v3915 = vpack.c.b16 %v3480, %v3477
    %v3916 = vpack.c.b16 %v3481, %v3478
    %v3917 = vpack.c.b16 %v3485, %v3482
    %v3918 = vpack.c.b16 %v3486, %v3483
    %v3919 = vpack.c.b16 %v3487, %v3484
    %v3920 = vpack.c.b16 %v3491, %v3488
    %v3921 = vpack.c.b16 %v3492, %v3489
    %v3922 = vpack.c.b16 %v3493, %v3490
    %v3923 = vpack.c.b16 %v3497, %v3494
    %v3924 = vpack.c.b16 %v3498, %v3495
    %v3925 = vpack.c.b16 %v3499, %v3496
    %v3926 = vpack.c.b16 %v3503, %v3500
    %v3927 = vpack.c.b16 %v3504, %v3501
    %v3928 = vpack.c.b16 %v3505, %v3502
    %v3929 = vpack.c.b16 %v3509, %v3506
    %v3930 = vpack.c.b16 %v3510, %v3507
    %v3931 = vpack.c.b16 %v3511, %v3508
    %v3932 = vpack.c.b16 %v3515, %v3512
    %v3933 = vpack.c.b16 %v3516, %v3513
    %v3934 = vpack.c.b16 %v3517, %v3514
    %v3935 = vpack.c.b16 %v3521, %v3518
    %v3936 = vpack.c.b16 %v3522, %v3519
    %v3937 = vpack.c.b16 %v3523, %v3520
    %v3938 = vpack.c.b16 %v3527, %v3524
    %v3939 = vpack.c.b16 %v3528, %v3525
    %v3940 = vpack.c.b16 %v3529, %v3526
    %v3941 = vpack.c.b16 %v3533, %v3530
    %v3942 = vpack.c.b16 %v3534, %v3531
    %v3943 = vpack.c.b16 %v3535, %v3532
    %v3944 = vpack.c.b16 %v3539, %v3536
    %v3945 = vpack.c.b16 %v3540, %v3537
    %v3946 = vpack.c.b16 %v3541, %v3538
    %v3947 = vpack.c.b16 %v3545, %v3542
    %v3948 = vpack.c.b16 %v3546, %v3543
    %v3949 = vpack.c.b16 %v3547, %v3544
    %v3950 = vpack.c.b16 %v3551, %v3548
    %v3951 = vpack.c.b16 %v3552, %v3549
    %v3952 = vpack.c.b16 %v3553, %v3550
    %v3953 = vpack.c.b16 %v3557, %v3554
    %v3954 = vpack.c.b16 %v3558, %v3555
    %v3955 = vpack.c.b16 %v3559, %v3556
    %v3956 = vpack.c.b16 %v3563, %v3560
    %v3957 = vpack.c.b16 %v3564, %v3561
    %v3958 = vpack.c.b16 %v3565, %v3562
    %v3959 = vpack.c.b16 %v3569, %v3566
    %v3960 = vpack.c.b16 %v3570, %v3567
    %v3961 = vpack.c.b16 %v3571, %v3568
    %v3962 = vpack.c.b16 %v3575, %v3572
    %v3963 = vpack.c.b16 %v3576, %v3573
    %v3964 = vpack.c.b16 %v3577, %v3574
    %v3965 = vpack.c.b16 %v3581, %v3578
    %v3966 = vpack.c.b16 %v3582, %v3579
    %v3967 = vpack.c.b16 %v3583, %v3580
    %v3968 = vpack.c.b16 %v3587, %v3584
    %v3969 = vpack.c.b16 %v3588, %v3585
    %v3970 = vpack.c.b16 %v3589, %v3586
    %v3971 = vpack.c.b16 %v3593, %v3590
    %v3972 = vpack.c.b16 %v3594, %v3591
    %v3973 = vpack.c.b16 %v3595, %v3592
    %v3974 = vpack.c.b16 %v3599, %v3596
    %v3975 = vpack.c.b16 %v3600, %v3597
    %v3976 = vpack.c.b16 %v3601, %v3598
    %v3977 = vpack.c.b16 %v3605, %v3602
    %v3978 = vpack.c.b16 %v3606, %v3603
    %v3979 = vpack.c.b16 %v3607, %v3604
    %v3980 = vpack.c.b16 %v3611, %v3608
    %v3981 = vpack.c.b16 %v3612, %v3609
    %v3982 = vpack.c.b16 %v3613, %v3610
    %v3983 = vpack.c.b16 %v3617, %v3614
    %v3984 = vpack.c.b16 %v3618, %v3615
    %v3985 = vpack.c.b16 %v3619, %v3616
    %v3986 = vpack.c.b16 %v3623, %v3620
    %v3987 = vpack.c.b16 %v3624, %v3621
    %v3988 = vpack.c.b16 %v3625, %v3622
    %v3989 = vpack.c.b16 %v3629, %v3626
    %v3990 = vpack.c.b16 %v3630, %v3627
    %v3991 = vpack.c.b16 %v3631, %v3628
    %v3992 = vpack.c.b16 %v3635, %v3632
    %v3993 = vpack.c.b16 %v3636, %v3633
    %v3994 = vpack.c.b16 %v3637, %v3634
    %v3995 = vpack.c.b16 %v3641, %v3638
    %v3996 = vpack.c.b16 %v3642, %v3639
    %v3997 = vpack.c.b16 %v3643, %v3640
    %v3998 = vpack.c.b16 %v3647, %v3644
    %v3999 = vpack.c.b16 %v3648, %v3645
    %v4000 = vpack.c.b16 %v3649, %v3646
    %v4001 = vpack.c.b16 %v3653, %v3650
    %v4002 = vpack.c.b16 %v3654, %v3651
    %v4003 = vpack.c.b16 %v3655, %v3652
    %v4004 = vpack.c.b16 %v3659, %v3656
    %v4005 = vpack.c.b16 %v3660, %v3657
    %v4006 = vpack.c.b16 %v3661, %v3658
    %v4007 = vpack.c.b16 %v3665, %v3662
    %v4008 = vpack.c.b16 %v3666, %v3663
    %v4009 = vpack.c.b16 %v3667, %v3664
    %v4010 = vpack.c.b16 %v3671, %v3668
    %v4011 = vpack.c.b16 %v3672, %v3669
    %v4012 = vpack.c.b16 %v3673, %v3670
    %v4013 = vpack.c.b16 %v3677, %v3674
    %v4014 = vpack.c.b16 %v3678, %v3675
    %v4015 = vpack.c.b16 %v3679, %v3676
    %v4016 = vpack.c.b16 %v3683, %v3680
    %v4017 = vpack.c.b16 %v3684, %v3681
    %v4018 = vpack.c.b16 %v3685, %v3682
    %v4019 = vpack.c.b16 %v3689, %v3686
    %v4020 = vpack.c.b16 %v3690, %v3687
    %v4021 = vpack.c.b16 %v3691, %v3688
    %v4022 = vpack.c.b16 %v3695, %v3692
    %v4023 = vpack.c.b16 %v3696, %v3693
    %v4024 = vpack.c.b16 %v3697, %v3694
    %v4025 = vpack.c.b16 %v3701, %v3698
    %v4026 = vpack.c.b16 %v3702, %v3699
    %v4027 = vpack.c.b16 %v3703, %v3700
    %v4028 = vpack.c.b16 %v3707, %v3704
    %v4029 = vpack.c.b16 %v3708, %v3705
    %v4030 = vpack.c.b16 %v3709, %v3706
    %v4031 = vpack.c.b16 %v3713, %v3710
    %v4032 = vpack.c.b16 %v3714, %v3711
    %v4033 = vpack.c.b16 %v3715, %v3712
    %v4034 = vpack.c.b16 %v3719, %v3716
    %v4035 = vpack.c.b16 %v3720, %v3717
    %v4036 = vpack.c.b16 %v3721, %v3718
    %v4037 = vpack.c.b16 %v3725, %v3722
    %v4038 = vpack.c.b16 %v3726, %v3723
    %v4039 = vpack.c.b16 %v3727, %v3724
    %v4040 = vpack.c.b16 %v3731, %v3728
    %v4041 = vpack.c.b16 %v3732, %v3729
    %v4042 = vpack.c.b16 %v3733, %v3730
    %v4043 = vpack.c.b16 %v3737, %v3734
    %v4044 = vpack.c.b16 %v3738, %v3735
    %v4045 = vpack.c.b16 %v3739, %v3736
    %v4046 = vpack.c.b16 %v3743, %v3740
    %v4047 = vpack.c.b16 %v3744, %v3741
    %v4048 = vpack.c.b16 %v3745, %v3742
    %v4049 = vpack.c.b16 %v3749, %v3746
    %v4050 = vpack.c.b16 %v3750, %v3747
    %v4051 = vpack.c.b16 %v3751, %v3748
    %v4052 = vpack.c.b16 %v3755, %v3752
    %v4053 = vpack.c.b16 %v3756, %v3753
    %v4054 = vpack.c.b16 %v3757, %v3754
    %v4055 = vpack.c.b16 %v3761, %v3758
    %v4056 = vpack.c.b16 %v3762, %v3759
    %v4057 = vpack.c.b16 %v3763, %v3760
    %v4058 = vpack.c.b16 %v3767, %v3764
    %v4059 = vpack.c.b16 %v3768, %v3765
    %v4060 = vpack.c.b16 %v3769, %v3766
    %v4061 = vpack.c.b16 %v3773, %v3770
    %v4062 = vpack.c.b16 %v3774, %v3771
    %v4063 = vpack.c.b16 %v3775, %v3772
    %4352 = vmatprep.subr.bf16.mxu0 %v3777
    %4353 = vmatpush1.bf16.msra.mxu0 %v3776
    %4354 = vmatprep.subr.bf16.mxu0 %v3780
    %4355 = vmatpush1.bf16.msra.mxu0 %v3779
    %4356 = vmatprep.subr.bf16.mxu0 %v3783
    %4357 = vmatpush1.bf16.msra.mxu0 %v3782
    %4358 = vmatprep.subr.bf16.mxu0 %v3786
    %4359 = vmatpush1.bf16.msra.mxu0 %v3785
    %4360 = vmatprep.subr.bf16.mxu0 %v3789
    %4361 = vmatpush1.bf16.msra.mxu0 %v3788
    %4362 = vmatprep.subr.bf16.mxu0 %v3792
    %4363 = vmatpush1.bf16.msra.mxu0 %v3791
    %4364 = vmatprep.subr.bf16.mxu0 %v3795
    %4365 = vmatpush1.bf16.msra.mxu0 %v3794
    %4366 = vmatprep.subr.bf16.mxu0 %v3798
    %4367 = vmatpush1.bf16.msra.mxu0 %v3797
    %4368 = vmatprep.subr.bf16.mxu0 %v3801
    %4369 = vmatpush1.bf16.msra.mxu0 %v3800
    %4370 = vmatprep.subr.bf16.mxu0 %v3804
    %4371 = vmatpush1.bf16.msra.mxu0 %v3803
    %4372 = vmatprep.subr.bf16.mxu0 %v3807
    %4373 = vmatpush1.bf16.msra.mxu0 %v3806
    %4374 = vmatprep.subr.bf16.mxu0 %v3810
    %4375 = vmatpush1.bf16.msra.mxu0 %v3809
    %4376 = vmatprep.subr.bf16.mxu0 %v3813
    %4377 = vmatpush1.bf16.msra.mxu0 %v3812
    %4378 = vmatprep.subr.bf16.mxu0 %v3816
    %4379 = vmatpush1.bf16.msra.mxu0 %v3815
    %4380 = vmatprep.subr.bf16.mxu0 %v3819
    %4381 = vmatpush1.bf16.msra.mxu0 %v3818
    %4382 = vmatprep.subr.bf16.mxu0 %v3822
    %4383 = vmatpush1.bf16.msra.mxu0 %v3821
    %4384 = vmatprep.mubr.bf16.mxu0 %v2421
    %4385 = vmatmul.mubr.bf16.gmra.mrb[0].mxu0 %v2420
    %v4386 = vpop.f32.mrb[0].mxu0
    %v4387 = vadd.f32 0.0, %v4386
    %v4388 = vpop.f32.mrb[0].mxu0
    %v4389 = vadd.f32 0.0, %v4388
    %v4390 = vpop.f32.mrb[0].mxu0
    %v4391 = vadd.f32 0.0, %v4390
    %v4392 = vpop.f32.mrb[0].mxu0
    %v4393 = vadd.f32 0.0, %v4392
    %4394 = vdwg.mxu0
    %4395 = vmatprep.subr.bf16.mxu0 %v3825
    %4396 = vmatpush1.bf16.msra.mxu0 %v3824
    %4397 = vmatprep.subr.bf16.mxu0 %v3828
    %4398 = vmatpush1.bf16.msra.mxu0 %v3827
    %4399 = vmatprep.subr.bf16.mxu0 %v3831
    %4400 = vmatpush1.bf16.msra.mxu0 %v3830
    %4401 = vmatprep.subr.bf16.mxu0 %v3834
    %4402 = vmatpush1.bf16.msra.mxu0 %v3833
    %4403 = vmatprep.subr.bf16.mxu0 %v3837
    %4404 = vmatpush1.bf16.msra.mxu0 %v3836
    %4405 = vmatprep.subr.bf16.mxu0 %v3840
    %4406 = vmatpush1.bf16.msra.mxu0 %v3839
    %4407 = vmatprep.subr.bf16.mxu0 %v3843
    %4408 = vmatpush1.bf16.msra.mxu0 %v3842
    %4409 = vmatprep.subr.bf16.mxu0 %v3846
    %4410 = vmatpush1.bf16.msra.mxu0 %v3845
    %4411 = vmatprep.subr.bf16.mxu0 %v3849
    %4412 = vmatpush1.bf16.msra.mxu0 %v3848
    %4413 = vmatprep.subr.bf16.mxu0 %v3852
    %4414 = vmatpush1.bf16.msra.mxu0 %v3851
    %4415 = vmatprep.subr.bf16.mxu0 %v3855
    %4416 = vmatpush1.bf16.msra.mxu0 %v3854
    %4417 = vmatprep.subr.bf16.mxu0 %v3858
    %4418 = vmatpush1.bf16.msra.mxu0 %v3857
    %4419 = vmatprep.subr.bf16.mxu0 %v3861
    %4420 = vmatpush1.bf16.msra.mxu0 %v3860
    %4421 = vmatprep.subr.bf16.mxu0 %v3864
    %4422 = vmatpush1.bf16.msra.mxu0 %v3863
    %4423 = vmatprep.subr.bf16.mxu0 %v3867
    %4424 = vmatpush1.bf16.msra.mxu0 %v3866
    %4425 = vmatprep.subr.bf16.mxu0 %v3870
    %4426 = vmatpush1.bf16.msra.mxu0 %v3869
    %4427 = vmatprep.mubr.bf16.mxu0 %v2423
    %4428 = vmatmul.mubr.bf16.gmra.mrb[0].mxu0 %v2422
    %v4429 = vpop.f32.mrb[0].mxu0
    %v4430 = vadd.f32 %v4387, %v4429
    %v4431 = vpop.f32.mrb[0].mxu0
    %v4432 = vadd.f32 %v4389, %v4431
    %v4433 = vpop.f32.mrb[0].mxu0
    %v4434 = vadd.f32 %v4391, %v4433
    %v4435 = vpop.f32.mrb[0].mxu0
    %v4436 = vadd.f32 %v4393, %v4435
    %4437 = vdwg.mxu0
    %4438 = vmatprep.subr.bf16.mxu0 %v3873
    %4439 = vmatpush1.bf16.msra.mxu0 %v3872
    %4440 = vmatprep.subr.bf16.mxu0 %v3876
    %4441 = vmatpush1.bf16.msra.mxu0 %v3875
    %4442 = vmatprep.subr.bf16.mxu0 %v3879
    %4443 = vmatpush1.bf16.msra.mxu0 %v3878
    %4444 = vmatprep.subr.bf16.mxu0 %v3882
    %4445 = vmatpush1.bf16.msra.mxu0 %v3881
    %4446 = vmatprep.subr.bf16.mxu0 %v3885
    %4447 = vmatpush1.bf16.msra.mxu0 %v3884
    %4448 = vmatprep.subr.bf16.mxu0 %v3888
    %4449 = vmatpush1.bf16.msra.mxu0 %v3887
    %4450 = vmatprep.subr.bf16.mxu0 %v3891
    %4451 = vmatpush1.bf16.msra.mxu0 %v3890
    %4452 = vmatprep.subr.bf16.mxu0 %v3894
    %4453 = vmatpush1.bf16.msra.mxu0 %v3893
    %4454 = vmatprep.subr.bf16.mxu0 %v3897
    %4455 = vmatpush1.bf16.msra.mxu0 %v3896
    %4456 = vmatprep.subr.bf16.mxu0 %v3900
    %4457 = vmatpush1.bf16.msra.mxu0 %v3899
    %4458 = vmatprep.subr.bf16.mxu0 %v3903
    %4459 = vmatpush1.bf16.msra.mxu0 %v3902
    %4460 = vmatprep.subr.bf16.mxu0 %v3906
    %4461 = vmatpush1.bf16.msra.mxu0 %v3905
    %4462 = vmatprep.subr.bf16.mxu0 %v3909
    %4463 = vmatpush1.bf16.msra.mxu0 %v3908
    %4464 = vmatprep.subr.bf16.mxu0 %v3912
    %4465 = vmatpush1.bf16.msra.mxu0 %v3911
    %4466 = vmatprep.subr.bf16.mxu0 %v3915
    %4467 = vmatpush1.bf16.msra.mxu0 %v3914
    %4468 = vmatprep.subr.bf16.mxu0 %v3918
    %4469 = vmatpush1.bf16.msra.mxu0 %v3917
    %4470 = vmatprep.mubr.bf16.mxu0 %v2425
    %4471 = vmatmul.mubr.bf16.gmra.mrb[0].mxu0 %v2424
    %v4472 = vpop.f32.mrb[0].mxu0
    %v4473 = vadd.f32 %v4430, %v4472
    %v4474 = vpop.f32.mrb[0].mxu0
    %v4475 = vadd.f32 %v4432, %v4474
    %v4476 = vpop.f32.mrb[0].mxu0
    %v4477 = vadd.f32 %v4434, %v4476
    %v4478 = vpop.f32.mrb[0].mxu0
    %v4479 = vadd.f32 %v4436, %v4478
    %4480 = vdwg.mxu0
    %4481 = vmatprep.subr.bf16.mxu0 %v3921
    %4482 = vmatpush1.bf16.msra.mxu0 %v3920
    %4483 = vmatprep.subr.bf16.mxu0 %v3924
    %4484 = vmatpush1.bf16.msra.mxu0 %v3923
    %4485 = vmatprep.subr.bf16.mxu0 %v3927
    %4486 = vmatpush1.bf16.msra.mxu0 %v3926
    %4487 = vmatprep.subr.bf16.mxu0 %v3930
    %4488 = vmatpush1.bf16.msra.mxu0 %v3929
    %4489 = vmatprep.subr.bf16.mxu0 %v3933
    %4490 = vmatpush1.bf16.msra.mxu0 %v3932
    %4491 = vmatprep.subr.bf16.mxu0 %v3936
    %4492 = vmatpush1.bf16.msra.mxu0 %v3935
    %4493 = vmatprep.subr.bf16.mxu0 %v3939
    %4494 = vmatpush1.bf16.msra.mxu0 %v3938
    %4495 = vmatprep.subr.bf16.mxu0 %v3942
    %4496 = vmatpush1.bf16.msra.mxu0 %v3941
    %4497 = vmatprep.subr.bf16.mxu0 %v3945
    %4498 = vmatpush1.bf16.msra.mxu0 %v3944
    %4499 = vmatprep.subr.bf16.mxu0 %v3948
    %4500 = vmatpush1.bf16.msra.mxu0 %v3947
    %4501 = vmatprep.subr.bf16.mxu0 %v3951
    %4502 = vmatpush1.bf16.msra.mxu0 %v3950
    %4503 = vmatprep.subr.bf16.mxu0 %v3954
    %4504 = vmatpush1.bf16.msra.mxu0 %v3953
    %4505 = vmatprep.subr.bf16.mxu0 %v3957
    %4506 = vmatpush1.bf16.msra.mxu0 %v3956
    %4507 = vmatprep.subr.bf16.mxu0 %v3960
    %4508 = vmatpush1.bf16.msra.mxu0 %v3959
    %4509 = vmatprep.subr.bf16.mxu0 %v3963
    %4510 = vmatpush1.bf16.msra.mxu0 %v3962
    %4511 = vmatprep.subr.bf16.mxu0 %v3966
    %4512 = vmatpush1.bf16.msra.mxu0 %v3965
    %4513 = vmatprep.mubr.bf16.mxu0 %v2427
    %4514 = vmatmul.mubr.bf16.gmra.mrb[0].mxu0 %v2426
    %v4515 = vpop.f32.mrb[0].mxu0
    %v4516 = vadd.f32 %v4473, %v4515
    %v4517 = vpop.f32.mrb[0].mxu0
    %v4518 = vadd.f32 %v4475, %v4517
    %v4519 = vpop.f32.mrb[0].mxu0
    %v4520 = vadd.f32 %v4477, %v4519
    %v4521 = vpop.f32.mrb[0].mxu0
    %v4522 = vadd.f32 %v4479, %v4521
    %4523 = vdwg.mxu0
    %4524 = vmatprep.subr.bf16.mxu0 %v3969
    %4525 = vmatpush1.bf16.msra.mxu0 %v3968
    %4526 = vmatprep.subr.bf16.mxu0 %v3972
    %4527 = vmatpush1.bf16.msra.mxu0 %v3971
    %4528 = vmatprep.subr.bf16.mxu0 %v3975
    %4529 = vmatpush1.bf16.msra.mxu0 %v3974
    %4530 = vmatprep.subr.bf16.mxu0 %v3978
    %4531 = vmatpush1.bf16.msra.mxu0 %v3977
    %4532 = vmatprep.subr.bf16.mxu0 %v3981
    %4533 = vmatpush1.bf16.msra.mxu0 %v3980
    %4534 = vmatprep.subr.bf16.mxu0 %v3984
    %4535 = vmatpush1.bf16.msra.mxu0 %v3983
    %4536 = vmatprep.subr.bf16.mxu0 %v3987
    %4537 = vmatpush1.bf16.msra.mxu0 %v3986
    %4538 = vmatprep.subr.bf16.mxu0 %v3990
    %4539 = vmatpush1.bf16.msra.mxu0 %v3989
    %4540 = vmatprep.subr.bf16.mxu0 %v3993
    %4541 = vmatpush1.bf16.msra.mxu0 %v3992
    %4542 = vmatprep.subr.bf16.mxu0 %v3996
    %4543 = vmatpush1.bf16.msra.mxu0 %v3995
    %4544 = vmatprep.subr.bf16.mxu0 %v3999
    %4545 = vmatpush1.bf16.msra.mxu0 %v3998
    %4546 = vmatprep.subr.bf16.mxu0 %v4002
    %4547 = vmatpush1.bf16.msra.mxu0 %v4001
    %4548 = vmatprep.subr.bf16.mxu0 %v4005
    %4549 = vmatpush1.bf16.msra.mxu0 %v4004
    %4550 = vmatprep.subr.bf16.mxu0 %v4008
    %4551 = vmatpush1.bf16.msra.mxu0 %v4007
    %4552 = vmatprep.subr.bf16.mxu0 %v4011
    %4553 = vmatpush1.bf16.msra.mxu0 %v4010
    %4554 = vmatprep.subr.bf16.mxu0 %v4014
    %4555 = vmatpush1.bf16.msra.mxu0 %v4013
    %4556 = vmatprep.mubr.bf16.mxu0 %v2429
    %4557 = vmatmul.mubr.bf16.gmra.mrb[0].mxu0 %v2428
    %v4558 = vpop.f32.mrb[0].mxu0
    %v4559 = vadd.f32 %v4516, %v4558
    %v4560 = vpop.f32.mrb[0].mxu0
    %v4561 = vadd.f32 %v4518, %v4560
    %v4562 = vpop.f32.mrb[0].mxu0
    %v4563 = vadd.f32 %v4520, %v4562
    %v4564 = vpop.f32.mrb[0].mxu0
    %v4565 = vadd.f32 %v4522, %v4564
    %4566 = vdwg.mxu0
    %4567 = vmatprep.subr.bf16.mxu0 %v4017
    %4568 = vmatpush1.bf16.msra.mxu0 %v4016
    %4569 = vmatprep.subr.bf16.mxu0 %v4020
    %4570 = vmatpush1.bf16.msra.mxu0 %v4019
    %4571 = vmatprep.subr.bf16.mxu0 %v4023
    %4572 = vmatpush1.bf16.msra.mxu0 %v4022
    %4573 = vmatprep.subr.bf16.mxu0 %v4026
    %4574 = vmatpush1.bf16.msra.mxu0 %v4025
    %4575 = vmatprep.subr.bf16.mxu0 %v4029
    %4576 = vmatpush1.bf16.msra.mxu0 %v4028
    %4577 = vmatprep.subr.bf16.mxu0 %v4032
    %4578 = vmatpush1.bf16.msra.mxu0 %v4031
    %4579 = vmatprep.subr.bf16.mxu0 %v4035
    %4580 = vmatpush1.bf16.msra.mxu0 %v4034
    %4581 = vmatprep.subr.bf16.mxu0 %v4038
    %4582 = vmatpush1.bf16.msra.mxu0 %v4037
    %4583 = vmatprep.subr.bf16.mxu0 %v4041
    %4584 = vmatpush1.bf16.msra.mxu0 %v4040
    %4585 = vmatprep.subr.bf16.mxu0 %v4044
    %4586 = vmatpush1.bf16.msra.mxu0 %v4043
    %4587 = vmatprep.subr.bf16.mxu0 %v4047
    %4588 = vmatpush1.bf16.msra.mxu0 %v4046
    %4589 = vmatprep.subr.bf16.mxu0 %v4050
    %4590 = vmatpush1.bf16.msra.mxu0 %v4049
    %4591 = vmatprep.subr.bf16.mxu0 %v4053
    %4592 = vmatpush1.bf16.msra.mxu0 %v4052
    %4593 = vmatprep.subr.bf16.mxu0 %v4056
    %4594 = vmatpush1.bf16.msra.mxu0 %v4055
    %4595 = vmatprep.subr.bf16.mxu0 %v4059
    %4596 = vmatpush1.bf16.msra.mxu0 %v4058
    %4597 = vmatprep.subr.bf16.mxu0 %v4062
    %4598 = vmatpush1.bf16.msra.mxu0 %v4061
    %4599 = vmatprep.mubr.bf16.mxu0 %v2431
    %4600 = vmatmul.mubr.bf16.gmra.mrb[0].mxu0 %v2430
    %v4601 = vpop.f32.mrb[0].mxu0
    %v4602 = vadd.f32 %v4559, %v4601
    %v4603 = vpop.f32.mrb[0].mxu0
    %v4604 = vadd.f32 %v4561, %v4603
    %v4605 = vpop.f32.mrb[0].mxu0
    %v4606 = vadd.f32 %v4563, %v4605
    %v4607 = vpop.f32.mrb[0].mxu0
    %v4608 = vadd.f32 %v4565, %v4607
    %4609 = vdwg.mxu0
    %4610 = vmatprep.subr.bf16.mxu0 0
    %4611 = vmatpush1.bf16.msra.mxu0 %v3778
    %4612 = vmatprep.subr.bf16.mxu0 0
    %4613 = vmatpush1.bf16.msra.mxu0 %v3781
    %4614 = vmatprep.subr.bf16.mxu0 0
    %4615 = vmatpush1.bf16.msra.mxu0 %v3784
    %4616 = vmatprep.subr.bf16.mxu0 0
    %4617 = vmatpush1.bf16.msra.mxu0 %v3787
    %4618 = vmatprep.subr.bf16.mxu0 0
    %4619 = vmatpush1.bf16.msra.mxu0 %v3790
    %4620 = vmatprep.subr.bf16.mxu0 0
    %4621 = vmatpush1.bf16.msra.mxu0 %v3793
    %4622 = vmatprep.subr.bf16.mxu0 0
    %4623 = vmatpush1.bf16.msra.mxu0 %v3796
    %4624 = vmatprep.subr.bf16.mxu0 0
    %4625 = vmatpush1.bf16.msra.mxu0 %v3799
    %4626 = vmatprep.subr.bf16.mxu0 0
    %4627 = vmatpush1.bf16.msra.mxu0 %v3802
    %4628 = vmatprep.subr.bf16.mxu0 0
    %4629 = vmatpush1.bf16.msra.mxu0 %v3805
    %4630 = vmatprep.subr.bf16.mxu0 0
    %4631 = vmatpush1.bf16.msra.mxu0 %v3808
    %4632 = vmatprep.subr.bf16.mxu0 0
    %4633 = vmatpush1.bf16.msra.mxu0 %v3811
    %4634 = vmatprep.subr.bf16.mxu0 0
    %4635 = vmatpush1.bf16.msra.mxu0 %v3814
    %4636 = vmatprep.subr.bf16.mxu0 0
    %4637 = vmatpush1.bf16.msra.mxu0 %v3817
    %4638 = vmatprep.subr.bf16.mxu0 0
    %4639 = vmatpush1.bf16.msra.mxu0 %v3820
    %4640 = vmatprep.subr.bf16.mxu0 0
    %4641 = vmatpush1.bf16.msra.mxu0 %v3823
    %4642 = vmatprep.mubr.bf16.mxu0 %v2421
    %4643 = vmatmul.mubr.bf16.gmra.mrb[0].mxu0 %v2420
    %v4644 = vpop.f32.mrb[0].mxu0
    %v4645 = vadd.f32 0.0, %v4644
    %v4646 = vpop.f32.mrb[0].mxu0
    %v4647 = vpop.f32.mrb[0].mxu0
    %v4648 = vadd.f32 0.0, %v4647
    %v4649 = vpop.f32.mrb[0].mxu0
    %4650 = vdwg.mxu0
    %4651 = vmatprep.subr.bf16.mxu0 0
    %4652 = vmatpush1.bf16.msra.mxu0 %v3826
    %4653 = vmatprep.subr.bf16.mxu0 0
    %4654 = vmatpush1.bf16.msra.mxu0 %v3829
    %4655 = vmatprep.subr.bf16.mxu0 0
    %4656 = vmatpush1.bf16.msra.mxu0 %v3832
    %4657 = vmatprep.subr.bf16.mxu0 0
    %4658 = vmatpush1.bf16.msra.mxu0 %v3835
    %4659 = vmatprep.subr.bf16.mxu0 0
    %4660 = vmatpush1.bf16.msra.mxu0 %v3838
    %4661 = vmatprep.subr.bf16.mxu0 0
    %4662 = vmatpush1.bf16.msra.mxu0 %v3841
    %4663 = vmatprep.subr.bf16.mxu0 0
    %4664 = vmatpush1.bf16.msra.mxu0 %v3844
    %4665 = vmatprep.subr.bf16.mxu0 0
    %4666 = vmatpush1.bf16.msra.mxu0 %v3847
    %4667 = vmatprep.subr.bf16.mxu0 0
    %4668 = vmatpush1.bf16.msra.mxu0 %v3850
    %4669 = vmatprep.subr.bf16.mxu0 0
    %4670 = vmatpush1.bf16.msra.mxu0 %v3853
    %4671 = vmatprep.subr.bf16.mxu0 0
    %4672 = vmatpush1.bf16.msra.mxu0 %v3856
    %4673 = vmatprep.subr.bf16.mxu0 0
    %4674 = vmatpush1.bf16.msra.mxu0 %v3859
    %4675 = vmatprep.subr.bf16.mxu0 0
    %4676 = vmatpush1.bf16.msra.mxu0 %v3862
    %4677 = vmatprep.subr.bf16.mxu0 0
    %4678 = vmatpush1.bf16.msra.mxu0 %v3865
    %4679 = vmatprep.subr.bf16.mxu0 0
    %4680 = vmatpush1.bf16.msra.mxu0 %v3868
    %4681 = vmatprep.subr.bf16.mxu0 0
    %4682 = vmatpush1.bf16.msra.mxu0 %v3871
    %4683 = vmatprep.mubr.bf16.mxu0 %v2423
    %4684 = vmatmul.mubr.bf16.gmra.mrb[0].mxu0 %v2422
    %v4685 = vpop.f32.mrb[0].mxu0
    %v4686 = vadd.f32 %v4645, %v4685
    %v4687 = vpop.f32.mrb[0].mxu0
    %v4688 = vpop.f32.mrb[0].mxu0
    %v4689 = vadd.f32 %v4648, %v4688
    %v4690 = vpop.f32.mrb[0].mxu0
    %4691 = vdwg.mxu0
    %4692 = vmatprep.subr.bf16.mxu0 0
    %4693 = vmatpush1.bf16.msra.mxu0 %v3874
    %4694 = vmatprep.subr.bf16.mxu0 0
    %4695 = vmatpush1.bf16.msra.mxu0 %v3877
    %4696 = vmatprep.subr.bf16.mxu0 0
    %4697 = vmatpush1.bf16.msra.mxu0 %v3880
    %4698 = vmatprep.subr.bf16.mxu0 0
    %4699 = vmatpush1.bf16.msra.mxu0 %v3883
    %4700 = vmatprep.subr.bf16.mxu0 0
    %4701 = vmatpush1.bf16.msra.mxu0 %v3886
    %4702 = vmatprep.subr.bf16.mxu0 0
    %4703 = vmatpush1.bf16.msra.mxu0 %v3889
    %4704 = vmatprep.subr.bf16.mxu0 0
    %4705 = vmatpush1.bf16.msra.mxu0 %v3892
    %4706 = vmatprep.subr.bf16.mxu0 0
    %4707 = vmatpush1.bf16.msra.mxu0 %v3895
    %4708 = vmatprep.subr.bf16.mxu0 0
    %4709 = vmatpush1.bf16.msra.mxu0 %v3898
    %4710 = vmatprep.subr.bf16.mxu0 0
    %4711 = vmatpush1.bf16.msra.mxu0 %v3901
    %4712 = vmatprep.subr.bf16.mxu0 0
    %4713 = vmatpush1.bf16.msra.mxu0 %v3904
    %4714 = vmatprep.subr.bf16.mxu0 0
    %4715 = vmatpush1.bf16.msra.mxu0 %v3907
    %4716 = vmatprep.subr.bf16.mxu0 0
    %4717 = vmatpush1.bf16.msra.mxu0 %v3910
    %4718 = vmatprep.subr.bf16.mxu0 0
    %4719 = vmatpush1.bf16.msra.mxu0 %v3913
    %4720 = vmatprep.subr.bf16.mxu0 0
    %4721 = vmatpush1.bf16.msra.mxu0 %v3916
    %4722 = vmatprep.subr.bf16.mxu0 0
    %4723 = vmatpush1.bf16.msra.mxu0 %v3919
    %4724 = vmatprep.mubr.bf16.mxu0 %v2425
    %4725 = vmatmul.mubr.bf16.gmra.mrb[0].mxu0 %v2424
    %v4726 = vpop.f32.mrb[0].mxu0
    %v4727 = vadd.f32 %v4686, %v4726
    %v4728 = vpop.f32.mrb[0].mxu0
    %v4729 = vpop.f32.mrb[0].mxu0
    %v4730 = vadd.f32 %v4689, %v4729
    %v4731 = vpop.f32.mrb[0].mxu0
    %4732 = vdwg.mxu0
    %4733 = vmatprep.subr.bf16.mxu0 0
    %4734 = vmatpush1.bf16.msra.mxu0 %v3922
    %4735 = vmatprep.subr.bf16.mxu0 0
    %4736 = vmatpush1.bf16.msra.mxu0 %v3925
    %4737 = vmatprep.subr.bf16.mxu0 0
    %4738 = vmatpush1.bf16.msra.mxu0 %v3928
    %4739 = vmatprep.subr.bf16.mxu0 0
    %4740 = vmatpush1.bf16.msra.mxu0 %v3931
    %4741 = vmatprep.subr.bf16.mxu0 0
    %4742 = vmatpush1.bf16.msra.mxu0 %v3934
    %4743 = vmatprep.subr.bf16.mxu0 0
    %4744 = vmatpush1.bf16.msra.mxu0 %v3937
    %4745 = vmatprep.subr.bf16.mxu0 0
    %4746 = vmatpush1.bf16.msra.mxu0 %v3940
    %4747 = vmatprep.subr.bf16.mxu0 0
    %4748 = vmatpush1.bf16.msra.mxu0 %v3943
    %4749 = vmatprep.subr.bf16.mxu0 0
    %4750 = vmatpush1.bf16.msra.mxu0 %v3946
    %4751 = vmatprep.subr.bf16.mxu0 0
    %4752 = vmatpush1.bf16.msra.mxu0 %v3949
    %4753 = vmatprep.subr.bf16.mxu0 0
    %4754 = vmatpush1.bf16.msra.mxu0 %v3952
    %4755 = vmatprep.subr.bf16.mxu0 0
    %4756 = vmatpush1.bf16.msra.mxu0 %v3955
    %4757 = vmatprep.subr.bf16.mxu0 0
    %4758 = vmatpush1.bf16.msra.mxu0 %v3958
    %4759 = vmatprep.subr.bf16.mxu0 0
    %4760 = vmatpush1.bf16.msra.mxu0 %v3961
    %4761 = vmatprep.subr.bf16.mxu0 0
    %4762 = vmatpush1.bf16.msra.mxu0 %v3964
    %4763 = vmatprep.subr.bf16.mxu0 0
    %4764 = vmatpush1.bf16.msra.mxu0 %v3967
    %4765 = vmatprep.mubr.bf16.mxu0 %v2427
    %4766 = vmatmul.mubr.bf16.gmra.mrb[0].mxu0 %v2426
    %v4767 = vpop.f32.mrb[0].mxu0
    %v4768 = vadd.f32 %v4727, %v4767
    %v4769 = vpop.f32.mrb[0].mxu0
    %v4770 = vpop.f32.mrb[0].mxu0
    %v4771 = vadd.f32 %v4730, %v4770
    %v4772 = vpop.f32.mrb[0].mxu0
    %4773 = vdwg.mxu0
    %4774 = vmatprep.subr.bf16.mxu0 0
    %4775 = vmatpush1.bf16.msra.mxu0 %v3970
    %4776 = vmatprep.subr.bf16.mxu0 0
    %4777 = vmatpush1.bf16.msra.mxu0 %v3973
    %4778 = vmatprep.subr.bf16.mxu0 0
    %4779 = vmatpush1.bf16.msra.mxu0 %v3976
    %4780 = vmatprep.subr.bf16.mxu0 0
    %4781 = vmatpush1.bf16.msra.mxu0 %v3979
    %4782 = vmatprep.subr.bf16.mxu0 0
    %4783 = vmatpush1.bf16.msra.mxu0 %v3982
    %4784 = vmatprep.subr.bf16.mxu0 0
    %4785 = vmatpush1.bf16.msra.mxu0 %v3985
    %4786 = vmatprep.subr.bf16.mxu0 0
    %4787 = vmatpush1.bf16.msra.mxu0 %v3988
    %4788 = vmatprep.subr.bf16.mxu0 0
    %4789 = vmatpush1.bf16.msra.mxu0 %v3991
    %4790 = vmatprep.subr.bf16.mxu0 0
    %4791 = vmatpush1.bf16.msra.mxu0 %v3994
    %4792 = vmatprep.subr.bf16.mxu0 0
    %4793 = vmatpush1.bf16.msra.mxu0 %v3997
    %4794 = vmatprep.subr.bf16.mxu0 0
    %4795 = vmatpush1.bf16.msra.mxu0 %v4000
    %4796 = vmatprep.subr.bf16.mxu0 0
    %4797 = vmatpush1.bf16.msra.mxu0 %v4003
    %4798 = vmatprep.subr.bf16.mxu0 0
    %4799 = vmatpush1.bf16.msra.mxu0 %v4006
    %4800 = vmatprep.subr.bf16.mxu0 0
    %4801 = vmatpush1.bf16.msra.mxu0 %v4009
    %4802 = vmatprep.subr.bf16.mxu0 0
    %4803 = vmatpush1.bf16.msra.mxu0 %v4012
    %4804 = vmatprep.subr.bf16.mxu0 0
    %4805 = vmatpush1.bf16.msra.mxu0 %v4015
    %4806 = vmatprep.mubr.bf16.mxu0 %v2429
    %4807 = vmatmul.mubr.bf16.gmra.mrb[0].mxu0 %v2428
    %v4808 = vpop.f32.mrb[0].mxu0
    %v4809 = vadd.f32 %v4768, %v4808
    %v4810 = vpop.f32.mrb[0].mxu0
    %v4811 = vpop.f32.mrb[0].mxu0
    %v4812 = vadd.f32 %v4771, %v4811
    %v4813 = vpop.f32.mrb[0].mxu0
    %4814 = vdwg.mxu0
    %4815 = vmatprep.subr.bf16.mxu0 0
    %4816 = vmatpush1.bf16.msra.mxu0 %v4018
    %4817 = vmatprep.subr.bf16.mxu0 0
    %4818 = vmatpush1.bf16.msra.mxu0 %v4021
    %4819 = vmatprep.subr.bf16.mxu0 0
    %4820 = vmatpush1.bf16.msra.mxu0 %v4024
    %4821 = vmatprep.subr.bf16.mxu0 0
    %4822 = vmatpush1.bf16.msra.mxu0 %v4027
    %4823 = vmatprep.subr.bf16.mxu0 0
    %4824 = vmatpush1.bf16.msra.mxu0 %v4030
    %4825 = vmatprep.subr.bf16.mxu0 0
    %4826 = vmatpush1.bf16.msra.mxu0 %v4033
    %4827 = vmatprep.subr.bf16.mxu0 0
    %4828 = vmatpush1.bf16.msra.mxu0 %v4036
    %4829 = vmatprep.subr.bf16.mxu0 0
    %4830 = vmatpush1.bf16.msra.mxu0 %v4039
    %4831 = vmatprep.subr.bf16.mxu0 0
    %4832 = vmatpush1.bf16.msra.mxu0 %v4042
    %4833 = vmatprep.subr.bf16.mxu0 0
    %4834 = vmatpush1.bf16.msra.mxu0 %v4045
    %4835 = vmatprep.subr.bf16.mxu0 0
    %4836 = vmatpush1.bf16.msra.mxu0 %v4048
    %4837 = vmatprep.subr.bf16.mxu0 0
    %4838 = vmatpush1.bf16.msra.mxu0 %v4051
    %4839 = vmatprep.subr.bf16.mxu0 0
    %4840 = vmatpush1.bf16.msra.mxu0 %v4054
    %4841 = vmatprep.subr.bf16.mxu0 0
    %4842 = vmatpush1.bf16.msra.mxu0 %v4057
    %4843 = vmatprep.subr.bf16.mxu0 0
    %4844 = vmatpush1.bf16.msra.mxu0 %v4060
    %4845 = vmatprep.subr.bf16.mxu0 0
    %4846 = vmatpush1.bf16.msra.mxu0 %v4063
    %4847 = vmatprep.mubr.bf16.mxu0 %v2431
    %4848 = vmatmul.mubr.bf16.gmra.mrb[0].mxu0 %v2430
    %v4849 = vpop.f32.mrb[0].mxu0
    %v4850 = vadd.f32 %v4809, %v4849
    %v4851 = vpop.f32.mrb[0].mxu0
    %v4852 = vpop.f32.mrb[0].mxu0
    %v4853 = vadd.f32 %v4812, %v4852
    %v4854 = vpop.f32.mrb[0].mxu0
    %4855 = vdwg.mxu0
    %v4856 = vadd.f32 %v2414, %v4602
    %v4857 = vadd.f32 %v2415, %v4604
    %v4858 = vadd.f32 %v2416, %v4850
    %v4859 = vadd.f32 %v2417, %v4606
    %v4860 = vadd.f32 %v2418, %v4608
    %v4861 = vadd.f32 %v2419, %v4853
    %4862 = vst [vmem:[#allocation2] sm:$0xff] %v4856
    %4863 = vst [vmem:[#allocation2 + $0x8] sm:$0xff] %v4857
    %4864 = vst [vmem:[#allocation2 + $0x10] sm:$0xff] %v4858
    %4865 = vst [vmem:[#allocation2 + $0x18] sm:$0xff] %v4859
    %4866 = vst [vmem:[#allocation2 + $0x20] sm:$0xff] %v4860
    %4867 = vst [vmem:[#allocation2 + $0x28] sm:$0xff] %v4861
    // Predicated region
    $region38: #{feed_forward.1} parent=1 // pred_check
      %p4868 = pneg %p63
    $region39: #{feed_forward.1} parent=1 // pred_check_branch
      %4870 = sbr.rel (%p4868) target = $region41
    $region40: #{feed_forward.1} parent=1 // pred_region
      %v4871 = vld [vmem:[#allocation2] sm:$0xff]
      %v4872 = vld [vmem:[#allocation2 + $0x8] sm:$0xff]
      %v4873 = vld [vmem:[#allocation2 + $0x10] sm:$0xff]
      %v4874 = vld [vmem:[#allocation2 + $0x18] sm:$0xff]
      %v4875 = vld [vmem:[#allocation2 + $0x20] sm:$0xff]
      %v4876 = vld [vmem:[#allocation2 + $0x28] sm:$0xff]
      %v4877 = vld [vmem:[%s4] sm:$0x7]
      %v4879 = vlaneseq
      %v4880 = vshrl.u32 %v4879, 7
      %v4881 = vsub.s32 0, %v4880
      %v4882 = vrot.slane %v4877, %v4881
      %v4883 = vlaneseq
      %v4884 = vshrl.u32 %v4883, 7
      %v4885 = vsub.s32 1, %v4884
      %v4886 = vrot.slane %v4877, %v4885
      %v4887 = vlaneseq
      %v4888 = vshrl.u32 %v4887, 7
      %v4889 = vsub.s32 2, %v4888
      %v4890 = vrot.slane %v4877, %v4889
      %v4894 = vadd.f32 %v4871, %v4882
      %v4895 = vadd.f32 %v4872, %v4886
      %v4896 = vadd.f32 %v4873, %v4890
      %v4897 = vadd.f32 %v4874, %v4882
      %v4898 = vadd.f32 %v4875, %v4886
      %v4899 = vadd.f32 %v4876, %v4890
      %4900 = vst [vmem:[#allocation9] sm:$0xff] %v4894
      %4901 = vst [vmem:[#allocation9 + $0x8] sm:$0xff] %v4895
      %4902 = vst [vmem:[#allocation9 + $0x10] sm:$0xff] %v4896
      %4903 = vst [vmem:[#allocation9 + $0x18] sm:$0xff] %v4897
      %4904 = vst [vmem:[#allocation9 + $0x20] sm:$0xff] %v4898
      %4905 = vst [vmem:[#allocation9 + $0x28] sm:$0xff] %v4899
    $region41: #{feed_forward.1} parent=1 // pred_fallthru
      _
    // Predicated region
    $region42: #{feed_forward.1} parent=1 // pred_check
      _
    $region43: #{feed_forward.1} parent=1 // pred_check_branch
      %4907 = sbr.rel (0) target = $region45
    $region44: #{feed_forward.1} parent=1 // pred_region
      %s4909 = ssub.s32 768, 768
      %4910 = vsyncadd [#allocation5], %s4909
      %s4911 = sshll.u32 [#allocation9], 4
      %s4912 = int_to_ptr.vmem [resolvable:$true] %s4911
      %4917 = dma.vmem_to_hbm [thread:$0]  %s4912, 768, %s5, [#allocation5], 384, 384, 24
    $region45: #{feed_forward.1} parent=1 // pred_fallthru
      _
    // Predicated region
    $region46: #{feed_forward.1} parent=1 // pred_check
      _
    $region47: #{feed_forward.1} parent=1 // pred_check_branch
      %4919 = sbr.rel (0) target = $region49
    $region48: #{feed_forward.1} parent=1 // pred_region
      %4920 = dma.done [#allocation5], 768
    $region49: #{feed_forward.1} parent=1 // pred_fallthru
      _
    %4921 = vsyncpa [#allocation4], 1
    %4922 = vsyncpa [#allocation7], 1
    %4923 = vsyncpa [#allocation5], 1

</llo_original>
